<compile_context>
chip_gen: v5e
topology: v5e:2x2
jax: 0.10.0
libtpu: 0.0.40
codegen_flags: <defaults>
</compile_context>

<pallas_src>
import functools

import jax
import jax.numpy as jnp
from jax.experimental import pallas as pl
from jax.experimental.pallas import tpu as pltpu


MXU_DTYPE = jnp.bfloat16   # MXU operand dtype (accumulation is always f32)


# ----------------------------------------------------------------------------
# Fused Pallas kernel: fc -> convT1+BN+ReLU -> convT2+BN+ReLU -> convT3+Tanh
# ----------------------------------------------------------------------------
def _generator_kernel(x_ref, wfc_ref, bfc_ref,
                      w1_ref, g1_ref, be1_ref, p1_ref, q1_ref,
                      w2_ref, g2_ref, be2_ref, p2_ref, q2_ref,
                      w3_ref, b3_ref, o_ref,
                      *, n1: float, n2: float, eps: float = 1e-5):
    f32 = jnp.float32

    # ---- fc: (N, Din) @ (Din, 256) + bias ----------------------------------
    h = jnp.dot(x_ref[...].astype(MXU_DTYPE), wfc_ref[...],
                preferred_element_type=f32) + bfc_ref[...]
    # view(N, 256, 1, 1) is the identity on the channel-major flat layout.

    def bn_relu(y, g_ref, be_ref, p_ref, q_ref, count):
        # y: (N, C*HW) channel-major flat.  p: (C*HW, C) one-hot pooling,
        # q = p.T (broadcast back).  Training-mode (biased) batch statistics.
        inv_n = 1.0 / count
        s1 = jnp.sum(y, axis=0, keepdims=True)                 # (1, C*HW)
        s2 = jnp.sum(y * y, axis=0, keepdims=True)             # (1, C*HW)
        mean_c = jnp.dot(s1, p_ref[...], preferred_element_type=f32) * inv_n
        ex2_c = jnp.dot(s2, p_ref[...], preferred_element_type=f32) * inv_n
        var_c = ex2_c - mean_c * mean_c                        # biased var
        scale_c = g_ref[...] * jax.lax.rsqrt(var_c + eps)      # (1, C)
        shift_c = be_ref[...] - mean_c * scale_c               # (1, C)
        scale_f = jnp.dot(scale_c, q_ref[...], preferred_element_type=f32)
        shift_f = jnp.dot(shift_c, q_ref[...], preferred_element_type=f32)
        return jnp.maximum(y * scale_f + shift_f, 0.0)         # BN + ReLU

    # ---- ConvT1 (256 -> 128, 1x1 -> 2x2) + BN + ReLU  (bias cancelled) -----
    y1 = jnp.dot(h.astype(MXU_DTYPE), w1_ref[...], preferred_element_type=f32)
    y1 = bn_relu(y1, g1_ref, be1_ref, p1_ref, q1_ref, n1)      # (N, 128*4)

    # ---- ConvT2 (128 -> 64, 2x2 -> 4x4) + BN + ReLU (bias cancelled) -------
    y2 = jnp.dot(y1.astype(MXU_DTYPE), w2_ref[...], preferred_element_type=f32)
    y2 = bn_relu(y2, g2_ref, be2_ref, p2_ref, q2_ref, n2)      # (N, 64*16)

    # ---- ConvT3 (64 -> Cout, 4x4 -> 8x8) + bias + Tanh ----------------------
    y3 = jnp.dot(y2.astype(MXU_DTYPE), w3_ref[...], preferred_element_type=f32)
    o_ref[...] = jnp.tanh(y3 + b3_ref[...])                    # (N, Cout*64)


# ----------------------------------------------------------------------------
# One-time parameter preprocessing (plain JAX; done once, not per forward)
# ----------------------------------------------------------------------------
def _convT_dense(w, hin, win):
    """ConvTranspose2d(k=4, s=2, p=1) as a dense matrix acting on the
    channel-major per-sample flattening.
    w: (Cin, Cout, 4, 4)  ->  (Cin*hin*win, Cout*(2hin)*(2win))."""
    cin, cout, kh, kw = w.shape
    hout, wout = 2 * hin, 2 * win
    ih = jnp.arange(hin); oh = jnp.arange(hout)
    iw = jnp.arange(win); ow = jnp.arange(wout)
    khm = oh[None, :] - 2 * ih[:, None] + 1            # (hin, hout)
    kwm = ow[None, :] - 2 * iw[:, None] + 1            # (win, wout)
    vh = (khm >= 0) & (khm < kh)
    vw = (kwm >= 0) & (kwm < kw)
    khc = jnp.clip(khm, 0, kh - 1)
    kwc = jnp.clip(kwm, 0, kw - 1)
    g = w[:, :, khc][..., kwc]                          # (Cin,Cout,hin,hout,win,wout)
    mask = (vh[:, :, None, None] & vw[None, None, :, :]).astype(w.dtype)
    g = g * mask[None, None]
    g = g.transpose(0, 2, 4, 1, 3, 5)                   # (Cin,hin,win,Cout,hout,wout)
    return g.reshape(cin * hin * win, cout * hout * wout)


def _pool_mats(c, hw):
    """One-hot pooling matrices for per-channel BN stats on the
    channel-major flat layout: p (C*HW, C) and q = p.T (C, C*HW)."""
    f = jnp.arange(c * hw)
    p = (f[:, None] // hw == jnp.arange(c)[None, :]).astype(jnp.float32)
    return p, p.T


def init_params(key, input_size, output_size):
    ks = jax.random.split(key, 6)

    def nrm(k, shape, s=0.02):
        return s * jax.random.normal(k, shape, jnp.float32)

    return {
        "wfc": nrm(ks[0], (256, input_size)),           # nn.Linear weight (out, in)
        "bfc": nrm(ks[1], (256,), 0.01),
        "wt1": nrm(ks[2], (256, 128, 4, 4)),            # ConvT weight (Cin, Cout, KH, KW)
        "g1": jnp.ones((128,), jnp.float32),
        "be1": jnp.zeros((128,), jnp.float32),
        "wt2": nrm(ks[3], (128, 64, 4, 4)),
        "g2": jnp.ones((64,), jnp.float32),
        "be2": jnp.zeros((64,), jnp.float32),
        "wt3": nrm(ks[4], (64, output_size, 4, 4)),
        "bt3": nrm(ks[5], (output_size,), 0.01),
        # ConvT1 / ConvT2 biases are omitted: training-mode BN mean
        # subtraction cancels a per-channel bias exactly.
    }


def prepare_params(params):
    """Pre-lower weights to kernel-ready, VMEM-friendly matrices (bf16 MXU
    operands, f32 epilogue parameters).  Run once."""
    p1, q1 = _pool_mats(128, 4)     # layer-1 BN: C=128, HW=2*2
    p2, q2 = _pool_mats(64, 16)     # layer-2 BN: C=64,  HW=4*4
    return {
        "wfc": params["wfc"].T.astype(MXU_DTYPE),                 # (Din, 256)
        "bfc": params["bfc"].reshape(1, -1),                      # (1, 256)
        "w1": _convT_dense(params["wt1"], 1, 1).astype(MXU_DTYPE),  # (256, 512)
        "g1": params["g1"].reshape(1, -1),
        "be1": params["be1"].reshape(1, -1),
        "p1": p1, "q1": q1,
        "w2": _convT_dense(params["wt2"], 2, 2).astype(MXU_DTYPE),  # (512, 1024)
        "g2": params["g2"].reshape(1, -1),
        "be2": params["be2"].reshape(1, -1),
        "p2": p2, "q2": q2,
        "w3": _convT_dense(params["wt3"], 4, 4).astype(MXU_DTYPE),  # (1024, Cout*64)
        "b3f": jnp.repeat(params["bt3"], 64).reshape(1, -1),        # (1, Cout*64)
    }


# ----------------------------------------------------------------------------
# Forward: one pallas_call, everything VMEM-resident
# ----------------------------------------------------------------------------
@functools.partial(jax.jit, static_argnames=("out_channels",))
def generator_forward(prepared, x, *, out_channels):
    n = x.shape[0]
    args = (x,
            prepared["wfc"], prepared["bfc"],
            prepared["w1"], prepared["g1"], prepared["be1"],
            prepared["p1"], prepared["q1"],
            prepared["w2"], prepared["g2"], prepared["be2"],
            prepared["p2"], prepared["q2"],
            prepared["w3"], prepared["b3f"])
    out_cols = prepared["w3"].shape[1]        # Cout * 8 * 8

    kernel = functools.partial(_generator_kernel,
                               n1=float(n * 4),     # N * 2 * 2
                               n2=float(n * 16))    # N * 4 * 4

    def full_spec(a):
        return pl.BlockSpec(a.shape, lambda i: (0,) * a.ndim)

    out_flat = pl.pallas_call(
        kernel,
        out_shape=jax.ShapeDtypeStruct((n, out_cols), jnp.float32),
        grid=(1,),
        in_specs=[full_spec(a) for a in args],
        out_specs=pl.BlockSpec((n, out_cols), lambda i: (0, 0)),
        compiler_params=pltpu.CompilerParams(
            dimension_semantics=("arbitrary",)),
    )(*args)

    # channel-major flat -> NCHW, matching the PyTorch module's output layout.
    return out_flat.reshape(n, out_channels, 8, 8)


# ----------------------------------------------------------------------------
if __name__ == "__main__":
    key = jax.random.PRNGKey(0)
    k_in, k_par = jax.random.split(key)

    input_size = 32      # latent dimension
    output_size = 4      # output image channels (flat 4*8*8 = 256, lane-dense)
    batch = 2

    x = jax.random.normal(k_in, (batch, input_size), jnp.float32)
    params = init_params(k_par, input_size, output_size)
    prepared = prepare_params(params)

    out = generator_forward(prepared, x, out_channels=output_size)
    out = jax.block_until_ready(out)

    assert out.shape == (batch, output_size, 8, 8), out.shape
    assert bool(jnp.all(jnp.isfinite(out)))
    print("KERNEL_OK")
</pallas_src>

<mosaic_0001>
module attributes {stable_mosaic.version = 11 : i64} {
  func.func @_generator_kernel(%arg0: i32, %arg1: memref<2x32xf32, #tpu.memory_space<vmem>>, %arg2: memref<32x256xbf16, #tpu.memory_space<vmem>>, %arg3: memref<1x256xf32, #tpu.memory_space<vmem>>, %arg4: memref<256x512xbf16, #tpu.memory_space<vmem>>, %arg5: memref<1x128xf32, #tpu.memory_space<vmem>>, %arg6: memref<1x128xf32, #tpu.memory_space<vmem>>, %arg7: memref<512x128xf32, #tpu.memory_space<vmem>>, %arg8: memref<128x512xf32, #tpu.memory_space<vmem>>, %arg9: memref<512x1024xbf16, #tpu.memory_space<vmem>>, %arg10: memref<1x64xf32, #tpu.memory_space<vmem>>, %arg11: memref<1x64xf32, #tpu.memory_space<vmem>>, %arg12: memref<1024x64xf32, #tpu.memory_space<vmem>>, %arg13: memref<64x1024xf32, #tpu.memory_space<vmem>>, %arg14: memref<1024x256xbf16, #tpu.memory_space<vmem>>, %arg15: memref<1x256xf32, #tpu.memory_space<vmem>>, %arg16: memref<2x256xf32, #tpu.memory_space<vmem>>) attributes {dimension_semantics = [#tpu.dimension_semantics<arbitrary>], iteration_bounds = array<i64: 1>, scalar_prefetch = 0 : i64, scratch_operands = 0 : i64, tpu.core_type = #tpu.core_type<tc>, window_params = [{pipeline_mode = #tpu.pipeline_mode<synchronous>, transform_indices = @transform_0, window_bounds = array<i64: 2, 32>}, {pipeline_mode = #tpu.pipeline_mode<synchronous>, transform_indices = @transform_1, window_bounds = array<i64: 32, 256>}, {pipeline_mode = #tpu.pipeline_mode<synchronous>, transform_indices = @transform_2, window_bounds = array<i64: 1, 256>}, {pipeline_mode = #tpu.pipeline_mode<synchronous>, transform_indices = @transform_3, window_bounds = array<i64: 256, 512>}, {pipeline_mode = #tpu.pipeline_mode<synchronous>, transform_indices = @transform_4, window_bounds = array<i64: 1, 128>}, {pipeline_mode = #tpu.pipeline_mode<synchronous>, transform_indices = @transform_5, window_bounds = array<i64: 1, 128>}, {pipeline_mode = #tpu.pipeline_mode<synchronous>, transform_indices = @transform_6, window_bounds = array<i64: 512, 128>}, {pipeline_mode = #tpu.pipeline_mode<synchronous>, transform_indices = @transform_7, window_bounds = array<i64: 128, 512>}, {pipeline_mode = #tpu.pipeline_mode<synchronous>, transform_indices = @transform_8, window_bounds = array<i64: 512, 1024>}, {pipeline_mode = #tpu.pipeline_mode<synchronous>, transform_indices = @transform_9, window_bounds = array<i64: 1, 64>}, {pipeline_mode = #tpu.pipeline_mode<synchronous>, transform_indices = @transform_10, window_bounds = array<i64: 1, 64>}, {pipeline_mode = #tpu.pipeline_mode<synchronous>, transform_indices = @transform_11, window_bounds = array<i64: 1024, 64>}, {pipeline_mode = #tpu.pipeline_mode<synchronous>, transform_indices = @transform_12, window_bounds = array<i64: 64, 1024>}, {pipeline_mode = #tpu.pipeline_mode<synchronous>, transform_indices = @transform_13, window_bounds = array<i64: 1024, 256>}, {pipeline_mode = #tpu.pipeline_mode<synchronous>, transform_indices = @transform_14, window_bounds = array<i64: 1, 256>}, {pipeline_mode = #tpu.pipeline_mode<synchronous>, transform_indices = @transform_15, window_bounds = array<i64: 2, 256>}]} {
    %c0 = arith.constant 0 : index
    %c0_0 = arith.constant 0 : index
    %0 = vector.load %arg1[%c0, %c0_0] : memref<2x32xf32, #tpu.memory_space<vmem>>, vector<2x32xf32>
    %1 = arith.truncf %0 : vector<2x32xf32> to vector<2x32xbf16>
    %c0_1 = arith.constant 0 : index
    %c0_2 = arith.constant 0 : index
    %2 = vector.load %arg2[%c0_1, %c0_2] : memref<32x256xbf16, #tpu.memory_space<vmem>>, vector<32x256xbf16>
    %cst = arith.constant dense<0.000000e+00> : vector<2x256xf32>
    %3 = tpu.matmul %1, %2, %cst {dimension_numbers = #tpu.dot_dimension_numbers<[1], [0], [0], [1], [0, 0, 1, 1], [], []>} : vector<2x32xbf16>, vector<32x256xbf16>, vector<2x256xf32> -> vector<2x256xf32>
    %c0_3 = arith.constant 0 : index
    %c0_4 = arith.constant 0 : index
    %4 = vector.load %arg3[%c0_3, %c0_4] : memref<1x256xf32, #tpu.memory_space<vmem>>, vector<1x256xf32>
    %5 = vector.broadcast %4 : vector<1x256xf32> to vector<2x256xf32>
    %6 = arith.addf %3, %5 : vector<2x256xf32>
    %7 = arith.truncf %6 : vector<2x256xf32> to vector<2x256xbf16>
    %c0_5 = arith.constant 0 : index
    %c0_6 = arith.constant 0 : index
    %8 = vector.load %arg4[%c0_5, %c0_6] : memref<256x512xbf16, #tpu.memory_space<vmem>>, vector<256x512xbf16>
    %cst_7 = arith.constant dense<0.000000e+00> : vector<2x512xf32>
    %9 = tpu.matmul %7, %8, %cst_7 {dimension_numbers = #tpu.dot_dimension_numbers<[1], [0], [0], [1], [0, 0, 1, 1], [], []>} : vector<2x256xbf16>, vector<256x512xbf16>, vector<2x512xf32> -> vector<2x512xf32>
    %cst_8 = arith.constant dense<0.000000e+00> : vector<512xf32>
    %10 = vector.multi_reduction <add>, %9, %cst_8 [0] : vector<2x512xf32> to vector<512xf32>
    %11 = vector.shape_cast %10 : vector<512xf32> to vector<1x512xf32>
    %12 = arith.mulf %9, %9 : vector<2x512xf32>
    %cst_9 = arith.constant dense<0.000000e+00> : vector<512xf32>
    %13 = vector.multi_reduction <add>, %12, %cst_9 [0] : vector<2x512xf32> to vector<512xf32>
    %14 = vector.shape_cast %13 : vector<512xf32> to vector<1x512xf32>
    %c0_10 = arith.constant 0 : index
    %c0_11 = arith.constant 0 : index
    %15 = vector.load %arg7[%c0_10, %c0_11] : memref<512x128xf32, #tpu.memory_space<vmem>>, vector<512x128xf32>
    %cst_12 = arith.constant dense<0.000000e+00> : vector<1x128xf32>
    %16 = tpu.matmul %11, %15, %cst_12 {dimension_numbers = #tpu.dot_dimension_numbers<[1], [0], [0], [1], [0, 0, 1, 1], [], []>} : vector<1x512xf32>, vector<512x128xf32>, vector<1x128xf32> -> vector<1x128xf32>
    %cst_13 = arith.constant 1.250000e-01 : f32
    %17 = vector.broadcast %cst_13 : f32 to vector<1x128xf32>
    %18 = arith.mulf %16, %17 : vector<1x128xf32>
    %c0_14 = arith.constant 0 : index
    %c0_15 = arith.constant 0 : index
    %19 = vector.load %arg7[%c0_14, %c0_15] : memref<512x128xf32, #tpu.memory_space<vmem>>, vector<512x128xf32>
    %cst_16 = arith.constant dense<0.000000e+00> : vector<1x128xf32>
    %20 = tpu.matmul %14, %19, %cst_16 {dimension_numbers = #tpu.dot_dimension_numbers<[1], [0], [0], [1], [0, 0, 1, 1], [], []>} : vector<1x512xf32>, vector<512x128xf32>, vector<1x128xf32> -> vector<1x128xf32>
    %cst_17 = arith.constant 1.250000e-01 : f32
    %21 = vector.broadcast %cst_17 : f32 to vector<1x128xf32>
    %22 = arith.mulf %20, %21 : vector<1x128xf32>
    %23 = arith.mulf %18, %18 : vector<1x128xf32>
    %24 = arith.subf %22, %23 : vector<1x128xf32>
    %c0_18 = arith.constant 0 : index
    %c0_19 = arith.constant 0 : index
    %25 = vector.load %arg5[%c0_18, %c0_19] : memref<1x128xf32, #tpu.memory_space<vmem>>, vector<1x128xf32>
    %cst_20 = arith.constant 9.99999974E-6 : f32
    %26 = vector.broadcast %cst_20 : f32 to vector<1x128xf32>
    %27 = arith.addf %24, %26 : vector<1x128xf32>
    %28 = math.rsqrt %27 : vector<1x128xf32>
    %29 = arith.mulf %25, %28 : vector<1x128xf32>
    %c0_21 = arith.constant 0 : index
    %c0_22 = arith.constant 0 : index
    %30 = vector.load %arg6[%c0_21, %c0_22] : memref<1x128xf32, #tpu.memory_space<vmem>>, vector<1x128xf32>
    %31 = arith.mulf %18, %29 : vector<1x128xf32>
    %32 = arith.subf %30, %31 : vector<1x128xf32>
    %c0_23 = arith.constant 0 : index
    %c0_24 = arith.constant 0 : index
    %33 = vector.load %arg8[%c0_23, %c0_24] : memref<128x512xf32, #tpu.memory_space<vmem>>, vector<128x512xf32>
    %cst_25 = arith.constant dense<0.000000e+00> : vector<1x512xf32>
    %34 = tpu.matmul %29, %33, %cst_25 {dimension_numbers = #tpu.dot_dimension_numbers<[1], [0], [0], [1], [0, 0, 1, 1], [], []>} : vector<1x128xf32>, vector<128x512xf32>, vector<1x512xf32> -> vector<1x512xf32>
    %c0_26 = arith.constant 0 : index
    %c0_27 = arith.constant 0 : index
    %35 = vector.load %arg8[%c0_26, %c0_27] : memref<128x512xf32, #tpu.memory_space<vmem>>, vector<128x512xf32>
    %cst_28 = arith.constant dense<0.000000e+00> : vector<1x512xf32>
    %36 = tpu.matmul %32, %35, %cst_28 {dimension_numbers = #tpu.dot_dimension_numbers<[1], [0], [0], [1], [0, 0, 1, 1], [], []>} : vector<1x128xf32>, vector<128x512xf32>, vector<1x512xf32> -> vector<1x512xf32>
    %37 = vector.broadcast %34 : vector<1x512xf32> to vector<2x512xf32>
    %38 = arith.mulf %9, %37 : vector<2x512xf32>
    %39 = vector.broadcast %36 : vector<1x512xf32> to vector<2x512xf32>
    %40 = arith.addf %38, %39 : vector<2x512xf32>
    %cst_29 = arith.constant 0.000000e+00 : f32
    %41 = vector.broadcast %cst_29 : f32 to vector<2x512xf32>
    %42 = arith.maximumf %40, %41 : vector<2x512xf32>
    %43 = arith.truncf %42 : vector<2x512xf32> to vector<2x512xbf16>
    %c0_30 = arith.constant 0 : index
    %c0_31 = arith.constant 0 : index
    %44 = vector.load %arg9[%c0_30, %c0_31] : memref<512x1024xbf16, #tpu.memory_space<vmem>>, vector<512x1024xbf16>
    %cst_32 = arith.constant dense<0.000000e+00> : vector<2x1024xf32>
    %45 = tpu.matmul %43, %44, %cst_32 {dimension_numbers = #tpu.dot_dimension_numbers<[1], [0], [0], [1], [0, 0, 1, 1], [], []>} : vector<2x512xbf16>, vector<512x1024xbf16>, vector<2x1024xf32> -> vector<2x1024xf32>
    %cst_33 = arith.constant dense<0.000000e+00> : vector<1024xf32>
    %46 = vector.multi_reduction <add>, %45, %cst_33 [0] : vector<2x1024xf32> to vector<1024xf32>
    %47 = vector.shape_cast %46 : vector<1024xf32> to vector<1x1024xf32>
    %48 = arith.mulf %45, %45 : vector<2x1024xf32>
    %cst_34 = arith.constant dense<0.000000e+00> : vector<1024xf32>
    %49 = vector.multi_reduction <add>, %48, %cst_34 [0] : vector<2x1024xf32> to vector<1024xf32>
    %50 = vector.shape_cast %49 : vector<1024xf32> to vector<1x1024xf32>
    %c0_35 = arith.constant 0 : index
    %c0_36 = arith.constant 0 : index
    %51 = vector.load %arg12[%c0_35, %c0_36] : memref<1024x64xf32, #tpu.memory_space<vmem>>, vector<1024x64xf32>
    %cst_37 = arith.constant dense<0.000000e+00> : vector<1x64xf32>
    %52 = tpu.matmul %47, %51, %cst_37 {dimension_numbers = #tpu.dot_dimension_numbers<[1], [0], [0], [1], [0, 0, 1, 1], [], []>} : vector<1x1024xf32>, vector<1024x64xf32>, vector<1x64xf32> -> vector<1x64xf32>
    %cst_38 = arith.constant 3.125000e-02 : f32
    %53 = vector.broadcast %cst_38 : f32 to vector<1x64xf32>
    %54 = arith.mulf %52, %53 : vector<1x64xf32>
    %c0_39 = arith.constant 0 : index
    %c0_40 = arith.constant 0 : index
    %55 = vector.load %arg12[%c0_39, %c0_40] : memref<1024x64xf32, #tpu.memory_space<vmem>>, vector<1024x64xf32>
    %cst_41 = arith.constant dense<0.000000e+00> : vector<1x64xf32>
    %56 = tpu.matmul %50, %55, %cst_41 {dimension_numbers = #tpu.dot_dimension_numbers<[1], [0], [0], [1], [0, 0, 1, 1], [], []>} : vector<1x1024xf32>, vector<1024x64xf32>, vector<1x64xf32> -> vector<1x64xf32>
    %cst_42 = arith.constant 3.125000e-02 : f32
    %57 = vector.broadcast %cst_42 : f32 to vector<1x64xf32>
    %58 = arith.mulf %56, %57 : vector<1x64xf32>
    %59 = arith.mulf %54, %54 : vector<1x64xf32>
    %60 = arith.subf %58, %59 : vector<1x64xf32>
    %c0_43 = arith.constant 0 : index
    %c0_44 = arith.constant 0 : index
    %61 = vector.load %arg10[%c0_43, %c0_44] : memref<1x64xf32, #tpu.memory_space<vmem>>, vector<1x64xf32>
    %cst_45 = arith.constant 9.99999974E-6 : f32
    %62 = vector.broadcast %cst_45 : f32 to vector<1x64xf32>
    %63 = arith.addf %60, %62 : vector<1x64xf32>
    %64 = math.rsqrt %63 : vector<1x64xf32>
    %65 = arith.mulf %61, %64 : vector<1x64xf32>
    %c0_46 = arith.constant 0 : index
    %c0_47 = arith.constant 0 : index
    %66 = vector.load %arg11[%c0_46, %c0_47] : memref<1x64xf32, #tpu.memory_space<vmem>>, vector<1x64xf32>
    %67 = arith.mulf %54, %65 : vector<1x64xf32>
    %68 = arith.subf %66, %67 : vector<1x64xf32>
    %c0_48 = arith.constant 0 : index
    %c0_49 = arith.constant 0 : index
    %69 = vector.load %arg13[%c0_48, %c0_49] : memref<64x1024xf32, #tpu.memory_space<vmem>>, vector<64x1024xf32>
    %cst_50 = arith.constant dense<0.000000e+00> : vector<1x1024xf32>
    %70 = tpu.matmul %65, %69, %cst_50 {dimension_numbers = #tpu.dot_dimension_numbers<[1], [0], [0], [1], [0, 0, 1, 1], [], []>} : vector<1x64xf32>, vector<64x1024xf32>, vector<1x1024xf32> -> vector<1x1024xf32>
    %c0_51 = arith.constant 0 : index
    %c0_52 = arith.constant 0 : index
    %71 = vector.load %arg13[%c0_51, %c0_52] : memref<64x1024xf32, #tpu.memory_space<vmem>>, vector<64x1024xf32>
    %cst_53 = arith.constant dense<0.000000e+00> : vector<1x1024xf32>
    %72 = tpu.matmul %68, %71, %cst_53 {dimension_numbers = #tpu.dot_dimension_numbers<[1], [0], [0], [1], [0, 0, 1, 1], [], []>} : vector<1x64xf32>, vector<64x1024xf32>, vector<1x1024xf32> -> vector<1x1024xf32>
    %73 = vector.broadcast %70 : vector<1x1024xf32> to vector<2x1024xf32>
    %74 = arith.mulf %45, %73 : vector<2x1024xf32>
    %75 = vector.broadcast %72 : vector<1x1024xf32> to vector<2x1024xf32>
    %76 = arith.addf %74, %75 : vector<2x1024xf32>
    %cst_54 = arith.constant 0.000000e+00 : f32
    %77 = vector.broadcast %cst_54 : f32 to vector<2x1024xf32>
    %78 = arith.maximumf %76, %77 : vector<2x1024xf32>
    %79 = arith.truncf %78 : vector<2x1024xf32> to vector<2x1024xbf16>
    %c0_55 = arith.constant 0 : index
    %c0_56 = arith.constant 0 : index
    %80 = vector.load %arg14[%c0_55, %c0_56] : memref<1024x256xbf16, #tpu.memory_space<vmem>>, vector<1024x256xbf16>
    %cst_57 = arith.constant dense<0.000000e+00> : vector<2x256xf32>
    %81 = tpu.matmul %79, %80, %cst_57 {dimension_numbers = #tpu.dot_dimension_numbers<[1], [0], [0], [1], [0, 0, 1, 1], [], []>} : vector<2x1024xbf16>, vector<1024x256xbf16>, vector<2x256xf32> -> vector<2x256xf32>
    %c0_58 = arith.constant 0 : index
    %c0_59 = arith.constant 0 : index
    %82 = vector.load %arg15[%c0_58, %c0_59] : memref<1x256xf32, #tpu.memory_space<vmem>>, vector<1x256xf32>
    %83 = vector.broadcast %82 : vector<1x256xf32> to vector<2x256xf32>
    %84 = arith.addf %81, %83 : vector<2x256xf32>
    %85 = math.tanh %84 : vector<2x256xf32>
    %c0_60 = arith.constant 0 : index
    %c0_61 = arith.constant 0 : index
    %86 = vector.load %arg16[%c0_60, %c0_61] : memref<2x256xf32, #tpu.memory_space<vmem>>, vector<2x256xf32>
    tpu.vector_store %arg16[%c0_60, %c0_61], %85 {strides = array<i32>} : memref<2x256xf32, #tpu.memory_space<vmem>>, vector<2x256xf32>,
    return
  }
  func.func @transform_0(%arg0: i32) -> (i32, i32) {
    %c0_i32 = arith.constant 0 : i32
    %c0_i32_0 = arith.constant 0 : i32
    %c0_i32_1 = arith.constant 0 : i32
    return %c0_i32, %c0_i32_0 : i32, i32
  }
  func.func @transform_1(%arg0: i32) -> (i32, i32) {
    %c0_i32 = arith.constant 0 : i32
    %c0_i32_0 = arith.constant 0 : i32
    %c0_i32_1 = arith.constant 0 : i32
    return %c0_i32, %c0_i32_0 : i32, i32
  }
  func.func @transform_2(%arg0: i32) -> (i32, i32) {
    %c0_i32 = arith.constant 0 : i32
    %c0_i32_0 = arith.constant 0 : i32
    %c0_i32_1 = arith.constant 0 : i32
    return %c0_i32, %c0_i32_0 : i32, i32
  }
  func.func @transform_3(%arg0: i32) -> (i32, i32) {
    %c0_i32 = arith.constant 0 : i32
    %c0_i32_0 = arith.constant 0 : i32
    %c0_i32_1 = arith.constant 0 : i32
    return %c0_i32, %c0_i32_0 : i32, i32
  }
  func.func @transform_4(%arg0: i32) -> (i32, i32) {
    %c0_i32 = arith.constant 0 : i32
    %c0_i32_0 = arith.constant 0 : i32
    %c0_i32_1 = arith.constant 0 : i32
    return %c0_i32, %c0_i32_0 : i32, i32
  }
  func.func @transform_5(%arg0: i32) -> (i32, i32) {
    %c0_i32 = arith.constant 0 : i32
    %c0_i32_0 = arith.constant 0 : i32
    %c0_i32_1 = arith.constant 0 : i32
    return %c0_i32, %c0_i32_0 : i32, i32
  }
  func.func @transform_6(%arg0: i32) -> (i32, i32) {
    %c0_i32 = arith.constant 0 : i32
    %c0_i32_0 = arith.constant 0 : i32
    %c0_i32_1 = arith.constant 0 : i32
    return %c0_i32, %c0_i32_0 : i32, i32
  }
  func.func @transform_7(%arg0: i32) -> (i32, i32) {
    %c0_i32 = arith.constant 0 : i32
    %c0_i32_0 = arith.constant 0 : i32
    %c0_i32_1 = arith.constant 0 : i32
    return %c0_i32, %c0_i32_0 : i32, i32
  }
  func.func @transform_8(%arg0: i32) -> (i32, i32) {
    %c0_i32 = arith.constant 0 : i32
    %c0_i32_0 = arith.constant 0 : i32
    %c0_i32_1 = arith.constant 0 : i32
    return %c0_i32, %c0_i32_0 : i32, i32
  }
  func.func @transform_9(%arg0: i32) -> (i32, i32) {
    %c0_i32 = arith.constant 0 : i32
    %c0_i32_0 = arith.constant 0 : i32
    %c0_i32_1 = arith.constant 0 : i32
    return %c0_i32, %c0_i32_0 : i32, i32
  }
  func.func @transform_10(%arg0: i32) -> (i32, i32) {
    %c0_i32 = arith.constant 0 : i32
    %c0_i32_0 = arith.constant 0 : i32
    %c0_i32_1 = arith.constant 0 : i32
    return %c0_i32, %c0_i32_0 : i32, i32
  }
  func.func @transform_11(%arg0: i32) -> (i32, i32) {
    %c0_i32 = arith.constant 0 : i32
    %c0_i32_0 = arith.constant 0 : i32
    %c0_i32_1 = arith.constant 0 : i32
    return %c0_i32, %c0_i32_0 : i32, i32
  }
  func.func @transform_12(%arg0: i32) -> (i32, i32) {
    %c0_i32 = arith.constant 0 : i32
    %c0_i32_0 = arith.constant 0 : i32
    %c0_i32_1 = arith.constant 0 : i32
    return %c0_i32, %c0_i32_0 : i32, i32
  }
  func.func @transform_13(%arg0: i32) -> (i32, i32) {
    %c0_i32 = arith.constant 0 : i32
    %c0_i32_0 = arith.constant 0 : i32
    %c0_i32_1 = arith.constant 0 : i32
    return %c0_i32, %c0_i32_0 : i32, i32
  }
  func.func @transform_14(%arg0: i32) -> (i32, i32) {
    %c0_i32 = arith.constant 0 : i32
    %c0_i32_0 = arith.constant 0 : i32
    %c0_i32_1 = arith.constant 0 : i32
    return %c0_i32, %c0_i32_0 : i32, i32
  }
  func.func @transform_15(%arg0: i32) -> (i32, i32) {
    %c0_i32 = arith.constant 0 : i32
    %c0_i32_0 = arith.constant 0 : i32
    %c0_i32_1 = arith.constant 0 : i32
    return %c0_i32, %c0_i32_0 : i32, i32
  }
}

</mosaic_0001>

<llo_original>
// kernel: generator_forward.1
$region0: #{generator_forward.1}
  #allocation0 [shape = 'u32[]', space=smem, size = 0x4, offset = 0x4, fixed_abs, tag = 'smem constant byte address 0x4 - core index']
  #allocation1 [shape = 'u32[72,128]{1,0:T(1,128)}', space=vmem, size = 0x9000, scoped, tag = 'internal scratch']
  %s0 = inlined_call_operand.vmem [shape: f32[2,32], index: 0, kind: input, shape index: {}]
  %s1 = inlined_call_operand.hbm [shape: bf16[32,256], index: 1, kind: input, shape index: {}]
  %s2 = inlined_call_operand.vmem [shape: f32[1,256], index: 2, kind: input, shape index: {}]
  %s3 = inlined_call_operand.vmem [shape: bf16[256,512], index: 3, kind: input, shape index: {}]
  %s4 = inlined_call_operand.vmem [shape: f32[1,128], index: 4, kind: input, shape index: {}]
  %s5 = inlined_call_operand.vmem [shape: f32[1,128], index: 5, kind: input, shape index: {}]
  %s6 = inlined_call_operand.hbm [shape: f32[512,128], index: 6, kind: input, shape index: {}]
  %s7 = inlined_call_operand.hbm [shape: f32[128,512], index: 7, kind: input, shape index: {}]
  %s8 = inlined_call_operand.hbm [shape: bf16[512,1024], index: 8, kind: input, shape index: {}]
  %s9 = inlined_call_operand.vmem [shape: f32[1,64], index: 9, kind: input, shape index: {}]
  %s10 = inlined_call_operand.vmem [shape: f32[1,64], index: 10, kind: input, shape index: {}]
  %s11 = inlined_call_operand.vmem [shape: f32[1024,64], index: 11, kind: input, shape index: {}]
  %s12 = inlined_call_operand.hbm [shape: f32[64,1024], index: 12, kind: input, shape index: {}]
  %s13 = inlined_call_operand.vmem [shape: bf16[1024,256], index: 13, kind: input, shape index: {}]
  %s14 = inlined_call_operand.vmem [shape: f32[1,256], index: 14, kind: input, shape index: {}]
  %s15 = inlined_call_operand.vmem [shape: f32[2,256], index: 15, kind: output, shape index: {}]
  %s16 = sld [smem:[#allocation0]]
  $region90: #{generator_forward.1} parent=0
    _
  %s18 = ssub.s32 1, %s16
  %s19 = scalar_select 0, %s18, %s16
  $region1: #{generator_forward.1} parent=0
    #allocation2 [shape = 'u8[16384]{0}', space=vmem, size = 0x4000, scoped, tag = 'input window, operand 1, single buffered']
    #allocation3 [shape = 's32[1]{0}', space=sflag, size = 0x4, scoped, tag = 'scoped memory for generator_forward.1']
    #allocation4 [shape = 'u8[262144]{0}', space=vmem, size = 0x40000, scoped, tag = 'input window, operand 6, single buffered']
    #allocation5 [shape = 's32[1]{0}', space=sflag, size = 0x4, scoped, tag = 'scoped memory for generator_forward.1']
    #allocation6 [shape = 'u8[262144]{0}', space=vmem, size = 0x40000, scoped, tag = 'input window, operand 7, single buffered']
    #allocation7 [shape = 'u8[1048576]{0}', space=vmem, size = 0x100000, scoped, tag = 'input window, operand 8, single buffered']
    #allocation8 [shape = 's32[1]{0}', space=sflag, size = 0x4, scoped, tag = 'scoped memory for generator_forward.1']
    #allocation9 [shape = 'u8[262144]{0}', space=vmem, size = 0x40000, scoped, tag = 'input window, operand 12, single buffered']
    %20 = vsyncpa [#allocation3], 0
    %21 = vsyncpa [#allocation5], 0
    %22 = vsyncpa [#allocation8], 0
    // Predicated region
    $region2: #{generator_forward.1} parent=1 // pred_check
      _
    $region3: #{generator_forward.1} parent=1 // pred_check_branch
      %24 = sbr.rel (0) target = $region5
    $region4: #{generator_forward.1} parent=1 // pred_region
      _
    $region5: #{generator_forward.1} parent=1 // pred_fallthru
      _
    // Predicated region
    $region6: #{generator_forward.1} parent=1 // pred_check
      _
    $region7: #{generator_forward.1} parent=1 // pred_check_branch
      %26 = sbr.rel (0) target = $region9
    $region8: #{generator_forward.1} parent=1 // pred_region
      %28 = vsyncadd [#allocation3], 0
      %s29 = sshll.u32 %s1, 4
      %s30 = int_to_ptr.hbm [resolvable:$true] %s29
      %s31 = sshll.u32 [#allocation2], 4
      %s32 = int_to_ptr.vmem [resolvable:$true] %s31
      %37 = dma.hbm_to_vmem [thread:$0]  %s30, 512, %s32, [#allocation3], 128, 128, 8
    $region9: #{generator_forward.1} parent=1 // pred_fallthru
      _
    // Predicated region
    $region10: #{generator_forward.1} parent=1 // pred_check
      _
    $region11: #{generator_forward.1} parent=1 // pred_check_branch
      %39 = sbr.rel (0) target = $region13
    $region12: #{generator_forward.1} parent=1 // pred_region
      _
    $region13: #{generator_forward.1} parent=1 // pred_fallthru
      _
    // Predicated region
    $region14: #{generator_forward.1} parent=1 // pred_check
      _
    $region15: #{generator_forward.1} parent=1 // pred_check_branch
      %41 = sbr.rel (0) target = $region17
    $region16: #{generator_forward.1} parent=1 // pred_region
      _
    $region17: #{generator_forward.1} parent=1 // pred_fallthru
      _
    // Predicated region
    $region18: #{generator_forward.1} parent=1 // pred_check
      _
    $region19: #{generator_forward.1} parent=1 // pred_check_branch
      %43 = sbr.rel (0) target = $region21
    $region20: #{generator_forward.1} parent=1 // pred_region
      _
    $region21: #{generator_forward.1} parent=1 // pred_fallthru
      _
    // Predicated region
    $region22: #{generator_forward.1} parent=1 // pred_check
      _
    $region23: #{generator_forward.1} parent=1 // pred_check_branch
      %45 = sbr.rel (0) target = $region25
    $region24: #{generator_forward.1} parent=1 // pred_region
      _
    $region25: #{generator_forward.1} parent=1 // pred_fallthru
      _
    // Predicated region
    $region26: #{generator_forward.1} parent=1 // pred_check
      _
    $region27: #{generator_forward.1} parent=1 // pred_check_branch
      %47 = sbr.rel (0) target = $region29
    $region28: #{generator_forward.1} parent=1 // pred_region
      %49 = vsyncadd [#allocation5], 0
      %s50 = sshll.u32 %s6, 4
      %s51 = int_to_ptr.hbm [resolvable:$true] %s50
      %s52 = sshll.u32 [#allocation4], 4
      %s53 = int_to_ptr.vmem [resolvable:$true] %s52
      %58 = dma.hbm_to_vmem [thread:$0]  %s51, 8192, %s53, [#allocation5], 128, 128, 8
    $region29: #{generator_forward.1} parent=1 // pred_fallthru
      _
    // Predicated region
    $region30: #{generator_forward.1} parent=1 // pred_check
      _
    $region31: #{generator_forward.1} parent=1 // pred_check_branch
      %60 = sbr.rel (0) target = $region33
    $region32: #{generator_forward.1} parent=1 // pred_region
      %62 = vsyncadd [#allocation5], 0
      %s63 = sshll.u32 %s7, 4
      %s64 = int_to_ptr.hbm [resolvable:$true] %s63
      %s65 = sshll.u32 [#allocation6], 4
      %s66 = int_to_ptr.vmem [resolvable:$true] %s65
      %71 = dma.hbm_to_vmem [thread:$0]  %s64, 8192, %s66, [#allocation5], 512, 512, 32
    $region33: #{generator_forward.1} parent=1 // pred_fallthru
      _
    // Predicated region
    $region34: #{generator_forward.1} parent=1 // pred_check
      _
    $region35: #{generator_forward.1} parent=1 // pred_check_branch
      %73 = sbr.rel (0) target = $region37
    $region36: #{generator_forward.1} parent=1 // pred_region
      %75 = vsyncadd [#allocation8], 0
      %s76 = sshll.u32 %s8, 4
      %s77 = int_to_ptr.hbm [resolvable:$true] %s76
      %s78 = sshll.u32 [#allocation7], 4
      %s79 = int_to_ptr.vmem [resolvable:$true] %s78
      %84 = dma.hbm_to_vmem [thread:$0]  %s77, 32768, %s79, [#allocation8], 512, 512, 32
    $region37: #{generator_forward.1} parent=1 // pred_fallthru
      _
    // Predicated region
    $region38: #{generator_forward.1} parent=1 // pred_check
      _
    $region39: #{generator_forward.1} parent=1 // pred_check_branch
      %86 = sbr.rel (0) target = $region41
    $region40: #{generator_forward.1} parent=1 // pred_region
      _
    $region41: #{generator_forward.1} parent=1 // pred_fallthru
      _
    // Predicated region
    $region42: #{generator_forward.1} parent=1 // pred_check
      _
    $region43: #{generator_forward.1} parent=1 // pred_check_branch
      %88 = sbr.rel (0) target = $region45
    $region44: #{generator_forward.1} parent=1 // pred_region
      _
    $region45: #{generator_forward.1} parent=1 // pred_fallthru
      _
    // Predicated region
    $region46: #{generator_forward.1} parent=1 // pred_check
      _
    $region47: #{generator_forward.1} parent=1 // pred_check_branch
      %90 = sbr.rel (0) target = $region49
    $region48: #{generator_forward.1} parent=1 // pred_region
      _
    $region49: #{generator_forward.1} parent=1 // pred_fallthru
      _
    // Predicated region
    $region50: #{generator_forward.1} parent=1 // pred_check
      _
    $region51: #{generator_forward.1} parent=1 // pred_check_branch
      %92 = sbr.rel (0) target = $region53
    $region52: #{generator_forward.1} parent=1 // pred_region
      %94 = vsyncadd [#allocation8], 0
      %s95 = sshll.u32 %s12, 4
      %s96 = int_to_ptr.hbm [resolvable:$true] %s95
      %s97 = sshll.u32 [#allocation9], 4
      %s98 = int_to_ptr.vmem [resolvable:$true] %s97
      %103 = dma.hbm_to_vmem [thread:$0]  %s96, 8192, %s98, [#allocation8], 1024, 1024, 64
    $region53: #{generator_forward.1} parent=1 // pred_fallthru
      _
    // Predicated region
    $region54: #{generator_forward.1} parent=1 // pred_check
      _
    $region55: #{generator_forward.1} parent=1 // pred_check_branch
      %105 = sbr.rel (0) target = $region57
    $region56: #{generator_forward.1} parent=1 // pred_region
      _
    $region57: #{generator_forward.1} parent=1 // pred_fallthru
      _
    // Predicated region
    $region58: #{generator_forward.1} parent=1 // pred_check
      _
    $region59: #{generator_forward.1} parent=1 // pred_check_branch
      %107 = sbr.rel (0) target = $region61
    $region60: #{generator_forward.1} parent=1 // pred_region
      _
    $region61: #{generator_forward.1} parent=1 // pred_fallthru
      _
    // Predicated region
    $region62: #{generator_forward.1} parent=1 // pred_check
      _
    $region63: #{generator_forward.1} parent=1 // pred_check_branch
      %109 = sbr.rel (0) target = $region65
    $region64: #{generator_forward.1} parent=1 // pred_region
      %111 = dma.done [#allocation3], 512
    $region65: #{generator_forward.1} parent=1 // pred_fallthru
      _
    // Predicated region
    $region66: #{generator_forward.1} parent=1 // pred_check
      _
    $region67: #{generator_forward.1} parent=1 // pred_check_branch
      %113 = sbr.rel (0) target = $region69
    $region68: #{generator_forward.1} parent=1 // pred_region
      %115 = dma.done [#allocation5], 8192
    $region69: #{generator_forward.1} parent=1 // pred_fallthru
      _
    // Predicated region
    $region70: #{generator_forward.1} parent=1 // pred_check
      _
    $region71: #{generator_forward.1} parent=1 // pred_check_branch
      %117 = sbr.rel (0) target = $region73
    $region72: #{generator_forward.1} parent=1 // pred_region
      %119 = dma.done [#allocation5], 8192
    $region73: #{generator_forward.1} parent=1 // pred_fallthru
      _
    // Predicated region
    $region74: #{generator_forward.1} parent=1 // pred_check
      _
    $region75: #{generator_forward.1} parent=1 // pred_check_branch
      %121 = sbr.rel (0) target = $region77
    $region76: #{generator_forward.1} parent=1 // pred_region
      %123 = dma.done [#allocation8], 32768
    $region77: #{generator_forward.1} parent=1 // pred_fallthru
      _
    // Predicated region
    $region78: #{generator_forward.1} parent=1 // pred_check
      _
    $region79: #{generator_forward.1} parent=1 // pred_check_branch
      %125 = sbr.rel (0) target = $region81
    $region80: #{generator_forward.1} parent=1 // pred_region
      %127 = dma.done [#allocation8], 8192
    $region81: #{generator_forward.1} parent=1 // pred_fallthru
      _
    %v129 = vld [vmem:[%s0] sm:$0x3]
    %v130 = vpack.c.bf16 %v129, %v129
    %v131 = vld [vmem:[#allocation2] sm:$0xff]
    %v132 = vld [vmem:[#allocation2 + $0x8] sm:$0xff]
    %v133 = vld [vmem:[#allocation2 + $0x10] sm:$0xff]
    %v134 = vld [vmem:[#allocation2 + $0x18] sm:$0xff]
    %v135 = vld [vmem:[%s2] sm:$0x3]
    %v137 = vperm.slane %v135, 0
    %v138 = vperm.slane %v135, 1
    %v145 = vunpack.c.l.b16 %v131
    %v146 = vunpack.c.h.b16 %v131
    %v147 = vunpack.c.l.b16 %v132
    %v148 = vunpack.c.h.b16 %v132
    %v149 = vunpack.c.l.b16 %v133
    %v150 = vunpack.c.h.b16 %v133
    %v151 = vunpack.c.l.b16 %v134
    %v152 = vunpack.c.h.b16 %v134
    %v153 = vpack.c.b16 %v147, %v145
    %v154 = vpack.c.b16 %v148, %v146
    %v155 = vpack.c.b16 %v151, %v149
    %v156 = vpack.c.b16 %v152, %v150
    %vm161 = vcmask 261120
    %v163 = vsel %vm161, %v130, 0
    %165 = vmatpush.bf16.msra.mxu0 0
    %166 = vmatpush.bf16.msra.mxu0 0
    %167 = vmatpush.bf16.msra.mxu0 0
    %168 = vmatpush.bf16.msra.mxu0 0
    %169 = vmatpush.bf16.msra.mxu0 0
    %170 = vmatpush.bf16.msra.mxu0 0
    %171 = vmatpush.bf16.msra.mxu0 %v155
    %172 = vmatpush.bf16.msra.mxu0 %v153
    %173 = vmatmul.bf16.gmra.mxu0 %v163
    %v174 = vpop.f32.mrf.mxu0
    %v175 = vadd.f32 %v137, %v174
    %v176 = vpop.f32.mrf.mxu0
    %177 = vdwg.mxu0
    %178 = vmatpush.bf16.msra.mxu0 0
    %179 = vmatpush.bf16.msra.mxu0 0
    %180 = vmatpush.bf16.msra.mxu0 0
    %181 = vmatpush.bf16.msra.mxu0 0
    %182 = vmatpush.bf16.msra.mxu0 0
    %183 = vmatpush.bf16.msra.mxu0 0
    %184 = vmatpush.bf16.msra.mxu0 %v156
    %185 = vmatpush.bf16.msra.mxu0 %v154
    %186 = vmatmul.bf16.gmra.mxu0 %v163
    %v187 = vpop.f32.mrf.mxu0
    %v188 = vadd.f32 %v138, %v187
    %v189 = vpop.f32.mrf.mxu0
    %190 = vdwg.mxu0
    %v191 = vpack.c.bf16 %v175, %v175
    %v192 = vpack.c.bf16 %v188, %v188
    %v193 = vld [vmem:[%s3] sm:$0xff]
    %v194 = vld [vmem:[%s3 + $0x8] sm:$0xff]
    %v195 = vld [vmem:[%s3 + $0x10] sm:$0xff]
    %v196 = vld [vmem:[%s3 + $0x18] sm:$0xff]
    %v197 = vld [vmem:[%s3 + $0x20] sm:$0xff]
    %v198 = vld [vmem:[%s3 + $0x28] sm:$0xff]
    %v199 = vld [vmem:[%s3 + $0x30] sm:$0xff]
    %v200 = vld [vmem:[%s3 + $0x38] sm:$0xff]
    %v201 = vld [vmem:[%s3 + $0x40] sm:$0xff]
    %v202 = vld [vmem:[%s3 + $0x48] sm:$0xff]
    %v203 = vld [vmem:[%s3 + $0x50] sm:$0xff]
    %v204 = vld [vmem:[%s3 + $0x58] sm:$0xff]
    %v205 = vld [vmem:[%s3 + $0x60] sm:$0xff]
    %v206 = vld [vmem:[%s3 + $0x68] sm:$0xff]
    %v207 = vld [vmem:[%s3 + $0x70] sm:$0xff]
    %v208 = vld [vmem:[%s3 + $0x78] sm:$0xff]
    %v209 = vld [vmem:[%s3 + $0x80] sm:$0xff]
    %v210 = vld [vmem:[%s3 + $0x88] sm:$0xff]
    %v211 = vld [vmem:[%s3 + $0x90] sm:$0xff]
    %v212 = vld [vmem:[%s3 + $0x98] sm:$0xff]
    %v213 = vld [vmem:[%s3 + $0xa0] sm:$0xff]
    %v214 = vld [vmem:[%s3 + $0xa8] sm:$0xff]
    %v215 = vld [vmem:[%s3 + $0xb0] sm:$0xff]
    %v216 = vld [vmem:[%s3 + $0xb8] sm:$0xff]
    %v217 = vld [vmem:[%s3 + $0xc0] sm:$0xff]
    %v218 = vld [vmem:[%s3 + $0xc8] sm:$0xff]
    %v219 = vld [vmem:[%s3 + $0xd0] sm:$0xff]
    %v220 = vld [vmem:[%s3 + $0xd8] sm:$0xff]
    %v221 = vld [vmem:[%s3 + $0xe0] sm:$0xff]
    %v222 = vld [vmem:[%s3 + $0xe8] sm:$0xff]
    %v223 = vld [vmem:[%s3 + $0xf0] sm:$0xff]
    %v224 = vld [vmem:[%s3 + $0xf8] sm:$0xff]
    %v225 = vld [vmem:[%s3 + $0x100] sm:$0xff]
    %v226 = vld [vmem:[%s3 + $0x108] sm:$0xff]
    %v227 = vld [vmem:[%s3 + $0x110] sm:$0xff]
    %v228 = vld [vmem:[%s3 + $0x118] sm:$0xff]
    %v229 = vld [vmem:[%s3 + $0x120] sm:$0xff]
    %v230 = vld [vmem:[%s3 + $0x128] sm:$0xff]
    %v231 = vld [vmem:[%s3 + $0x130] sm:$0xff]
    %v232 = vld [vmem:[%s3 + $0x138] sm:$0xff]
    %v233 = vld [vmem:[%s3 + $0x140] sm:$0xff]
    %v234 = vld [vmem:[%s3 + $0x148] sm:$0xff]
    %v235 = vld [vmem:[%s3 + $0x150] sm:$0xff]
    %v236 = vld [vmem:[%s3 + $0x158] sm:$0xff]
    %v237 = vld [vmem:[%s3 + $0x160] sm:$0xff]
    %v238 = vld [vmem:[%s3 + $0x168] sm:$0xff]
    %v239 = vld [vmem:[%s3 + $0x170] sm:$0xff]
    %v240 = vld [vmem:[%s3 + $0x178] sm:$0xff]
    %v241 = vld [vmem:[%s3 + $0x180] sm:$0xff]
    %v242 = vld [vmem:[%s3 + $0x188] sm:$0xff]
    %v243 = vld [vmem:[%s3 + $0x190] sm:$0xff]
    %v244 = vld [vmem:[%s3 + $0x198] sm:$0xff]
    %v245 = vld [vmem:[%s3 + $0x1a0] sm:$0xff]
    %v246 = vld [vmem:[%s3 + $0x1a8] sm:$0xff]
    %v247 = vld [vmem:[%s3 + $0x1b0] sm:$0xff]
    %v248 = vld [vmem:[%s3 + $0x1b8] sm:$0xff]
    %v249 = vld [vmem:[%s3 + $0x1c0] sm:$0xff]
    %v250 = vld [vmem:[%s3 + $0x1c8] sm:$0xff]
    %v251 = vld [vmem:[%s3 + $0x1d0] sm:$0xff]
    %v252 = vld [vmem:[%s3 + $0x1d8] sm:$0xff]
    %v253 = vld [vmem:[%s3 + $0x1e0] sm:$0xff]
    %v254 = vld [vmem:[%s3 + $0x1e8] sm:$0xff]
    %v255 = vld [vmem:[%s3 + $0x1f0] sm:$0xff]
    %v256 = vld [vmem:[%s3 + $0x1f8] sm:$0xff]
    %v321 = vunpack.c.l.b16 %v193
    %v322 = vunpack.c.h.b16 %v193
    %v323 = vunpack.c.l.b16 %v194
    %v324 = vunpack.c.h.b16 %v194
    %v325 = vunpack.c.l.b16 %v195
    %v326 = vunpack.c.h.b16 %v195
    %v327 = vunpack.c.l.b16 %v196
    %v328 = vunpack.c.h.b16 %v196
    %v329 = vunpack.c.l.b16 %v197
    %v330 = vunpack.c.h.b16 %v197
    %v331 = vunpack.c.l.b16 %v198
    %v332 = vunpack.c.h.b16 %v198
    %v333 = vunpack.c.l.b16 %v199
    %v334 = vunpack.c.h.b16 %v199
    %v335 = vunpack.c.l.b16 %v200
    %v336 = vunpack.c.h.b16 %v200
    %v337 = vunpack.c.l.b16 %v201
    %v338 = vunpack.c.h.b16 %v201
    %v339 = vunpack.c.l.b16 %v202
    %v340 = vunpack.c.h.b16 %v202
    %v341 = vunpack.c.l.b16 %v203
    %v342 = vunpack.c.h.b16 %v203
    %v343 = vunpack.c.l.b16 %v204
    %v344 = vunpack.c.h.b16 %v204
    %v345 = vunpack.c.l.b16 %v205
    %v346 = vunpack.c.h.b16 %v205
    %v347 = vunpack.c.l.b16 %v206
    %v348 = vunpack.c.h.b16 %v206
    %v349 = vunpack.c.l.b16 %v207
    %v350 = vunpack.c.h.b16 %v207
    %v351 = vunpack.c.l.b16 %v208
    %v352 = vunpack.c.h.b16 %v208
    %v353 = vunpack.c.l.b16 %v209
    %v354 = vunpack.c.h.b16 %v209
    %v355 = vunpack.c.l.b16 %v210
    %v356 = vunpack.c.h.b16 %v210
    %v357 = vunpack.c.l.b16 %v211
    %v358 = vunpack.c.h.b16 %v211
    %v359 = vunpack.c.l.b16 %v212
    %v360 = vunpack.c.h.b16 %v212
    %v361 = vunpack.c.l.b16 %v213
    %v362 = vunpack.c.h.b16 %v213
    %v363 = vunpack.c.l.b16 %v214
    %v364 = vunpack.c.h.b16 %v214
    %v365 = vunpack.c.l.b16 %v215
    %v366 = vunpack.c.h.b16 %v215
    %v367 = vunpack.c.l.b16 %v216
    %v368 = vunpack.c.h.b16 %v216
    %v369 = vunpack.c.l.b16 %v217
    %v370 = vunpack.c.h.b16 %v217
    %v371 = vunpack.c.l.b16 %v218
    %v372 = vunpack.c.h.b16 %v218
    %v373 = vunpack.c.l.b16 %v219
    %v374 = vunpack.c.h.b16 %v219
    %v375 = vunpack.c.l.b16 %v220
    %v376 = vunpack.c.h.b16 %v220
    %v377 = vunpack.c.l.b16 %v221
    %v378 = vunpack.c.h.b16 %v221
    %v379 = vunpack.c.l.b16 %v222
    %v380 = vunpack.c.h.b16 %v222
    %v381 = vunpack.c.l.b16 %v223
    %v382 = vunpack.c.h.b16 %v223
    %v383 = vunpack.c.l.b16 %v224
    %v384 = vunpack.c.h.b16 %v224
    %v385 = vunpack.c.l.b16 %v225
    %v386 = vunpack.c.h.b16 %v225
    %v387 = vunpack.c.l.b16 %v226
    %v388 = vunpack.c.h.b16 %v226
    %v389 = vunpack.c.l.b16 %v227
    %v390 = vunpack.c.h.b16 %v227
    %v391 = vunpack.c.l.b16 %v228
    %v392 = vunpack.c.h.b16 %v228
    %v393 = vunpack.c.l.b16 %v229
    %v394 = vunpack.c.h.b16 %v229
    %v395 = vunpack.c.l.b16 %v230
    %v396 = vunpack.c.h.b16 %v230
    %v397 = vunpack.c.l.b16 %v231
    %v398 = vunpack.c.h.b16 %v231
    %v399 = vunpack.c.l.b16 %v232
    %v400 = vunpack.c.h.b16 %v232
    %v401 = vunpack.c.l.b16 %v233
    %v402 = vunpack.c.h.b16 %v233
    %v403 = vunpack.c.l.b16 %v234
    %v404 = vunpack.c.h.b16 %v234
    %v405 = vunpack.c.l.b16 %v235
    %v406 = vunpack.c.h.b16 %v235
    %v407 = vunpack.c.l.b16 %v236
    %v408 = vunpack.c.h.b16 %v236
    %v409 = vunpack.c.l.b16 %v237
    %v410 = vunpack.c.h.b16 %v237
    %v411 = vunpack.c.l.b16 %v238
    %v412 = vunpack.c.h.b16 %v238
    %v413 = vunpack.c.l.b16 %v239
    %v414 = vunpack.c.h.b16 %v239
    %v415 = vunpack.c.l.b16 %v240
    %v416 = vunpack.c.h.b16 %v240
    %v417 = vunpack.c.l.b16 %v241
    %v418 = vunpack.c.h.b16 %v241
    %v419 = vunpack.c.l.b16 %v242
    %v420 = vunpack.c.h.b16 %v242
    %v421 = vunpack.c.l.b16 %v243
    %v422 = vunpack.c.h.b16 %v243
    %v423 = vunpack.c.l.b16 %v244
    %v424 = vunpack.c.h.b16 %v244
    %v425 = vunpack.c.l.b16 %v245
    %v426 = vunpack.c.h.b16 %v245
    %v427 = vunpack.c.l.b16 %v246
    %v428 = vunpack.c.h.b16 %v246
    %v429 = vunpack.c.l.b16 %v247
    %v430 = vunpack.c.h.b16 %v247
    %v431 = vunpack.c.l.b16 %v248
    %v432 = vunpack.c.h.b16 %v248
    %v433 = vunpack.c.l.b16 %v249
    %v434 = vunpack.c.h.b16 %v249
    %v435 = vunpack.c.l.b16 %v250
    %v436 = vunpack.c.h.b16 %v250
    %v437 = vunpack.c.l.b16 %v251
    %v438 = vunpack.c.h.b16 %v251
    %v439 = vunpack.c.l.b16 %v252
    %v440 = vunpack.c.h.b16 %v252
    %v441 = vunpack.c.l.b16 %v253
    %v442 = vunpack.c.h.b16 %v253
    %v443 = vunpack.c.l.b16 %v254
    %v444 = vunpack.c.h.b16 %v254
    %v445 = vunpack.c.l.b16 %v255
    %v446 = vunpack.c.h.b16 %v255
    %v447 = vunpack.c.l.b16 %v256
    %v448 = vunpack.c.h.b16 %v256
    %v449 = vpack.c.b16 %v325, %v321
    %v450 = vpack.c.b16 %v326, %v322
    %v451 = vpack.c.b16 %v327, %v323
    %v452 = vpack.c.b16 %v328, %v324
    %v453 = vpack.c.b16 %v333, %v329
    %v454 = vpack.c.b16 %v334, %v330
    %v455 = vpack.c.b16 %v335, %v331
    %v456 = vpack.c.b16 %v336, %v332
    %v457 = vpack.c.b16 %v341, %v337
    %v458 = vpack.c.b16 %v342, %v338
    %v459 = vpack.c.b16 %v343, %v339
    %v460 = vpack.c.b16 %v344, %v340
    %v461 = vpack.c.b16 %v349, %v345
    %v462 = vpack.c.b16 %v350, %v346
    %v463 = vpack.c.b16 %v351, %v347
    %v464 = vpack.c.b16 %v352, %v348
    %v465 = vpack.c.b16 %v357, %v353
    %v466 = vpack.c.b16 %v358, %v354
    %v467 = vpack.c.b16 %v359, %v355
    %v468 = vpack.c.b16 %v360, %v356
    %v469 = vpack.c.b16 %v365, %v361
    %v470 = vpack.c.b16 %v366, %v362
    %v471 = vpack.c.b16 %v367, %v363
    %v472 = vpack.c.b16 %v368, %v364
    %v473 = vpack.c.b16 %v373, %v369
    %v474 = vpack.c.b16 %v374, %v370
    %v475 = vpack.c.b16 %v375, %v371
    %v476 = vpack.c.b16 %v376, %v372
    %v477 = vpack.c.b16 %v381, %v377
    %v478 = vpack.c.b16 %v382, %v378
    %v479 = vpack.c.b16 %v383, %v379
    %v480 = vpack.c.b16 %v384, %v380
    %v481 = vpack.c.b16 %v389, %v385
    %v482 = vpack.c.b16 %v390, %v386
    %v483 = vpack.c.b16 %v391, %v387
    %v484 = vpack.c.b16 %v392, %v388
    %v485 = vpack.c.b16 %v397, %v393
    %v486 = vpack.c.b16 %v398, %v394
    %v487 = vpack.c.b16 %v399, %v395
    %v488 = vpack.c.b16 %v400, %v396
    %v489 = vpack.c.b16 %v405, %v401
    %v490 = vpack.c.b16 %v406, %v402
    %v491 = vpack.c.b16 %v407, %v403
    %v492 = vpack.c.b16 %v408, %v404
    %v493 = vpack.c.b16 %v413, %v409
    %v494 = vpack.c.b16 %v414, %v410
    %v495 = vpack.c.b16 %v415, %v411
    %v496 = vpack.c.b16 %v416, %v412
    %v497 = vpack.c.b16 %v421, %v417
    %v498 = vpack.c.b16 %v422, %v418
    %v499 = vpack.c.b16 %v423, %v419
    %v500 = vpack.c.b16 %v424, %v420
    %v501 = vpack.c.b16 %v429, %v425
    %v502 = vpack.c.b16 %v430, %v426
    %v503 = vpack.c.b16 %v431, %v427
    %v504 = vpack.c.b16 %v432, %v428
    %v505 = vpack.c.b16 %v437, %v433
    %v506 = vpack.c.b16 %v438, %v434
    %v507 = vpack.c.b16 %v439, %v435
    %v508 = vpack.c.b16 %v440, %v436
    %v509 = vpack.c.b16 %v445, %v441
    %v510 = vpack.c.b16 %v446, %v442
    %v511 = vpack.c.b16 %v447, %v443
    %v512 = vpack.c.b16 %v448, %v444
    %577 = vmatpush.bf16.msra.mxu0 %v477
    %578 = vmatpush.bf16.msra.mxu0 %v473
    %579 = vmatpush.bf16.msra.mxu0 %v469
    %580 = vmatpush.bf16.msra.mxu0 %v465
    %581 = vmatpush.bf16.msra.mxu0 %v461
    %582 = vmatpush.bf16.msra.mxu0 %v457
    %583 = vmatpush.bf16.msra.mxu0 %v453
    %584 = vmatpush.bf16.msra.mxu0 %v449
    %585 = vmatmul.bf16.gmra.mxu0 %v191
    %v586 = vpop.f32.mrf.mxu0
    %v587 = vadd.f32 0.0, %v586
    %v588 = vpop.f32.mrf.mxu0
    %589 = vdwg.mxu0
    %590 = vmatpush.bf16.msra.mxu0 %v509
    %591 = vmatpush.bf16.msra.mxu0 %v505
    %592 = vmatpush.bf16.msra.mxu0 %v501
    %593 = vmatpush.bf16.msra.mxu0 %v497
    %594 = vmatpush.bf16.msra.mxu0 %v493
    %595 = vmatpush.bf16.msra.mxu0 %v489
    %596 = vmatpush.bf16.msra.mxu0 %v485
    %597 = vmatpush.bf16.msra.mxu0 %v481
    %598 = vmatmul.bf16.gmra.mxu0 %v192
    %v599 = vpop.f32.mrf.mxu0
    %v600 = vadd.f32 %v587, %v599
    %v601 = vpop.f32.mrf.mxu0
    %602 = vdwg.mxu0
    %603 = vmatpush.bf16.msra.mxu0 %v478
    %604 = vmatpush.bf16.msra.mxu0 %v474
    %605 = vmatpush.bf16.msra.mxu0 %v470
    %606 = vmatpush.bf16.msra.mxu0 %v466
    %607 = vmatpush.bf16.msra.mxu0 %v462
    %608 = vmatpush.bf16.msra.mxu0 %v458
    %609 = vmatpush.bf16.msra.mxu0 %v454
    %610 = vmatpush.bf16.msra.mxu0 %v450
    %611 = vmatmul.bf16.gmra.mxu0 %v191
    %v612 = vpop.f32.mrf.mxu0
    %v613 = vadd.f32 0.0, %v612
    %v614 = vpop.f32.mrf.mxu0
    %615 = vdwg.mxu0
    %616 = vmatpush.bf16.msra.mxu0 %v510
    %617 = vmatpush.bf16.msra.mxu0 %v506
    %618 = vmatpush.bf16.msra.mxu0 %v502
    %619 = vmatpush.bf16.msra.mxu0 %v498
    %620 = vmatpush.bf16.msra.mxu0 %v494
    %621 = vmatpush.bf16.msra.mxu0 %v490
    %622 = vmatpush.bf16.msra.mxu0 %v486
    %623 = vmatpush.bf16.msra.mxu0 %v482
    %624 = vmatmul.bf16.gmra.mxu0 %v192
    %v625 = vpop.f32.mrf.mxu0
    %v626 = vadd.f32 %v613, %v625
    %v627 = vpop.f32.mrf.mxu0
    %628 = vdwg.mxu0
    %629 = vmatpush.bf16.msra.mxu0 %v479
    %630 = vmatpush.bf16.msra.mxu0 %v475
    %631 = vmatpush.bf16.msra.mxu0 %v471
    %632 = vmatpush.bf16.msra.mxu0 %v467
    %633 = vmatpush.bf16.msra.mxu0 %v463
    %634 = vmatpush.bf16.msra.mxu0 %v459
    %635 = vmatpush.bf16.msra.mxu0 %v455
    %636 = vmatpush.bf16.msra.mxu0 %v451
    %637 = vmatmul.bf16.gmra.mxu0 %v191
    %v638 = vpop.f32.mrf.mxu0
    %v639 = vadd.f32 0.0, %v638
    %v640 = vpop.f32.mrf.mxu0
    %641 = vdwg.mxu0
    %642 = vmatpush.bf16.msra.mxu0 %v511
    %643 = vmatpush.bf16.msra.mxu0 %v507
    %644 = vmatpush.bf16.msra.mxu0 %v503
    %645 = vmatpush.bf16.msra.mxu0 %v499
    %646 = vmatpush.bf16.msra.mxu0 %v495
    %647 = vmatpush.bf16.msra.mxu0 %v491
    %648 = vmatpush.bf16.msra.mxu0 %v487
    %649 = vmatpush.bf16.msra.mxu0 %v483
    %650 = vmatmul.bf16.gmra.mxu0 %v192
    %v651 = vpop.f32.mrf.mxu0
    %v652 = vadd.f32 %v639, %v651
    %v653 = vpop.f32.mrf.mxu0
    %654 = vdwg.mxu0
    %655 = vmatpush.bf16.msra.mxu0 %v480
    %656 = vmatpush.bf16.msra.mxu0 %v476
    %657 = vmatpush.bf16.msra.mxu0 %v472
    %658 = vmatpush.bf16.msra.mxu0 %v468
    %659 = vmatpush.bf16.msra.mxu0 %v464
    %660 = vmatpush.bf16.msra.mxu0 %v460
    %661 = vmatpush.bf16.msra.mxu0 %v456
    %662 = vmatpush.bf16.msra.mxu0 %v452
    %663 = vmatmul.bf16.gmra.mxu0 %v191
    %v664 = vpop.f32.mrf.mxu0
    %v665 = vadd.f32 0.0, %v664
    %v666 = vpop.f32.mrf.mxu0
    %667 = vdwg.mxu0
    %668 = vmatpush.bf16.msra.mxu0 %v512
    %669 = vmatpush.bf16.msra.mxu0 %v508
    %670 = vmatpush.bf16.msra.mxu0 %v504
    %671 = vmatpush.bf16.msra.mxu0 %v500
    %672 = vmatpush.bf16.msra.mxu0 %v496
    %673 = vmatpush.bf16.msra.mxu0 %v492
    %674 = vmatpush.bf16.msra.mxu0 %v488
    %675 = vmatpush.bf16.msra.mxu0 %v484
    %676 = vmatmul.bf16.gmra.mxu0 %v192
    %v677 = vpop.f32.mrf.mxu0
    %v678 = vadd.f32 %v665, %v677
    %v679 = vpop.f32.mrf.mxu0
    %680 = vdwg.mxu0
    %vm681 = vcmask 1041408
    %v682 = vsel %vm681, %v600, 0.0
    %v683 = vrot.slane %v682, 4
    %v684 = vadd.f32 %v682, %v683
    %v685 = vrot.slane %v684, 2
    %v686 = vadd.f32 %v684, %v685
    %v687 = vrot.slane %v686, 1
    %v688 = vadd.f32 %v686, %v687
    %v689 = vsel %vm681, %v626, 0.0
    %v690 = vrot.slane %v689, 4
    %v691 = vadd.f32 %v689, %v690
    %v692 = vrot.slane %v691, 2
    %v693 = vadd.f32 %v691, %v692
    %v694 = vrot.slane %v693, 1
    %v695 = vadd.f32 %v693, %v694
    %v696 = vsel %vm681, %v652, 0.0
    %v697 = vrot.slane %v696, 4
    %v698 = vadd.f32 %v696, %v697
    %v699 = vrot.slane %v698, 2
    %v700 = vadd.f32 %v698, %v699
    %v701 = vrot.slane %v700, 1
    %v702 = vadd.f32 %v700, %v701
    %v703 = vsel %vm681, %v678, 0.0
    %v704 = vrot.slane %v703, 4
    %v705 = vadd.f32 %v703, %v704
    %v706 = vrot.slane %v705, 2
    %v707 = vadd.f32 %v705, %v706
    %v708 = vrot.slane %v707, 1
    %v709 = vadd.f32 %v707, %v708
    %v710 = vmul.f32 %v600, %v600
    %v711 = vmul.f32 %v626, %v626
    %v712 = vmul.f32 %v652, %v652
    %v713 = vmul.f32 %v678, %v678
    %v714 = vsel %vm681, %v710, 0.0
    %v715 = vrot.slane %v714, 4
    %v716 = vadd.f32 %v714, %v715
    %v717 = vrot.slane %v716, 2
    %v718 = vadd.f32 %v716, %v717
    %v719 = vrot.slane %v718, 1
    %v720 = vadd.f32 %v718, %v719
    %v721 = vsel %vm681, %v711, 0.0
    %v722 = vrot.slane %v721, 4
    %v723 = vadd.f32 %v721, %v722
    %v724 = vrot.slane %v723, 2
    %v725 = vadd.f32 %v723, %v724
    %v726 = vrot.slane %v725, 1
    %v727 = vadd.f32 %v725, %v726
    %v728 = vsel %vm681, %v712, 0.0
    %v729 = vrot.slane %v728, 4
    %v730 = vadd.f32 %v728, %v729
    %v731 = vrot.slane %v730, 2
    %v732 = vadd.f32 %v730, %v731
    %v733 = vrot.slane %v732, 1
    %v734 = vadd.f32 %v732, %v733
    %v735 = vsel %vm681, %v713, 0.0
    %v736 = vrot.slane %v735, 4
    %v737 = vadd.f32 %v735, %v736
    %v738 = vrot.slane %v737, 2
    %v739 = vadd.f32 %v737, %v738
    %v740 = vrot.slane %v739, 1
    %v741 = vadd.f32 %v739, %v740
    %v742 = vld [vmem:[#allocation4] sm:$0xff]
    %v743 = vld [vmem:[#allocation4 + $0x8] sm:$0xff]
    %v744 = vld [vmem:[#allocation4 + $0x10] sm:$0xff]
    %v745 = vld [vmem:[#allocation4 + $0x18] sm:$0xff]
    %v746 = vld [vmem:[#allocation4 + $0x20] sm:$0xff]
    %v747 = vld [vmem:[#allocation4 + $0x28] sm:$0xff]
    %v748 = vld [vmem:[#allocation4 + $0x30] sm:$0xff]
    %v749 = vld [vmem:[#allocation4 + $0x38] sm:$0xff]
    %v750 = vld [vmem:[#allocation4 + $0x40] sm:$0xff]
    %v751 = vld [vmem:[#allocation4 + $0x48] sm:$0xff]
    %v752 = vld [vmem:[#allocation4 + $0x50] sm:$0xff]
    %v753 = vld [vmem:[#allocation4 + $0x58] sm:$0xff]
    %v754 = vld [vmem:[#allocation4 + $0x60] sm:$0xff]
    %v755 = vld [vmem:[#allocation4 + $0x68] sm:$0xff]
    %v756 = vld [vmem:[#allocation4 + $0x70] sm:$0xff]
    %v757 = vld [vmem:[#allocation4 + $0x78] sm:$0xff]
    %v758 = vld [vmem:[#allocation4 + $0x80] sm:$0xff]
    %v759 = vld [vmem:[#allocation4 + $0x88] sm:$0xff]
    %v760 = vld [vmem:[#allocation4 + $0x90] sm:$0xff]
    %v761 = vld [vmem:[#allocation4 + $0x98] sm:$0xff]
    %v762 = vld [vmem:[#allocation4 + $0xa0] sm:$0xff]
    %v763 = vld [vmem:[#allocation4 + $0xa8] sm:$0xff]
    %v764 = vld [vmem:[#allocation4 + $0xb0] sm:$0xff]
    %v765 = vld [vmem:[#allocation4 + $0xb8] sm:$0xff]
    %v766 = vld [vmem:[#allocation4 + $0xc0] sm:$0xff]
    %v767 = vld [vmem:[#allocation4 + $0xc8] sm:$0xff]
    %v768 = vld [vmem:[#allocation4 + $0xd0] sm:$0xff]
    %v769 = vld [vmem:[#allocation4 + $0xd8] sm:$0xff]
    %v770 = vld [vmem:[#allocation4 + $0xe0] sm:$0xff]
    %v771 = vld [vmem:[#allocation4 + $0xe8] sm:$0xff]
    %v772 = vld [vmem:[#allocation4 + $0xf0] sm:$0xff]
    %v773 = vld [vmem:[#allocation4 + $0xf8] sm:$0xff]
    %v774 = vld [vmem:[#allocation4 + $0x100] sm:$0xff]
    %v775 = vld [vmem:[#allocation4 + $0x108] sm:$0xff]
    %v776 = vld [vmem:[#allocation4 + $0x110] sm:$0xff]
    %v777 = vld [vmem:[#allocation4 + $0x118] sm:$0xff]
    %v778 = vld [vmem:[#allocation4 + $0x120] sm:$0xff]
    %v779 = vld [vmem:[#allocation4 + $0x128] sm:$0xff]
    %v780 = vld [vmem:[#allocation4 + $0x130] sm:$0xff]
    %v781 = vld [vmem:[#allocation4 + $0x138] sm:$0xff]
    %v782 = vld [vmem:[#allocation4 + $0x140] sm:$0xff]
    %v783 = vld [vmem:[#allocation4 + $0x148] sm:$0xff]
    %v784 = vld [vmem:[#allocation4 + $0x150] sm:$0xff]
    %v785 = vld [vmem:[#allocation4 + $0x158] sm:$0xff]
    %v786 = vld [vmem:[#allocation4 + $0x160] sm:$0xff]
    %v787 = vld [vmem:[#allocation4 + $0x168] sm:$0xff]
    %v788 = vld [vmem:[#allocation4 + $0x170] sm:$0xff]
    %v789 = vld [vmem:[#allocation4 + $0x178] sm:$0xff]
    %v790 = vld [vmem:[#allocation4 + $0x180] sm:$0xff]
    %v791 = vld [vmem:[#allocation4 + $0x188] sm:$0xff]
    %v792 = vld [vmem:[#allocation4 + $0x190] sm:$0xff]
    %v793 = vld [vmem:[#allocation4 + $0x198] sm:$0xff]
    %v794 = vld [vmem:[#allocation4 + $0x1a0] sm:$0xff]
    %v795 = vld [vmem:[#allocation4 + $0x1a8] sm:$0xff]
    %v796 = vld [vmem:[#allocation4 + $0x1b0] sm:$0xff]
    %v797 = vld [vmem:[#allocation4 + $0x1b8] sm:$0xff]
    %v798 = vld [vmem:[#allocation4 + $0x1c0] sm:$0xff]
    %v799 = vld [vmem:[#allocation4 + $0x1c8] sm:$0xff]
    %v800 = vld [vmem:[#allocation4 + $0x1d0] sm:$0xff]
    %v801 = vld [vmem:[#allocation4 + $0x1d8] sm:$0xff]
    %v802 = vld [vmem:[#allocation4 + $0x1e0] sm:$0xff]
    %v803 = vld [vmem:[#allocation4 + $0x1e8] sm:$0xff]
    %v804 = vld [vmem:[#allocation4 + $0x1f0] sm:$0xff]
    %v805 = vld [vmem:[#allocation4 + $0x1f8] sm:$0xff]
    %806 = vmatpush.msra.mxu0 %v757
    %807 = vmatpush.msra.mxu0 %v756
    %808 = vmatpush.msra.mxu0 %v755
    %809 = vmatpush.msra.mxu0 %v754
    %810 = vmatpush.msra.mxu0 %v753
    %811 = vmatpush.msra.mxu0 %v752
    %812 = vmatpush.msra.mxu0 %v751
    %813 = vmatpush.msra.mxu0 %v750
    %814 = vmatpush.msra.mxu0 %v749
    %815 = vmatpush.msra.mxu0 %v748
    %816 = vmatpush.msra.mxu0 %v747
    %817 = vmatpush.msra.mxu0 %v746
    %818 = vmatpush.msra.mxu0 %v745
    %819 = vmatpush.msra.mxu0 %v744
    %820 = vmatpush.msra.mxu0 %v743
    %821 = vmatpush.msra.mxu0 %v742
    %822 = vmatmul.f32.gmra.mxu0 %v688
    %v823 = vpop.f32.mrf.mxu0
    %v824 = vadd.f32 0.0, %v823
    %825 = vdwg.mxu0
    %826 = vmatpush.msra.mxu0 %v773
    %827 = vmatpush.msra.mxu0 %v772
    %828 = vmatpush.msra.mxu0 %v771
    %829 = vmatpush.msra.mxu0 %v770
    %830 = vmatpush.msra.mxu0 %v769
    %831 = vmatpush.msra.mxu0 %v768
    %832 = vmatpush.msra.mxu0 %v767
    %833 = vmatpush.msra.mxu0 %v766
    %834 = vmatpush.msra.mxu0 %v765
    %835 = vmatpush.msra.mxu0 %v764
    %836 = vmatpush.msra.mxu0 %v763
    %837 = vmatpush.msra.mxu0 %v762
    %838 = vmatpush.msra.mxu0 %v761
    %839 = vmatpush.msra.mxu0 %v760
    %840 = vmatpush.msra.mxu0 %v759
    %841 = vmatpush.msra.mxu0 %v758
    %842 = vmatmul.f32.gmra.mxu0 %v695
    %v843 = vpop.f32.mrf.mxu0
    %v844 = vadd.f32 %v824, %v843
    %845 = vdwg.mxu0
    %846 = vmatpush.msra.mxu0 %v789
    %847 = vmatpush.msra.mxu0 %v788
    %848 = vmatpush.msra.mxu0 %v787
    %849 = vmatpush.msra.mxu0 %v786
    %850 = vmatpush.msra.mxu0 %v785
    %851 = vmatpush.msra.mxu0 %v784
    %852 = vmatpush.msra.mxu0 %v783
    %853 = vmatpush.msra.mxu0 %v782
    %854 = vmatpush.msra.mxu0 %v781
    %855 = vmatpush.msra.mxu0 %v780
    %856 = vmatpush.msra.mxu0 %v779
    %857 = vmatpush.msra.mxu0 %v778
    %858 = vmatpush.msra.mxu0 %v777
    %859 = vmatpush.msra.mxu0 %v776
    %860 = vmatpush.msra.mxu0 %v775
    %861 = vmatpush.msra.mxu0 %v774
    %862 = vmatmul.f32.gmra.mxu0 %v702
    %v863 = vpop.f32.mrf.mxu0
    %v864 = vadd.f32 %v844, %v863
    %865 = vdwg.mxu0
    %866 = vmatpush.msra.mxu0 %v805
    %867 = vmatpush.msra.mxu0 %v804
    %868 = vmatpush.msra.mxu0 %v803
    %869 = vmatpush.msra.mxu0 %v802
    %870 = vmatpush.msra.mxu0 %v801
    %871 = vmatpush.msra.mxu0 %v800
    %872 = vmatpush.msra.mxu0 %v799
    %873 = vmatpush.msra.mxu0 %v798
    %874 = vmatpush.msra.mxu0 %v797
    %875 = vmatpush.msra.mxu0 %v796
    %876 = vmatpush.msra.mxu0 %v795
    %877 = vmatpush.msra.mxu0 %v794
    %878 = vmatpush.msra.mxu0 %v793
    %879 = vmatpush.msra.mxu0 %v792
    %880 = vmatpush.msra.mxu0 %v791
    %881 = vmatpush.msra.mxu0 %v790
    %882 = vmatmul.f32.gmra.mxu0 %v709
    %v883 = vpop.f32.mrf.mxu0
    %v884 = vadd.f32 %v864, %v883
    %885 = vdwg.mxu0
    %v886 = vmul.f32 %v884, 0.125
    %887 = vmatpush.msra.mxu0 %v757
    %888 = vmatpush.msra.mxu0 %v756
    %889 = vmatpush.msra.mxu0 %v755
    %890 = vmatpush.msra.mxu0 %v754
    %891 = vmatpush.msra.mxu0 %v753
    %892 = vmatpush.msra.mxu0 %v752
    %893 = vmatpush.msra.mxu0 %v751
    %894 = vmatpush.msra.mxu0 %v750
    %895 = vmatpush.msra.mxu0 %v749
    %896 = vmatpush.msra.mxu0 %v748
    %897 = vmatpush.msra.mxu0 %v747
    %898 = vmatpush.msra.mxu0 %v746
    %899 = vmatpush.msra.mxu0 %v745
    %900 = vmatpush.msra.mxu0 %v744
    %901 = vmatpush.msra.mxu0 %v743
    %902 = vmatpush.msra.mxu0 %v742
    %903 = vmatmul.f32.gmra.mxu0 %v720
    %v904 = vpop.f32.mrf.mxu0
    %v905 = vadd.f32 0.0, %v904
    %906 = vdwg.mxu0
    %907 = vmatpush.msra.mxu0 %v773
    %908 = vmatpush.msra.mxu0 %v772
    %909 = vmatpush.msra.mxu0 %v771
    %910 = vmatpush.msra.mxu0 %v770
    %911 = vmatpush.msra.mxu0 %v769
    %912 = vmatpush.msra.mxu0 %v768
    %913 = vmatpush.msra.mxu0 %v767
    %914 = vmatpush.msra.mxu0 %v766
    %915 = vmatpush.msra.mxu0 %v765
    %916 = vmatpush.msra.mxu0 %v764
    %917 = vmatpush.msra.mxu0 %v763
    %918 = vmatpush.msra.mxu0 %v762
    %919 = vmatpush.msra.mxu0 %v761
    %920 = vmatpush.msra.mxu0 %v760
    %921 = vmatpush.msra.mxu0 %v759
    %922 = vmatpush.msra.mxu0 %v758
    %923 = vmatmul.f32.gmra.mxu0 %v727
    %v924 = vpop.f32.mrf.mxu0
    %v925 = vadd.f32 %v905, %v924
    %926 = vdwg.mxu0
    %927 = vmatpush.msra.mxu0 %v789
    %928 = vmatpush.msra.mxu0 %v788
    %929 = vmatpush.msra.mxu0 %v787
    %930 = vmatpush.msra.mxu0 %v786
    %931 = vmatpush.msra.mxu0 %v785
    %932 = vmatpush.msra.mxu0 %v784
    %933 = vmatpush.msra.mxu0 %v783
    %934 = vmatpush.msra.mxu0 %v782
    %935 = vmatpush.msra.mxu0 %v781
    %936 = vmatpush.msra.mxu0 %v780
    %937 = vmatpush.msra.mxu0 %v779
    %938 = vmatpush.msra.mxu0 %v778
    %939 = vmatpush.msra.mxu0 %v777
    %940 = vmatpush.msra.mxu0 %v776
    %941 = vmatpush.msra.mxu0 %v775
    %942 = vmatpush.msra.mxu0 %v774
    %943 = vmatmul.f32.gmra.mxu0 %v734
    %v944 = vpop.f32.mrf.mxu0
    %v945 = vadd.f32 %v925, %v944
    %946 = vdwg.mxu0
    %947 = vmatpush.msra.mxu0 %v805
    %948 = vmatpush.msra.mxu0 %v804
    %949 = vmatpush.msra.mxu0 %v803
    %950 = vmatpush.msra.mxu0 %v802
    %951 = vmatpush.msra.mxu0 %v801
    %952 = vmatpush.msra.mxu0 %v800
    %953 = vmatpush.msra.mxu0 %v799
    %954 = vmatpush.msra.mxu0 %v798
    %955 = vmatpush.msra.mxu0 %v797
    %956 = vmatpush.msra.mxu0 %v796
    %957 = vmatpush.msra.mxu0 %v795
    %958 = vmatpush.msra.mxu0 %v794
    %959 = vmatpush.msra.mxu0 %v793
    %960 = vmatpush.msra.mxu0 %v792
    %961 = vmatpush.msra.mxu0 %v791
    %962 = vmatpush.msra.mxu0 %v790
    %963 = vmatmul.f32.gmra.mxu0 %v741
    %v964 = vpop.f32.mrf.mxu0
    %v965 = vadd.f32 %v945, %v964
    %966 = vdwg.mxu0
    %v967 = vmul.f32 %v965, 0.125
    %v968 = vmul.f32 %v886, %v886
    %v969 = vsub.f32 %v967, %v968
    %v970 = vld [vmem:[%s4] sm:$0x1]
    %v971 = vadd.f32 %v969, 1e-05
    %v972 = vrsqrt.pop %v971
    %v973 = vmul.f32 %v972, %v971
    %v974 = vmul.f32 %v973, %v972
    %v975 = vmul.f32 0.5, %v974
    %v976 = vsub.f32 1.5, %v975
    %v977 = vmul.f32 %v972, %v976
    %vm978 = vweird.f32 %v971
    %vm979 = vweird.f32 %v972
    %vm980 = vmor %vm978, %vm979
    %v981 = vsel %vm980, %v972, %v977
    %v982 = vmul.f32 %v970, %v981
    %v983 = vld [vmem:[%s5] sm:$0x1]
    %v984 = vmul.f32 %v886, %v982
    %v985 = vsub.f32 %v983, %v984
    %v986 = vld [vmem:[#allocation6] sm:$0xff]
    %v987 = vld [vmem:[#allocation6 + $0x8] sm:$0xff]
    %v988 = vld [vmem:[#allocation6 + $0x10] sm:$0xff]
    %v989 = vld [vmem:[#allocation6 + $0x18] sm:$0xff]
    %v990 = vld [vmem:[#allocation6 + $0x20] sm:$0xff]
    %v991 = vld [vmem:[#allocation6 + $0x28] sm:$0xff]
    %v992 = vld [vmem:[#allocation6 + $0x30] sm:$0xff]
    %v993 = vld [vmem:[#allocation6 + $0x38] sm:$0xff]
    %v994 = vld [vmem:[#allocation6 + $0x40] sm:$0xff]
    %v995 = vld [vmem:[#allocation6 + $0x48] sm:$0xff]
    %v996 = vld [vmem:[#allocation6 + $0x50] sm:$0xff]
    %v997 = vld [vmem:[#allocation6 + $0x58] sm:$0xff]
    %v998 = vld [vmem:[#allocation6 + $0x60] sm:$0xff]
    %v999 = vld [vmem:[#allocation6 + $0x68] sm:$0xff]
    %v1000 = vld [vmem:[#allocation6 + $0x70] sm:$0xff]
    %v1001 = vld [vmem:[#allocation6 + $0x78] sm:$0xff]
    %v1002 = vld [vmem:[#allocation6 + $0x80] sm:$0xff]
    %v1003 = vld [vmem:[#allocation6 + $0x88] sm:$0xff]
    %v1004 = vld [vmem:[#allocation6 + $0x90] sm:$0xff]
    %v1005 = vld [vmem:[#allocation6 + $0x98] sm:$0xff]
    %v1006 = vld [vmem:[#allocation6 + $0xa0] sm:$0xff]
    %v1007 = vld [vmem:[#allocation6 + $0xa8] sm:$0xff]
    %v1008 = vld [vmem:[#allocation6 + $0xb0] sm:$0xff]
    %v1009 = vld [vmem:[#allocation6 + $0xb8] sm:$0xff]
    %v1010 = vld [vmem:[#allocation6 + $0xc0] sm:$0xff]
    %v1011 = vld [vmem:[#allocation6 + $0xc8] sm:$0xff]
    %v1012 = vld [vmem:[#allocation6 + $0xd0] sm:$0xff]
    %v1013 = vld [vmem:[#allocation6 + $0xd8] sm:$0xff]
    %v1014 = vld [vmem:[#allocation6 + $0xe0] sm:$0xff]
    %v1015 = vld [vmem:[#allocation6 + $0xe8] sm:$0xff]
    %v1016 = vld [vmem:[#allocation6 + $0xf0] sm:$0xff]
    %v1017 = vld [vmem:[#allocation6 + $0xf8] sm:$0xff]
    %v1018 = vld [vmem:[#allocation6 + $0x100] sm:$0xff]
    %v1019 = vld [vmem:[#allocation6 + $0x108] sm:$0xff]
    %v1020 = vld [vmem:[#allocation6 + $0x110] sm:$0xff]
    %v1021 = vld [vmem:[#allocation6 + $0x118] sm:$0xff]
    %v1022 = vld [vmem:[#allocation6 + $0x120] sm:$0xff]
    %v1023 = vld [vmem:[#allocation6 + $0x128] sm:$0xff]
    %v1024 = vld [vmem:[#allocation6 + $0x130] sm:$0xff]
    %v1025 = vld [vmem:[#allocation6 + $0x138] sm:$0xff]
    %v1026 = vld [vmem:[#allocation6 + $0x140] sm:$0xff]
    %v1027 = vld [vmem:[#allocation6 + $0x148] sm:$0xff]
    %v1028 = vld [vmem:[#allocation6 + $0x150] sm:$0xff]
    %v1029 = vld [vmem:[#allocation6 + $0x158] sm:$0xff]
    %v1030 = vld [vmem:[#allocation6 + $0x160] sm:$0xff]
    %v1031 = vld [vmem:[#allocation6 + $0x168] sm:$0xff]
    %v1032 = vld [vmem:[#allocation6 + $0x170] sm:$0xff]
    %v1033 = vld [vmem:[#allocation6 + $0x178] sm:$0xff]
    %v1034 = vld [vmem:[#allocation6 + $0x180] sm:$0xff]
    %v1035 = vld [vmem:[#allocation6 + $0x188] sm:$0xff]
    %v1036 = vld [vmem:[#allocation6 + $0x190] sm:$0xff]
    %v1037 = vld [vmem:[#allocation6 + $0x198] sm:$0xff]
    %v1038 = vld [vmem:[#allocation6 + $0x1a0] sm:$0xff]
    %v1039 = vld [vmem:[#allocation6 + $0x1a8] sm:$0xff]
    %v1040 = vld [vmem:[#allocation6 + $0x1b0] sm:$0xff]
    %v1041 = vld [vmem:[#allocation6 + $0x1b8] sm:$0xff]
    %v1042 = vld [vmem:[#allocation6 + $0x1c0] sm:$0xff]
    %v1043 = vld [vmem:[#allocation6 + $0x1c8] sm:$0xff]
    %v1044 = vld [vmem:[#allocation6 + $0x1d0] sm:$0xff]
    %v1045 = vld [vmem:[#allocation6 + $0x1d8] sm:$0xff]
    %v1046 = vld [vmem:[#allocation6 + $0x1e0] sm:$0xff]
    %v1047 = vld [vmem:[#allocation6 + $0x1e8] sm:$0xff]
    %v1048 = vld [vmem:[#allocation6 + $0x1f0] sm:$0xff]
    %v1049 = vld [vmem:[#allocation6 + $0x1f8] sm:$0xff]
    %1050 = vmatpush.msra.mxu0 %v1046
    %1051 = vmatpush.msra.mxu0 %v1042
    %1052 = vmatpush.msra.mxu0 %v1038
    %1053 = vmatpush.msra.mxu0 %v1034
    %1054 = vmatpush.msra.mxu0 %v1030
    %1055 = vmatpush.msra.mxu0 %v1026
    %1056 = vmatpush.msra.mxu0 %v1022
    %1057 = vmatpush.msra.mxu0 %v1018
    %1058 = vmatpush.msra.mxu0 %v1014
    %1059 = vmatpush.msra.mxu0 %v1010
    %1060 = vmatpush.msra.mxu0 %v1006
    %1061 = vmatpush.msra.mxu0 %v1002
    %1062 = vmatpush.msra.mxu0 %v998
    %1063 = vmatpush.msra.mxu0 %v994
    %1064 = vmatpush.msra.mxu0 %v990
    %1065 = vmatpush.msra.mxu0 %v986
    %1066 = vmatmul.f32.gmra.mxu0 %v982
    %v1067 = vpop.f32.mrf.mxu0
    %v1068 = vadd.f32 0.0, %v1067
    %1069 = vdwg.mxu0
    %1070 = vmatpush.msra.mxu0 %v1047
    %1071 = vmatpush.msra.mxu0 %v1043
    %1072 = vmatpush.msra.mxu0 %v1039
    %1073 = vmatpush.msra.mxu0 %v1035
    %1074 = vmatpush.msra.mxu0 %v1031
    %1075 = vmatpush.msra.mxu0 %v1027
    %1076 = vmatpush.msra.mxu0 %v1023
    %1077 = vmatpush.msra.mxu0 %v1019
    %1078 = vmatpush.msra.mxu0 %v1015
    %1079 = vmatpush.msra.mxu0 %v1011
    %1080 = vmatpush.msra.mxu0 %v1007
    %1081 = vmatpush.msra.mxu0 %v1003
    %1082 = vmatpush.msra.mxu0 %v999
    %1083 = vmatpush.msra.mxu0 %v995
    %1084 = vmatpush.msra.mxu0 %v991
    %1085 = vmatpush.msra.mxu0 %v987
    %1086 = vmatmul.f32.gmra.mxu0 %v982
    %v1087 = vpop.f32.mrf.mxu0
    %v1088 = vadd.f32 0.0, %v1087
    %1089 = vdwg.mxu0
    %1090 = vmatpush.msra.mxu0 %v1048
    %1091 = vmatpush.msra.mxu0 %v1044
    %1092 = vmatpush.msra.mxu0 %v1040
    %1093 = vmatpush.msra.mxu0 %v1036
    %1094 = vmatpush.msra.mxu0 %v1032
    %1095 = vmatpush.msra.mxu0 %v1028
    %1096 = vmatpush.msra.mxu0 %v1024
    %1097 = vmatpush.msra.mxu0 %v1020
    %1098 = vmatpush.msra.mxu0 %v1016
    %1099 = vmatpush.msra.mxu0 %v1012
    %1100 = vmatpush.msra.mxu0 %v1008
    %1101 = vmatpush.msra.mxu0 %v1004
    %1102 = vmatpush.msra.mxu0 %v1000
    %1103 = vmatpush.msra.mxu0 %v996
    %1104 = vmatpush.msra.mxu0 %v992
    %1105 = vmatpush.msra.mxu0 %v988
    %1106 = vmatmul.f32.gmra.mxu0 %v982
    %v1107 = vpop.f32.mrf.mxu0
    %v1108 = vadd.f32 0.0, %v1107
    %1109 = vdwg.mxu0
    %1110 = vmatpush.msra.mxu0 %v1049
    %1111 = vmatpush.msra.mxu0 %v1045
    %1112 = vmatpush.msra.mxu0 %v1041
    %1113 = vmatpush.msra.mxu0 %v1037
    %1114 = vmatpush.msra.mxu0 %v1033
    %1115 = vmatpush.msra.mxu0 %v1029
    %1116 = vmatpush.msra.mxu0 %v1025
    %1117 = vmatpush.msra.mxu0 %v1021
    %1118 = vmatpush.msra.mxu0 %v1017
    %1119 = vmatpush.msra.mxu0 %v1013
    %1120 = vmatpush.msra.mxu0 %v1009
    %1121 = vmatpush.msra.mxu0 %v1005
    %1122 = vmatpush.msra.mxu0 %v1001
    %1123 = vmatpush.msra.mxu0 %v997
    %1124 = vmatpush.msra.mxu0 %v993
    %1125 = vmatpush.msra.mxu0 %v989
    %1126 = vmatmul.f32.gmra.mxu0 %v982
    %v1127 = vpop.f32.mrf.mxu0
    %v1128 = vadd.f32 0.0, %v1127
    %1129 = vdwg.mxu0
    %1130 = vmatpush.msra.mxu0 %v1046
    %1131 = vmatpush.msra.mxu0 %v1042
    %1132 = vmatpush.msra.mxu0 %v1038
    %1133 = vmatpush.msra.mxu0 %v1034
    %1134 = vmatpush.msra.mxu0 %v1030
    %1135 = vmatpush.msra.mxu0 %v1026
    %1136 = vmatpush.msra.mxu0 %v1022
    %1137 = vmatpush.msra.mxu0 %v1018
    %1138 = vmatpush.msra.mxu0 %v1014
    %1139 = vmatpush.msra.mxu0 %v1010
    %1140 = vmatpush.msra.mxu0 %v1006
    %1141 = vmatpush.msra.mxu0 %v1002
    %1142 = vmatpush.msra.mxu0 %v998
    %1143 = vmatpush.msra.mxu0 %v994
    %1144 = vmatpush.msra.mxu0 %v990
    %1145 = vmatpush.msra.mxu0 %v986
    %1146 = vmatmul.f32.gmra.mxu0 %v985
    %v1147 = vpop.f32.mrf.mxu0
    %v1148 = vadd.f32 0.0, %v1147
    %1149 = vdwg.mxu0
    %1150 = vmatpush.msra.mxu0 %v1047
    %1151 = vmatpush.msra.mxu0 %v1043
    %1152 = vmatpush.msra.mxu0 %v1039
    %1153 = vmatpush.msra.mxu0 %v1035
    %1154 = vmatpush.msra.mxu0 %v1031
    %1155 = vmatpush.msra.mxu0 %v1027
    %1156 = vmatpush.msra.mxu0 %v1023
    %1157 = vmatpush.msra.mxu0 %v1019
    %1158 = vmatpush.msra.mxu0 %v1015
    %1159 = vmatpush.msra.mxu0 %v1011
    %1160 = vmatpush.msra.mxu0 %v1007
    %1161 = vmatpush.msra.mxu0 %v1003
    %1162 = vmatpush.msra.mxu0 %v999
    %1163 = vmatpush.msra.mxu0 %v995
    %1164 = vmatpush.msra.mxu0 %v991
    %1165 = vmatpush.msra.mxu0 %v987
    %1166 = vmatmul.f32.gmra.mxu0 %v985
    %v1167 = vpop.f32.mrf.mxu0
    %v1168 = vadd.f32 0.0, %v1167
    %1169 = vdwg.mxu0
    %1170 = vmatpush.msra.mxu0 %v1048
    %1171 = vmatpush.msra.mxu0 %v1044
    %1172 = vmatpush.msra.mxu0 %v1040
    %1173 = vmatpush.msra.mxu0 %v1036
    %1174 = vmatpush.msra.mxu0 %v1032
    %1175 = vmatpush.msra.mxu0 %v1028
    %1176 = vmatpush.msra.mxu0 %v1024
    %1177 = vmatpush.msra.mxu0 %v1020
    %1178 = vmatpush.msra.mxu0 %v1016
    %1179 = vmatpush.msra.mxu0 %v1012
    %1180 = vmatpush.msra.mxu0 %v1008
    %1181 = vmatpush.msra.mxu0 %v1004
    %1182 = vmatpush.msra.mxu0 %v1000
    %1183 = vmatpush.msra.mxu0 %v996
    %1184 = vmatpush.msra.mxu0 %v992
    %1185 = vmatpush.msra.mxu0 %v988
    %1186 = vmatmul.f32.gmra.mxu0 %v985
    %v1187 = vpop.f32.mrf.mxu0
    %v1188 = vadd.f32 0.0, %v1187
    %1189 = vdwg.mxu0
    %1190 = vmatpush.msra.mxu0 %v1049
    %1191 = vmatpush.msra.mxu0 %v1045
    %1192 = vmatpush.msra.mxu0 %v1041
    %1193 = vmatpush.msra.mxu0 %v1037
    %1194 = vmatpush.msra.mxu0 %v1033
    %1195 = vmatpush.msra.mxu0 %v1029
    %1196 = vmatpush.msra.mxu0 %v1025
    %1197 = vmatpush.msra.mxu0 %v1021
    %1198 = vmatpush.msra.mxu0 %v1017
    %1199 = vmatpush.msra.mxu0 %v1013
    %1200 = vmatpush.msra.mxu0 %v1009
    %1201 = vmatpush.msra.mxu0 %v1005
    %1202 = vmatpush.msra.mxu0 %v1001
    %1203 = vmatpush.msra.mxu0 %v997
    %1204 = vmatpush.msra.mxu0 %v993
    %1205 = vmatpush.msra.mxu0 %v989
    %1206 = vmatmul.f32.gmra.mxu0 %v985
    %v1207 = vpop.f32.mrf.mxu0
    %v1208 = vadd.f32 0.0, %v1207
    %1209 = vdwg.mxu0
    %v1210 = vperm.slane %v1068, 0
    %v1211 = vperm.slane %v1088, 0
    %v1212 = vperm.slane %v1108, 0
    %v1213 = vperm.slane %v1128, 0
    %v1214 = vmul.f32 %v600, %v1210
    %v1215 = vmul.f32 %v626, %v1211
    %v1216 = vmul.f32 %v652, %v1212
    %v1217 = vmul.f32 %v678, %v1213
    %v1218 = vperm.slane %v1148, 0
    %v1219 = vperm.slane %v1168, 0
    %v1220 = vperm.slane %v1188, 0
    %v1221 = vperm.slane %v1208, 0
    %v1222 = vadd.f32 %v1214, %v1218
    %v1223 = vadd.f32 %v1215, %v1219
    %v1224 = vadd.f32 %v1216, %v1220
    %v1225 = vadd.f32 %v1217, %v1221
    %v1226 = vmax.f32 %v1222, 0.0
    %v1227 = vmax.f32 %v1223, 0.0
    %v1228 = vmax.f32 %v1224, 0.0
    %v1229 = vmax.f32 %v1225, 0.0
    %v1230 = vpack.c.bf16 %v1226, %v1226
    %v1231 = vpack.c.bf16 %v1227, %v1227
    %v1232 = vpack.c.bf16 %v1228, %v1228
    %v1233 = vpack.c.bf16 %v1229, %v1229
    %v1234 = vld [vmem:[#allocation7] sm:$0xff]
    %v1235 = vld [vmem:[#allocation7 + $0x8] sm:$0xff]
    %v1236 = vld [vmem:[#allocation7 + $0x10] sm:$0xff]
    %v1237 = vld [vmem:[#allocation7 + $0x18] sm:$0xff]
    %v1238 = vld [vmem:[#allocation7 + $0x20] sm:$0xff]
    %v1239 = vld [vmem:[#allocation7 + $0x28] sm:$0xff]
    %v1240 = vld [vmem:[#allocation7 + $0x30] sm:$0xff]
    %v1241 = vld [vmem:[#allocation7 + $0x38] sm:$0xff]
    %v1242 = vld [vmem:[#allocation7 + $0x40] sm:$0xff]
    %v1243 = vld [vmem:[#allocation7 + $0x48] sm:$0xff]
    %v1244 = vld [vmem:[#allocation7 + $0x50] sm:$0xff]
    %v1245 = vld [vmem:[#allocation7 + $0x58] sm:$0xff]
    %v1246 = vld [vmem:[#allocation7 + $0x60] sm:$0xff]
    %v1247 = vld [vmem:[#allocation7 + $0x68] sm:$0xff]
    %v1248 = vld [vmem:[#allocation7 + $0x70] sm:$0xff]
    %v1249 = vld [vmem:[#allocation7 + $0x78] sm:$0xff]
    %v1250 = vld [vmem:[#allocation7 + $0x80] sm:$0xff]
    %v1251 = vld [vmem:[#allocation7 + $0x88] sm:$0xff]
    %v1252 = vld [vmem:[#allocation7 + $0x90] sm:$0xff]
    %v1253 = vld [vmem:[#allocation7 + $0x98] sm:$0xff]
    %v1254 = vld [vmem:[#allocation7 + $0xa0] sm:$0xff]
    %v1255 = vld [vmem:[#allocation7 + $0xa8] sm:$0xff]
    %v1256 = vld [vmem:[#allocation7 + $0xb0] sm:$0xff]
    %v1257 = vld [vmem:[#allocation7 + $0xb8] sm:$0xff]
    %v1258 = vld [vmem:[#allocation7 + $0xc0] sm:$0xff]
    %v1259 = vld [vmem:[#allocation7 + $0xc8] sm:$0xff]
    %v1260 = vld [vmem:[#allocation7 + $0xd0] sm:$0xff]
    %v1261 = vld [vmem:[#allocation7 + $0xd8] sm:$0xff]
    %v1262 = vld [vmem:[#allocation7 + $0xe0] sm:$0xff]
    %v1263 = vld [vmem:[#allocation7 + $0xe8] sm:$0xff]
    %v1264 = vld [vmem:[#allocation7 + $0xf0] sm:$0xff]
    %v1265 = vld [vmem:[#allocation7 + $0xf8] sm:$0xff]
    %v1266 = vld [vmem:[#allocation7 + $0x100] sm:$0xff]
    %v1267 = vld [vmem:[#allocation7 + $0x108] sm:$0xff]
    %v1268 = vld [vmem:[#allocation7 + $0x110] sm:$0xff]
    %v1269 = vld [vmem:[#allocation7 + $0x118] sm:$0xff]
    %v1270 = vld [vmem:[#allocation7 + $0x120] sm:$0xff]
    %v1271 = vld [vmem:[#allocation7 + $0x128] sm:$0xff]
    %v1272 = vld [vmem:[#allocation7 + $0x130] sm:$0xff]
    %v1273 = vld [vmem:[#allocation7 + $0x138] sm:$0xff]
    %v1274 = vld [vmem:[#allocation7 + $0x140] sm:$0xff]
    %v1275 = vld [vmem:[#allocation7 + $0x148] sm:$0xff]
    %v1276 = vld [vmem:[#allocation7 + $0x150] sm:$0xff]
    %v1277 = vld [vmem:[#allocation7 + $0x158] sm:$0xff]
    %v1278 = vld [vmem:[#allocation7 + $0x160] sm:$0xff]
    %v1279 = vld [vmem:[#allocation7 + $0x168] sm:$0xff]
    %v1280 = vld [vmem:[#allocation7 + $0x170] sm:$0xff]
    %v1281 = vld [vmem:[#allocation7 + $0x178] sm:$0xff]
    %v1282 = vld [vmem:[#allocation7 + $0x180] sm:$0xff]
    %v1283 = vld [vmem:[#allocation7 + $0x188] sm:$0xff]
    %v1284 = vld [vmem:[#allocation7 + $0x190] sm:$0xff]
    %v1285 = vld [vmem:[#allocation7 + $0x198] sm:$0xff]
    %v1286 = vld [vmem:[#allocation7 + $0x1a0] sm:$0xff]
    %v1287 = vld [vmem:[#allocation7 + $0x1a8] sm:$0xff]
    %v1288 = vld [vmem:[#allocation7 + $0x1b0] sm:$0xff]
    %v1289 = vld [vmem:[#allocation7 + $0x1b8] sm:$0xff]
    %v1290 = vld [vmem:[#allocation7 + $0x1c0] sm:$0xff]
    %v1291 = vld [vmem:[#allocation7 + $0x1c8] sm:$0xff]
    %v1292 = vld [vmem:[#allocation7 + $0x1d0] sm:$0xff]
    %v1293 = vld [vmem:[#allocation7 + $0x1d8] sm:$0xff]
    %v1294 = vld [vmem:[#allocation7 + $0x1e0] sm:$0xff]
    %v1295 = vld [vmem:[#allocation7 + $0x1e8] sm:$0xff]
    %v1296 = vld [vmem:[#allocation7 + $0x1f0] sm:$0xff]
    %v1297 = vld [vmem:[#allocation7 + $0x1f8] sm:$0xff]
    %v1298 = vld [vmem:[#allocation7 + $0x200] sm:$0xff]
    %v1299 = vld [vmem:[#allocation7 + $0x208] sm:$0xff]
    %v1300 = vld [vmem:[#allocation7 + $0x210] sm:$0xff]
    %v1301 = vld [vmem:[#allocation7 + $0x218] sm:$0xff]
    %v1302 = vld [vmem:[#allocation7 + $0x220] sm:$0xff]
    %v1303 = vld [vmem:[#allocation7 + $0x228] sm:$0xff]
    %v1304 = vld [vmem:[#allocation7 + $0x230] sm:$0xff]
    %v1305 = vld [vmem:[#allocation7 + $0x238] sm:$0xff]
    %v1306 = vld [vmem:[#allocation7 + $0x240] sm:$0xff]
    %v1307 = vld [vmem:[#allocation7 + $0x248] sm:$0xff]
    %v1308 = vld [vmem:[#allocation7 + $0x250] sm:$0xff]
    %v1309 = vld [vmem:[#allocation7 + $0x258] sm:$0xff]
    %v1310 = vld [vmem:[#allocation7 + $0x260] sm:$0xff]
    %v1311 = vld [vmem:[#allocation7 + $0x268] sm:$0xff]
    %v1312 = vld [vmem:[#allocation7 + $0x270] sm:$0xff]
    %v1313 = vld [vmem:[#allocation7 + $0x278] sm:$0xff]
    %v1314 = vld [vmem:[#allocation7 + $0x280] sm:$0xff]
    %v1315 = vld [vmem:[#allocation7 + $0x288] sm:$0xff]
    %v1316 = vld [vmem:[#allocation7 + $0x290] sm:$0xff]
    %v1317 = vld [vmem:[#allocation7 + $0x298] sm:$0xff]
    %v1318 = vld [vmem:[#allocation7 + $0x2a0] sm:$0xff]
    %v1319 = vld [vmem:[#allocation7 + $0x2a8] sm:$0xff]
    %v1320 = vld [vmem:[#allocation7 + $0x2b0] sm:$0xff]
    %v1321 = vld [vmem:[#allocation7 + $0x2b8] sm:$0xff]
    %v1322 = vld [vmem:[#allocation7 + $0x2c0] sm:$0xff]
    %v1323 = vld [vmem:[#allocation7 + $0x2c8] sm:$0xff]
    %v1324 = vld [vmem:[#allocation7 + $0x2d0] sm:$0xff]
    %v1325 = vld [vmem:[#allocation7 + $0x2d8] sm:$0xff]
    %v1326 = vld [vmem:[#allocation7 + $0x2e0] sm:$0xff]
    %v1327 = vld [vmem:[#allocation7 + $0x2e8] sm:$0xff]
    %v1328 = vld [vmem:[#allocation7 + $0x2f0] sm:$0xff]
    %v1329 = vld [vmem:[#allocation7 + $0x2f8] sm:$0xff]
    %v1330 = vld [vmem:[#allocation7 + $0x300] sm:$0xff]
    %v1331 = vld [vmem:[#allocation7 + $0x308] sm:$0xff]
    %v1332 = vld [vmem:[#allocation7 + $0x310] sm:$0xff]
    %v1333 = vld [vmem:[#allocation7 + $0x318] sm:$0xff]
    %v1334 = vld [vmem:[#allocation7 + $0x320] sm:$0xff]
    %v1335 = vld [vmem:[#allocation7 + $0x328] sm:$0xff]
    %v1336 = vld [vmem:[#allocation7 + $0x330] sm:$0xff]
    %v1337 = vld [vmem:[#allocation7 + $0x338] sm:$0xff]
    %v1338 = vld [vmem:[#allocation7 + $0x340] sm:$0xff]
    %v1339 = vld [vmem:[#allocation7 + $0x348] sm:$0xff]
    %v1340 = vld [vmem:[#allocation7 + $0x350] sm:$0xff]
    %v1341 = vld [vmem:[#allocation7 + $0x358] sm:$0xff]
    %v1342 = vld [vmem:[#allocation7 + $0x360] sm:$0xff]
    %v1343 = vld [vmem:[#allocation7 + $0x368] sm:$0xff]
    %v1344 = vld [vmem:[#allocation7 + $0x370] sm:$0xff]
    %v1345 = vld [vmem:[#allocation7 + $0x378] sm:$0xff]
    %v1346 = vld [vmem:[#allocation7 + $0x380] sm:$0xff]
    %v1347 = vld [vmem:[#allocation7 + $0x388] sm:$0xff]
    %v1348 = vld [vmem:[#allocation7 + $0x390] sm:$0xff]
    %v1349 = vld [vmem:[#allocation7 + $0x398] sm:$0xff]
    %v1350 = vld [vmem:[#allocation7 + $0x3a0] sm:$0xff]
    %v1351 = vld [vmem:[#allocation7 + $0x3a8] sm:$0xff]
    %v1352 = vld [vmem:[#allocation7 + $0x3b0] sm:$0xff]
    %v1353 = vld [vmem:[#allocation7 + $0x3b8] sm:$0xff]
    %v1354 = vld [vmem:[#allocation7 + $0x3c0] sm:$0xff]
    %v1355 = vld [vmem:[#allocation7 + $0x3c8] sm:$0xff]
    %v1356 = vld [vmem:[#allocation7 + $0x3d0] sm:$0xff]
    %v1357 = vld [vmem:[#allocation7 + $0x3d8] sm:$0xff]
    %v1358 = vld [vmem:[#allocation7 + $0x3e0] sm:$0xff]
    %v1359 = vld [vmem:[#allocation7 + $0x3e8] sm:$0xff]
    %v1360 = vld [vmem:[#allocation7 + $0x3f0] sm:$0xff]
    %v1361 = vld [vmem:[#allocation7 + $0x3f8] sm:$0xff]
    %v1362 = vld [vmem:[#allocation7 + $0x400] sm:$0xff]
    %v1363 = vld [vmem:[#allocation7 + $0x408] sm:$0xff]
    %v1364 = vld [vmem:[#allocation7 + $0x410] sm:$0xff]
    %v1365 = vld [vmem:[#allocation7 + $0x418] sm:$0xff]
    %v1366 = vld [vmem:[#allocation7 + $0x420] sm:$0xff]
    %v1367 = vld [vmem:[#allocation7 + $0x428] sm:$0xff]
    %v1368 = vld [vmem:[#allocation7 + $0x430] sm:$0xff]
    %v1369 = vld [vmem:[#allocation7 + $0x438] sm:$0xff]
    %v1370 = vld [vmem:[#allocation7 + $0x440] sm:$0xff]
    %v1371 = vld [vmem:[#allocation7 + $0x448] sm:$0xff]
    %v1372 = vld [vmem:[#allocation7 + $0x450] sm:$0xff]
    %v1373 = vld [vmem:[#allocation7 + $0x458] sm:$0xff]
    %v1374 = vld [vmem:[#allocation7 + $0x460] sm:$0xff]
    %v1375 = vld [vmem:[#allocation7 + $0x468] sm:$0xff]
    %v1376 = vld [vmem:[#allocation7 + $0x470] sm:$0xff]
    %v1377 = vld [vmem:[#allocation7 + $0x478] sm:$0xff]
    %v1378 = vld [vmem:[#allocation7 + $0x480] sm:$0xff]
    %v1379 = vld [vmem:[#allocation7 + $0x488] sm:$0xff]
    %v1380 = vld [vmem:[#allocation7 + $0x490] sm:$0xff]
    %v1381 = vld [vmem:[#allocation7 + $0x498] sm:$0xff]
    %v1382 = vld [vmem:[#allocation7 + $0x4a0] sm:$0xff]
    %v1383 = vld [vmem:[#allocation7 + $0x4a8] sm:$0xff]
    %v1384 = vld [vmem:[#allocation7 + $0x4b0] sm:$0xff]
    %v1385 = vld [vmem:[#allocation7 + $0x4b8] sm:$0xff]
    %v1386 = vld [vmem:[#allocation7 + $0x4c0] sm:$0xff]
    %v1387 = vld [vmem:[#allocation7 + $0x4c8] sm:$0xff]
    %v1388 = vld [vmem:[#allocation7 + $0x4d0] sm:$0xff]
    %v1389 = vld [vmem:[#allocation7 + $0x4d8] sm:$0xff]
    %v1390 = vld [vmem:[#allocation7 + $0x4e0] sm:$0xff]
    %v1391 = vld [vmem:[#allocation7 + $0x4e8] sm:$0xff]
    %v1392 = vld [vmem:[#allocation7 + $0x4f0] sm:$0xff]
    %v1393 = vld [vmem:[#allocation7 + $0x4f8] sm:$0xff]
    %v1394 = vld [vmem:[#allocation7 + $0x500] sm:$0xff]
    %v1395 = vld [vmem:[#allocation7 + $0x508] sm:$0xff]
    %v1396 = vld [vmem:[#allocation7 + $0x510] sm:$0xff]
    %v1397 = vld [vmem:[#allocation7 + $0x518] sm:$0xff]
    %v1398 = vld [vmem:[#allocation7 + $0x520] sm:$0xff]
    %v1399 = vld [vmem:[#allocation7 + $0x528] sm:$0xff]
    %v1400 = vld [vmem:[#allocation7 + $0x530] sm:$0xff]
    %v1401 = vld [vmem:[#allocation7 + $0x538] sm:$0xff]
    %v1402 = vld [vmem:[#allocation7 + $0x540] sm:$0xff]
    %v1403 = vld [vmem:[#allocation7 + $0x548] sm:$0xff]
    %v1404 = vld [vmem:[#allocation7 + $0x550] sm:$0xff]
    %v1405 = vld [vmem:[#allocation7 + $0x558] sm:$0xff]
    %v1406 = vld [vmem:[#allocation7 + $0x560] sm:$0xff]
    %v1407 = vld [vmem:[#allocation7 + $0x568] sm:$0xff]
    %v1408 = vld [vmem:[#allocation7 + $0x570] sm:$0xff]
    %v1409 = vld [vmem:[#allocation7 + $0x578] sm:$0xff]
    %v1410 = vld [vmem:[#allocation7 + $0x580] sm:$0xff]
    %v1411 = vld [vmem:[#allocation7 + $0x588] sm:$0xff]
    %v1412 = vld [vmem:[#allocation7 + $0x590] sm:$0xff]
    %v1413 = vld [vmem:[#allocation7 + $0x598] sm:$0xff]
    %v1414 = vld [vmem:[#allocation7 + $0x5a0] sm:$0xff]
    %v1415 = vld [vmem:[#allocation7 + $0x5a8] sm:$0xff]
    %v1416 = vld [vmem:[#allocation7 + $0x5b0] sm:$0xff]
    %v1417 = vld [vmem:[#allocation7 + $0x5b8] sm:$0xff]
    %v1418 = vld [vmem:[#allocation7 + $0x5c0] sm:$0xff]
    %v1419 = vld [vmem:[#allocation7 + $0x5c8] sm:$0xff]
    %v1420 = vld [vmem:[#allocation7 + $0x5d0] sm:$0xff]
    %v1421 = vld [vmem:[#allocation7 + $0x5d8] sm:$0xff]
    %v1422 = vld [vmem:[#allocation7 + $0x5e0] sm:$0xff]
    %v1423 = vld [vmem:[#allocation7 + $0x5e8] sm:$0xff]
    %v1424 = vld [vmem:[#allocation7 + $0x5f0] sm:$0xff]
    %v1425 = vld [vmem:[#allocation7 + $0x5f8] sm:$0xff]
    %v1426 = vld [vmem:[#allocation7 + $0x600] sm:$0xff]
    %v1427 = vld [vmem:[#allocation7 + $0x608] sm:$0xff]
    %v1428 = vld [vmem:[#allocation7 + $0x610] sm:$0xff]
    %v1429 = vld [vmem:[#allocation7 + $0x618] sm:$0xff]
    %v1430 = vld [vmem:[#allocation7 + $0x620] sm:$0xff]
    %v1431 = vld [vmem:[#allocation7 + $0x628] sm:$0xff]
    %v1432 = vld [vmem:[#allocation7 + $0x630] sm:$0xff]
    %v1433 = vld [vmem:[#allocation7 + $0x638] sm:$0xff]
    %v1434 = vld [vmem:[#allocation7 + $0x640] sm:$0xff]
    %v1435 = vld [vmem:[#allocation7 + $0x648] sm:$0xff]
    %v1436 = vld [vmem:[#allocation7 + $0x650] sm:$0xff]
    %v1437 = vld [vmem:[#allocation7 + $0x658] sm:$0xff]
    %v1438 = vld [vmem:[#allocation7 + $0x660] sm:$0xff]
    %v1439 = vld [vmem:[#allocation7 + $0x668] sm:$0xff]
    %v1440 = vld [vmem:[#allocation7 + $0x670] sm:$0xff]
    %v1441 = vld [vmem:[#allocation7 + $0x678] sm:$0xff]
    %v1442 = vld [vmem:[#allocation7 + $0x680] sm:$0xff]
    %v1443 = vld [vmem:[#allocation7 + $0x688] sm:$0xff]
    %v1444 = vld [vmem:[#allocation7 + $0x690] sm:$0xff]
    %v1445 = vld [vmem:[#allocation7 + $0x698] sm:$0xff]
    %v1446 = vld [vmem:[#allocation7 + $0x6a0] sm:$0xff]
    %v1447 = vld [vmem:[#allocation7 + $0x6a8] sm:$0xff]
    %v1448 = vld [vmem:[#allocation7 + $0x6b0] sm:$0xff]
    %v1449 = vld [vmem:[#allocation7 + $0x6b8] sm:$0xff]
    %v1450 = vld [vmem:[#allocation7 + $0x6c0] sm:$0xff]
    %v1451 = vld [vmem:[#allocation7 + $0x6c8] sm:$0xff]
    %v1452 = vld [vmem:[#allocation7 + $0x6d0] sm:$0xff]
    %v1453 = vld [vmem:[#allocation7 + $0x6d8] sm:$0xff]
    %v1454 = vld [vmem:[#allocation7 + $0x6e0] sm:$0xff]
    %v1455 = vld [vmem:[#allocation7 + $0x6e8] sm:$0xff]
    %v1456 = vld [vmem:[#allocation7 + $0x6f0] sm:$0xff]
    %v1457 = vld [vmem:[#allocation7 + $0x6f8] sm:$0xff]
    %v1458 = vld [vmem:[#allocation7 + $0x700] sm:$0xff]
    %v1459 = vld [vmem:[#allocation7 + $0x708] sm:$0xff]
    %v1460 = vld [vmem:[#allocation7 + $0x710] sm:$0xff]
    %v1461 = vld [vmem:[#allocation7 + $0x718] sm:$0xff]
    %v1462 = vld [vmem:[#allocation7 + $0x720] sm:$0xff]
    %v1463 = vld [vmem:[#allocation7 + $0x728] sm:$0xff]
    %v1464 = vld [vmem:[#allocation7 + $0x730] sm:$0xff]
    %v1465 = vld [vmem:[#allocation7 + $0x738] sm:$0xff]
    %v1466 = vld [vmem:[#allocation7 + $0x740] sm:$0xff]
    %v1467 = vld [vmem:[#allocation7 + $0x748] sm:$0xff]
    %v1468 = vld [vmem:[#allocation7 + $0x750] sm:$0xff]
    %v1469 = vld [vmem:[#allocation7 + $0x758] sm:$0xff]
    %v1470 = vld [vmem:[#allocation7 + $0x760] sm:$0xff]
    %v1471 = vld [vmem:[#allocation7 + $0x768] sm:$0xff]
    %v1472 = vld [vmem:[#allocation7 + $0x770] sm:$0xff]
    %v1473 = vld [vmem:[#allocation7 + $0x778] sm:$0xff]
    %v1474 = vld [vmem:[#allocation7 + $0x780] sm:$0xff]
    %v1475 = vld [vmem:[#allocation7 + $0x788] sm:$0xff]
    %v1476 = vld [vmem:[#allocation7 + $0x790] sm:$0xff]
    %v1477 = vld [vmem:[#allocation7 + $0x798] sm:$0xff]
    %v1478 = vld [vmem:[#allocation7 + $0x7a0] sm:$0xff]
    %v1479 = vld [vmem:[#allocation7 + $0x7a8] sm:$0xff]
    %v1480 = vld [vmem:[#allocation7 + $0x7b0] sm:$0xff]
    %v1481 = vld [vmem:[#allocation7 + $0x7b8] sm:$0xff]
    %v1482 = vld [vmem:[#allocation7 + $0x7c0] sm:$0xff]
    %v1483 = vld [vmem:[#allocation7 + $0x7c8] sm:$0xff]
    %v1484 = vld [vmem:[#allocation7 + $0x7d0] sm:$0xff]
    %v1485 = vld [vmem:[#allocation7 + $0x7d8] sm:$0xff]
    %v1486 = vld [vmem:[#allocation7 + $0x7e0] sm:$0xff]
    %v1487 = vld [vmem:[#allocation7 + $0x7e8] sm:$0xff]
    %v1488 = vld [vmem:[#allocation7 + $0x7f0] sm:$0xff]
    %v1489 = vld [vmem:[#allocation7 + $0x7f8] sm:$0xff]
    %v1746 = vunpack.c.l.b16 %v1234
    %v1747 = vunpack.c.h.b16 %v1234
    %v1748 = vunpack.c.l.b16 %v1235
    %v1749 = vunpack.c.h.b16 %v1235
    %v1750 = vunpack.c.l.b16 %v1236
    %v1751 = vunpack.c.h.b16 %v1236
    %v1752 = vunpack.c.l.b16 %v1237
    %v1753 = vunpack.c.h.b16 %v1237
    %v1754 = vunpack.c.l.b16 %v1238
    %v1755 = vunpack.c.h.b16 %v1238
    %v1756 = vunpack.c.l.b16 %v1239
    %v1757 = vunpack.c.h.b16 %v1239
    %v1758 = vunpack.c.l.b16 %v1240
    %v1759 = vunpack.c.h.b16 %v1240
    %v1760 = vunpack.c.l.b16 %v1241
    %v1761 = vunpack.c.h.b16 %v1241
    %v1762 = vunpack.c.l.b16 %v1242
    %v1763 = vunpack.c.h.b16 %v1242
    %v1764 = vunpack.c.l.b16 %v1243
    %v1765 = vunpack.c.h.b16 %v1243
    %v1766 = vunpack.c.l.b16 %v1244
    %v1767 = vunpack.c.h.b16 %v1244
    %v1768 = vunpack.c.l.b16 %v1245
    %v1769 = vunpack.c.h.b16 %v1245
    %v1770 = vunpack.c.l.b16 %v1246
    %v1771 = vunpack.c.h.b16 %v1246
    %v1772 = vunpack.c.l.b16 %v1247
    %v1773 = vunpack.c.h.b16 %v1247
    %v1774 = vunpack.c.l.b16 %v1248
    %v1775 = vunpack.c.h.b16 %v1248
    %v1776 = vunpack.c.l.b16 %v1249
    %v1777 = vunpack.c.h.b16 %v1249
    %v1778 = vunpack.c.l.b16 %v1250
    %v1779 = vunpack.c.h.b16 %v1250
    %v1780 = vunpack.c.l.b16 %v1251
    %v1781 = vunpack.c.h.b16 %v1251
    %v1782 = vunpack.c.l.b16 %v1252
    %v1783 = vunpack.c.h.b16 %v1252
    %v1784 = vunpack.c.l.b16 %v1253
    %v1785 = vunpack.c.h.b16 %v1253
    %v1786 = vunpack.c.l.b16 %v1254
    %v1787 = vunpack.c.h.b16 %v1254
    %v1788 = vunpack.c.l.b16 %v1255
    %v1789 = vunpack.c.h.b16 %v1255
    %v1790 = vunpack.c.l.b16 %v1256
    %v1791 = vunpack.c.h.b16 %v1256
    %v1792 = vunpack.c.l.b16 %v1257
    %v1793 = vunpack.c.h.b16 %v1257
    %v1794 = vunpack.c.l.b16 %v1258
    %v1795 = vunpack.c.h.b16 %v1258
    %v1796 = vunpack.c.l.b16 %v1259
    %v1797 = vunpack.c.h.b16 %v1259
    %v1798 = vunpack.c.l.b16 %v1260
    %v1799 = vunpack.c.h.b16 %v1260
    %v1800 = vunpack.c.l.b16 %v1261
    %v1801 = vunpack.c.h.b16 %v1261
    %v1802 = vunpack.c.l.b16 %v1262
    %v1803 = vunpack.c.h.b16 %v1262
    %v1804 = vunpack.c.l.b16 %v1263
    %v1805 = vunpack.c.h.b16 %v1263
    %v1806 = vunpack.c.l.b16 %v1264
    %v1807 = vunpack.c.h.b16 %v1264
    %v1808 = vunpack.c.l.b16 %v1265
    %v1809 = vunpack.c.h.b16 %v1265
    %v1810 = vunpack.c.l.b16 %v1266
    %v1811 = vunpack.c.h.b16 %v1266
    %v1812 = vunpack.c.l.b16 %v1267
    %v1813 = vunpack.c.h.b16 %v1267
    %v1814 = vunpack.c.l.b16 %v1268
    %v1815 = vunpack.c.h.b16 %v1268
    %v1816 = vunpack.c.l.b16 %v1269
    %v1817 = vunpack.c.h.b16 %v1269
    %v1818 = vunpack.c.l.b16 %v1270
    %v1819 = vunpack.c.h.b16 %v1270
    %v1820 = vunpack.c.l.b16 %v1271
    %v1821 = vunpack.c.h.b16 %v1271
    %v1822 = vunpack.c.l.b16 %v1272
    %v1823 = vunpack.c.h.b16 %v1272
    %v1824 = vunpack.c.l.b16 %v1273
    %v1825 = vunpack.c.h.b16 %v1273
    %v1826 = vunpack.c.l.b16 %v1274
    %v1827 = vunpack.c.h.b16 %v1274
    %v1828 = vunpack.c.l.b16 %v1275
    %v1829 = vunpack.c.h.b16 %v1275
    %v1830 = vunpack.c.l.b16 %v1276
    %v1831 = vunpack.c.h.b16 %v1276
    %v1832 = vunpack.c.l.b16 %v1277
    %v1833 = vunpack.c.h.b16 %v1277
    %v1834 = vunpack.c.l.b16 %v1278
    %v1835 = vunpack.c.h.b16 %v1278
    %v1836 = vunpack.c.l.b16 %v1279
    %v1837 = vunpack.c.h.b16 %v1279
    %v1838 = vunpack.c.l.b16 %v1280
    %v1839 = vunpack.c.h.b16 %v1280
    %v1840 = vunpack.c.l.b16 %v1281
    %v1841 = vunpack.c.h.b16 %v1281
    %v1842 = vunpack.c.l.b16 %v1282
    %v1843 = vunpack.c.h.b16 %v1282
    %v1844 = vunpack.c.l.b16 %v1283
    %v1845 = vunpack.c.h.b16 %v1283
    %v1846 = vunpack.c.l.b16 %v1284
    %v1847 = vunpack.c.h.b16 %v1284
    %v1848 = vunpack.c.l.b16 %v1285
    %v1849 = vunpack.c.h.b16 %v1285
    %v1850 = vunpack.c.l.b16 %v1286
    %v1851 = vunpack.c.h.b16 %v1286
    %v1852 = vunpack.c.l.b16 %v1287
    %v1853 = vunpack.c.h.b16 %v1287
    %v1854 = vunpack.c.l.b16 %v1288
    %v1855 = vunpack.c.h.b16 %v1288
    %v1856 = vunpack.c.l.b16 %v1289
    %v1857 = vunpack.c.h.b16 %v1289
    %v1858 = vunpack.c.l.b16 %v1290
    %v1859 = vunpack.c.h.b16 %v1290
    %v1860 = vunpack.c.l.b16 %v1291
    %v1861 = vunpack.c.h.b16 %v1291
    %v1862 = vunpack.c.l.b16 %v1292
    %v1863 = vunpack.c.h.b16 %v1292
    %v1864 = vunpack.c.l.b16 %v1293
    %v1865 = vunpack.c.h.b16 %v1293
    %v1866 = vunpack.c.l.b16 %v1294
    %v1867 = vunpack.c.h.b16 %v1294
    %v1868 = vunpack.c.l.b16 %v1295
    %v1869 = vunpack.c.h.b16 %v1295
    %v1870 = vunpack.c.l.b16 %v1296
    %v1871 = vunpack.c.h.b16 %v1296
    %v1872 = vunpack.c.l.b16 %v1297
    %v1873 = vunpack.c.h.b16 %v1297
    %v1874 = vunpack.c.l.b16 %v1298
    %v1875 = vunpack.c.h.b16 %v1298
    %v1876 = vunpack.c.l.b16 %v1299
    %v1877 = vunpack.c.h.b16 %v1299
    %v1878 = vunpack.c.l.b16 %v1300
    %v1879 = vunpack.c.h.b16 %v1300
    %v1880 = vunpack.c.l.b16 %v1301
    %v1881 = vunpack.c.h.b16 %v1301
    %v1882 = vunpack.c.l.b16 %v1302
    %v1883 = vunpack.c.h.b16 %v1302
    %v1884 = vunpack.c.l.b16 %v1303
    %v1885 = vunpack.c.h.b16 %v1303
    %v1886 = vunpack.c.l.b16 %v1304
    %v1887 = vunpack.c.h.b16 %v1304
    %v1888 = vunpack.c.l.b16 %v1305
    %v1889 = vunpack.c.h.b16 %v1305
    %v1890 = vunpack.c.l.b16 %v1306
    %v1891 = vunpack.c.h.b16 %v1306
    %v1892 = vunpack.c.l.b16 %v1307
    %v1893 = vunpack.c.h.b16 %v1307
    %v1894 = vunpack.c.l.b16 %v1308
    %v1895 = vunpack.c.h.b16 %v1308
    %v1896 = vunpack.c.l.b16 %v1309
    %v1897 = vunpack.c.h.b16 %v1309
    %v1898 = vunpack.c.l.b16 %v1310
    %v1899 = vunpack.c.h.b16 %v1310
    %v1900 = vunpack.c.l.b16 %v1311
    %v1901 = vunpack.c.h.b16 %v1311
    %v1902 = vunpack.c.l.b16 %v1312
    %v1903 = vunpack.c.h.b16 %v1312
    %v1904 = vunpack.c.l.b16 %v1313
    %v1905 = vunpack.c.h.b16 %v1313
    %v1906 = vunpack.c.l.b16 %v1314
    %v1907 = vunpack.c.h.b16 %v1314
    %v1908 = vunpack.c.l.b16 %v1315
    %v1909 = vunpack.c.h.b16 %v1315
    %v1910 = vunpack.c.l.b16 %v1316
    %v1911 = vunpack.c.h.b16 %v1316
    %v1912 = vunpack.c.l.b16 %v1317
    %v1913 = vunpack.c.h.b16 %v1317
    %v1914 = vunpack.c.l.b16 %v1318
    %v1915 = vunpack.c.h.b16 %v1318
    %v1916 = vunpack.c.l.b16 %v1319
    %v1917 = vunpack.c.h.b16 %v1319
    %v1918 = vunpack.c.l.b16 %v1320
    %v1919 = vunpack.c.h.b16 %v1320
    %v1920 = vunpack.c.l.b16 %v1321
    %v1921 = vunpack.c.h.b16 %v1321
    %v1922 = vunpack.c.l.b16 %v1322
    %v1923 = vunpack.c.h.b16 %v1322
    %v1924 = vunpack.c.l.b16 %v1323
    %v1925 = vunpack.c.h.b16 %v1323
    %v1926 = vunpack.c.l.b16 %v1324
    %v1927 = vunpack.c.h.b16 %v1324
    %v1928 = vunpack.c.l.b16 %v1325
    %v1929 = vunpack.c.h.b16 %v1325
    %v1930 = vunpack.c.l.b16 %v1326
    %v1931 = vunpack.c.h.b16 %v1326
    %v1932 = vunpack.c.l.b16 %v1327
    %v1933 = vunpack.c.h.b16 %v1327
    %v1934 = vunpack.c.l.b16 %v1328
    %v1935 = vunpack.c.h.b16 %v1328
    %v1936 = vunpack.c.l.b16 %v1329
    %v1937 = vunpack.c.h.b16 %v1329
    %v1938 = vunpack.c.l.b16 %v1330
    %v1939 = vunpack.c.h.b16 %v1330
    %v1940 = vunpack.c.l.b16 %v1331
    %v1941 = vunpack.c.h.b16 %v1331
    %v1942 = vunpack.c.l.b16 %v1332
    %v1943 = vunpack.c.h.b16 %v1332
    %v1944 = vunpack.c.l.b16 %v1333
    %v1945 = vunpack.c.h.b16 %v1333
    %v1946 = vunpack.c.l.b16 %v1334
    %v1947 = vunpack.c.h.b16 %v1334
    %v1948 = vunpack.c.l.b16 %v1335
    %v1949 = vunpack.c.h.b16 %v1335
    %v1950 = vunpack.c.l.b16 %v1336
    %v1951 = vunpack.c.h.b16 %v1336
    %v1952 = vunpack.c.l.b16 %v1337
    %v1953 = vunpack.c.h.b16 %v1337
    %v1954 = vunpack.c.l.b16 %v1338
    %v1955 = vunpack.c.h.b16 %v1338
    %v1956 = vunpack.c.l.b16 %v1339
    %v1957 = vunpack.c.h.b16 %v1339
    %v1958 = vunpack.c.l.b16 %v1340
    %v1959 = vunpack.c.h.b16 %v1340
    %v1960 = vunpack.c.l.b16 %v1341
    %v1961 = vunpack.c.h.b16 %v1341
    %v1962 = vunpack.c.l.b16 %v1342
    %v1963 = vunpack.c.h.b16 %v1342
    %v1964 = vunpack.c.l.b16 %v1343
    %v1965 = vunpack.c.h.b16 %v1343
    %v1966 = vunpack.c.l.b16 %v1344
    %v1967 = vunpack.c.h.b16 %v1344
    %v1968 = vunpack.c.l.b16 %v1345
    %v1969 = vunpack.c.h.b16 %v1345
    %v1970 = vunpack.c.l.b16 %v1346
    %v1971 = vunpack.c.h.b16 %v1346
    %v1972 = vunpack.c.l.b16 %v1347
    %v1973 = vunpack.c.h.b16 %v1347
    %v1974 = vunpack.c.l.b16 %v1348
    %v1975 = vunpack.c.h.b16 %v1348
    %v1976 = vunpack.c.l.b16 %v1349
    %v1977 = vunpack.c.h.b16 %v1349
    %v1978 = vunpack.c.l.b16 %v1350
    %v1979 = vunpack.c.h.b16 %v1350
    %v1980 = vunpack.c.l.b16 %v1351
    %v1981 = vunpack.c.h.b16 %v1351
    %v1982 = vunpack.c.l.b16 %v1352
    %v1983 = vunpack.c.h.b16 %v1352
    %v1984 = vunpack.c.l.b16 %v1353
    %v1985 = vunpack.c.h.b16 %v1353
    %v1986 = vunpack.c.l.b16 %v1354
    %v1987 = vunpack.c.h.b16 %v1354
    %v1988 = vunpack.c.l.b16 %v1355
    %v1989 = vunpack.c.h.b16 %v1355
    %v1990 = vunpack.c.l.b16 %v1356
    %v1991 = vunpack.c.h.b16 %v1356
    %v1992 = vunpack.c.l.b16 %v1357
    %v1993 = vunpack.c.h.b16 %v1357
    %v1994 = vunpack.c.l.b16 %v1358
    %v1995 = vunpack.c.h.b16 %v1358
    %v1996 = vunpack.c.l.b16 %v1359
    %v1997 = vunpack.c.h.b16 %v1359
    %v1998 = vunpack.c.l.b16 %v1360
    %v1999 = vunpack.c.h.b16 %v1360
    %v2000 = vunpack.c.l.b16 %v1361
    %v2001 = vunpack.c.h.b16 %v1361
    %v2002 = vunpack.c.l.b16 %v1362
    %v2003 = vunpack.c.h.b16 %v1362
    %v2004 = vunpack.c.l.b16 %v1363
    %v2005 = vunpack.c.h.b16 %v1363
    %v2006 = vunpack.c.l.b16 %v1364
    %v2007 = vunpack.c.h.b16 %v1364
    %v2008 = vunpack.c.l.b16 %v1365
    %v2009 = vunpack.c.h.b16 %v1365
    %v2010 = vunpack.c.l.b16 %v1366
    %v2011 = vunpack.c.h.b16 %v1366
    %v2012 = vunpack.c.l.b16 %v1367
    %v2013 = vunpack.c.h.b16 %v1367
    %v2014 = vunpack.c.l.b16 %v1368
    %v2015 = vunpack.c.h.b16 %v1368
    %v2016 = vunpack.c.l.b16 %v1369
    %v2017 = vunpack.c.h.b16 %v1369
    %v2018 = vunpack.c.l.b16 %v1370
    %v2019 = vunpack.c.h.b16 %v1370
    %v2020 = vunpack.c.l.b16 %v1371
    %v2021 = vunpack.c.h.b16 %v1371
    %v2022 = vunpack.c.l.b16 %v1372
    %v2023 = vunpack.c.h.b16 %v1372
    %v2024 = vunpack.c.l.b16 %v1373
    %v2025 = vunpack.c.h.b16 %v1373
    %v2026 = vunpack.c.l.b16 %v1374
    %v2027 = vunpack.c.h.b16 %v1374
    %v2028 = vunpack.c.l.b16 %v1375
    %v2029 = vunpack.c.h.b16 %v1375
    %v2030 = vunpack.c.l.b16 %v1376
    %v2031 = vunpack.c.h.b16 %v1376
    %v2032 = vunpack.c.l.b16 %v1377
    %v2033 = vunpack.c.h.b16 %v1377
    %v2034 = vunpack.c.l.b16 %v1378
    %v2035 = vunpack.c.h.b16 %v1378
    %v2036 = vunpack.c.l.b16 %v1379
    %v2037 = vunpack.c.h.b16 %v1379
    %v2038 = vunpack.c.l.b16 %v1380
    %v2039 = vunpack.c.h.b16 %v1380
    %v2040 = vunpack.c.l.b16 %v1381
    %v2041 = vunpack.c.h.b16 %v1381
    %v2042 = vunpack.c.l.b16 %v1382
    %v2043 = vunpack.c.h.b16 %v1382
    %v2044 = vunpack.c.l.b16 %v1383
    %v2045 = vunpack.c.h.b16 %v1383
    %v2046 = vunpack.c.l.b16 %v1384
    %v2047 = vunpack.c.h.b16 %v1384
    %v2048 = vunpack.c.l.b16 %v1385
    %v2049 = vunpack.c.h.b16 %v1385
    %v2050 = vunpack.c.l.b16 %v1386
    %v2051 = vunpack.c.h.b16 %v1386
    %v2052 = vunpack.c.l.b16 %v1387
    %v2053 = vunpack.c.h.b16 %v1387
    %v2054 = vunpack.c.l.b16 %v1388
    %v2055 = vunpack.c.h.b16 %v1388
    %v2056 = vunpack.c.l.b16 %v1389
    %v2057 = vunpack.c.h.b16 %v1389
    %v2058 = vunpack.c.l.b16 %v1390
    %v2059 = vunpack.c.h.b16 %v1390
    %v2060 = vunpack.c.l.b16 %v1391
    %v2061 = vunpack.c.h.b16 %v1391
    %v2062 = vunpack.c.l.b16 %v1392
    %v2063 = vunpack.c.h.b16 %v1392
    %v2064 = vunpack.c.l.b16 %v1393
    %v2065 = vunpack.c.h.b16 %v1393
    %v2066 = vunpack.c.l.b16 %v1394
    %v2067 = vunpack.c.h.b16 %v1394
    %v2068 = vunpack.c.l.b16 %v1395
    %v2069 = vunpack.c.h.b16 %v1395
    %v2070 = vunpack.c.l.b16 %v1396
    %v2071 = vunpack.c.h.b16 %v1396
    %v2072 = vunpack.c.l.b16 %v1397
    %v2073 = vunpack.c.h.b16 %v1397
    %v2074 = vunpack.c.l.b16 %v1398
    %v2075 = vunpack.c.h.b16 %v1398
    %v2076 = vunpack.c.l.b16 %v1399
    %v2077 = vunpack.c.h.b16 %v1399
    %v2078 = vunpack.c.l.b16 %v1400
    %v2079 = vunpack.c.h.b16 %v1400
    %v2080 = vunpack.c.l.b16 %v1401
    %v2081 = vunpack.c.h.b16 %v1401
    %v2082 = vunpack.c.l.b16 %v1402
    %v2083 = vunpack.c.h.b16 %v1402
    %v2084 = vunpack.c.l.b16 %v1403
    %v2085 = vunpack.c.h.b16 %v1403
    %v2086 = vunpack.c.l.b16 %v1404
    %v2087 = vunpack.c.h.b16 %v1404
    %v2088 = vunpack.c.l.b16 %v1405
    %v2089 = vunpack.c.h.b16 %v1405
    %v2090 = vunpack.c.l.b16 %v1406
    %v2091 = vunpack.c.h.b16 %v1406
    %v2092 = vunpack.c.l.b16 %v1407
    %v2093 = vunpack.c.h.b16 %v1407
    %v2094 = vunpack.c.l.b16 %v1408
    %v2095 = vunpack.c.h.b16 %v1408
    %v2096 = vunpack.c.l.b16 %v1409
    %v2097 = vunpack.c.h.b16 %v1409
    %v2098 = vunpack.c.l.b16 %v1410
    %v2099 = vunpack.c.h.b16 %v1410
    %v2100 = vunpack.c.l.b16 %v1411
    %v2101 = vunpack.c.h.b16 %v1411
    %v2102 = vunpack.c.l.b16 %v1412
    %v2103 = vunpack.c.h.b16 %v1412
    %v2104 = vunpack.c.l.b16 %v1413
    %v2105 = vunpack.c.h.b16 %v1413
    %v2106 = vunpack.c.l.b16 %v1414
    %v2107 = vunpack.c.h.b16 %v1414
    %v2108 = vunpack.c.l.b16 %v1415
    %v2109 = vunpack.c.h.b16 %v1415
    %v2110 = vunpack.c.l.b16 %v1416
    %v2111 = vunpack.c.h.b16 %v1416
    %v2112 = vunpack.c.l.b16 %v1417
    %v2113 = vunpack.c.h.b16 %v1417
    %v2114 = vunpack.c.l.b16 %v1418
    %v2115 = vunpack.c.h.b16 %v1418
    %v2116 = vunpack.c.l.b16 %v1419
    %v2117 = vunpack.c.h.b16 %v1419
    %v2118 = vunpack.c.l.b16 %v1420
    %v2119 = vunpack.c.h.b16 %v1420
    %v2120 = vunpack.c.l.b16 %v1421
    %v2121 = vunpack.c.h.b16 %v1421
    %v2122 = vunpack.c.l.b16 %v1422
    %v2123 = vunpack.c.h.b16 %v1422
    %v2124 = vunpack.c.l.b16 %v1423
    %v2125 = vunpack.c.h.b16 %v1423
    %v2126 = vunpack.c.l.b16 %v1424
    %v2127 = vunpack.c.h.b16 %v1424
    %v2128 = vunpack.c.l.b16 %v1425
    %v2129 = vunpack.c.h.b16 %v1425
    %v2130 = vunpack.c.l.b16 %v1426
    %v2131 = vunpack.c.h.b16 %v1426
    %v2132 = vunpack.c.l.b16 %v1427
    %v2133 = vunpack.c.h.b16 %v1427
    %v2134 = vunpack.c.l.b16 %v1428
    %v2135 = vunpack.c.h.b16 %v1428
    %v2136 = vunpack.c.l.b16 %v1429
    %v2137 = vunpack.c.h.b16 %v1429
    %v2138 = vunpack.c.l.b16 %v1430
    %v2139 = vunpack.c.h.b16 %v1430
    %v2140 = vunpack.c.l.b16 %v1431
    %v2141 = vunpack.c.h.b16 %v1431
    %v2142 = vunpack.c.l.b16 %v1432
    %v2143 = vunpack.c.h.b16 %v1432
    %v2144 = vunpack.c.l.b16 %v1433
    %v2145 = vunpack.c.h.b16 %v1433
    %v2146 = vunpack.c.l.b16 %v1434
    %v2147 = vunpack.c.h.b16 %v1434
    %v2148 = vunpack.c.l.b16 %v1435
    %v2149 = vunpack.c.h.b16 %v1435
    %v2150 = vunpack.c.l.b16 %v1436
    %v2151 = vunpack.c.h.b16 %v1436
    %v2152 = vunpack.c.l.b16 %v1437
    %v2153 = vunpack.c.h.b16 %v1437
    %v2154 = vunpack.c.l.b16 %v1438
    %v2155 = vunpack.c.h.b16 %v1438
    %v2156 = vunpack.c.l.b16 %v1439
    %v2157 = vunpack.c.h.b16 %v1439
    %v2158 = vunpack.c.l.b16 %v1440
    %v2159 = vunpack.c.h.b16 %v1440
    %v2160 = vunpack.c.l.b16 %v1441
    %v2161 = vunpack.c.h.b16 %v1441
    %v2162 = vunpack.c.l.b16 %v1442
    %v2163 = vunpack.c.h.b16 %v1442
    %v2164 = vunpack.c.l.b16 %v1443
    %v2165 = vunpack.c.h.b16 %v1443
    %v2166 = vunpack.c.l.b16 %v1444
    %v2167 = vunpack.c.h.b16 %v1444
    %v2168 = vunpack.c.l.b16 %v1445
    %v2169 = vunpack.c.h.b16 %v1445
    %v2170 = vunpack.c.l.b16 %v1446
    %v2171 = vunpack.c.h.b16 %v1446
    %v2172 = vunpack.c.l.b16 %v1447
    %v2173 = vunpack.c.h.b16 %v1447
    %v2174 = vunpack.c.l.b16 %v1448
    %v2175 = vunpack.c.h.b16 %v1448
    %v2176 = vunpack.c.l.b16 %v1449
    %v2177 = vunpack.c.h.b16 %v1449
    %v2178 = vunpack.c.l.b16 %v1450
    %v2179 = vunpack.c.h.b16 %v1450
    %v2180 = vunpack.c.l.b16 %v1451
    %v2181 = vunpack.c.h.b16 %v1451
    %v2182 = vunpack.c.l.b16 %v1452
    %v2183 = vunpack.c.h.b16 %v1452
    %v2184 = vunpack.c.l.b16 %v1453
    %v2185 = vunpack.c.h.b16 %v1453
    %v2186 = vunpack.c.l.b16 %v1454
    %v2187 = vunpack.c.h.b16 %v1454
    %v2188 = vunpack.c.l.b16 %v1455
    %v2189 = vunpack.c.h.b16 %v1455
    %v2190 = vunpack.c.l.b16 %v1456
    %v2191 = vunpack.c.h.b16 %v1456
    %v2192 = vunpack.c.l.b16 %v1457
    %v2193 = vunpack.c.h.b16 %v1457
    %v2194 = vunpack.c.l.b16 %v1458
    %v2195 = vunpack.c.h.b16 %v1458
    %v2196 = vunpack.c.l.b16 %v1459
    %v2197 = vunpack.c.h.b16 %v1459
    %v2198 = vunpack.c.l.b16 %v1460
    %v2199 = vunpack.c.h.b16 %v1460
    %v2200 = vunpack.c.l.b16 %v1461
    %v2201 = vunpack.c.h.b16 %v1461
    %v2202 = vunpack.c.l.b16 %v1462
    %v2203 = vunpack.c.h.b16 %v1462
    %v2204 = vunpack.c.l.b16 %v1463
    %v2205 = vunpack.c.h.b16 %v1463
    %v2206 = vunpack.c.l.b16 %v1464
    %v2207 = vunpack.c.h.b16 %v1464
    %v2208 = vunpack.c.l.b16 %v1465
    %v2209 = vunpack.c.h.b16 %v1465
    %v2210 = vunpack.c.l.b16 %v1466
    %v2211 = vunpack.c.h.b16 %v1466
    %v2212 = vunpack.c.l.b16 %v1467
    %v2213 = vunpack.c.h.b16 %v1467
    %v2214 = vunpack.c.l.b16 %v1468
    %v2215 = vunpack.c.h.b16 %v1468
    %v2216 = vunpack.c.l.b16 %v1469
    %v2217 = vunpack.c.h.b16 %v1469
    %v2218 = vunpack.c.l.b16 %v1470
    %v2219 = vunpack.c.h.b16 %v1470
    %v2220 = vunpack.c.l.b16 %v1471
    %v2221 = vunpack.c.h.b16 %v1471
    %v2222 = vunpack.c.l.b16 %v1472
    %v2223 = vunpack.c.h.b16 %v1472
    %v2224 = vunpack.c.l.b16 %v1473
    %v2225 = vunpack.c.h.b16 %v1473
    %v2226 = vunpack.c.l.b16 %v1474
    %v2227 = vunpack.c.h.b16 %v1474
    %v2228 = vunpack.c.l.b16 %v1475
    %v2229 = vunpack.c.h.b16 %v1475
    %v2230 = vunpack.c.l.b16 %v1476
    %v2231 = vunpack.c.h.b16 %v1476
    %v2232 = vunpack.c.l.b16 %v1477
    %v2233 = vunpack.c.h.b16 %v1477
    %v2234 = vunpack.c.l.b16 %v1478
    %v2235 = vunpack.c.h.b16 %v1478
    %v2236 = vunpack.c.l.b16 %v1479
    %v2237 = vunpack.c.h.b16 %v1479
    %v2238 = vunpack.c.l.b16 %v1480
    %v2239 = vunpack.c.h.b16 %v1480
    %v2240 = vunpack.c.l.b16 %v1481
    %v2241 = vunpack.c.h.b16 %v1481
    %v2242 = vunpack.c.l.b16 %v1482
    %v2243 = vunpack.c.h.b16 %v1482
    %v2244 = vunpack.c.l.b16 %v1483
    %v2245 = vunpack.c.h.b16 %v1483
    %v2246 = vunpack.c.l.b16 %v1484
    %v2247 = vunpack.c.h.b16 %v1484
    %v2248 = vunpack.c.l.b16 %v1485
    %v2249 = vunpack.c.h.b16 %v1485
    %v2250 = vunpack.c.l.b16 %v1486
    %v2251 = vunpack.c.h.b16 %v1486
    %v2252 = vunpack.c.l.b16 %v1487
    %v2253 = vunpack.c.h.b16 %v1487
    %v2254 = vunpack.c.l.b16 %v1488
    %v2255 = vunpack.c.h.b16 %v1488
    %v2256 = vunpack.c.l.b16 %v1489
    %v2257 = vunpack.c.h.b16 %v1489
    %v2258 = vpack.c.b16 %v1754, %v1746
    %v2259 = vpack.c.b16 %v1755, %v1747
    %v2260 = vpack.c.b16 %v1756, %v1748
    %v2261 = vpack.c.b16 %v1757, %v1749
    %v2262 = vpack.c.b16 %v1758, %v1750
    %v2263 = vpack.c.b16 %v1759, %v1751
    %v2264 = vpack.c.b16 %v1760, %v1752
    %v2265 = vpack.c.b16 %v1761, %v1753
    %v2266 = vpack.c.b16 %v1770, %v1762
    %v2267 = vpack.c.b16 %v1771, %v1763
    %v2268 = vpack.c.b16 %v1772, %v1764
    %v2269 = vpack.c.b16 %v1773, %v1765
    %v2270 = vpack.c.b16 %v1774, %v1766
    %v2271 = vpack.c.b16 %v1775, %v1767
    %v2272 = vpack.c.b16 %v1776, %v1768
    %v2273 = vpack.c.b16 %v1777, %v1769
    %v2274 = vpack.c.b16 %v1786, %v1778
    %v2275 = vpack.c.b16 %v1787, %v1779
    %v2276 = vpack.c.b16 %v1788, %v1780
    %v2277 = vpack.c.b16 %v1789, %v1781
    %v2278 = vpack.c.b16 %v1790, %v1782
    %v2279 = vpack.c.b16 %v1791, %v1783
    %v2280 = vpack.c.b16 %v1792, %v1784
    %v2281 = vpack.c.b16 %v1793, %v1785
    %v2282 = vpack.c.b16 %v1802, %v1794
    %v2283 = vpack.c.b16 %v1803, %v1795
    %v2284 = vpack.c.b16 %v1804, %v1796
    %v2285 = vpack.c.b16 %v1805, %v1797
    %v2286 = vpack.c.b16 %v1806, %v1798
    %v2287 = vpack.c.b16 %v1807, %v1799
    %v2288 = vpack.c.b16 %v1808, %v1800
    %v2289 = vpack.c.b16 %v1809, %v1801
    %v2290 = vpack.c.b16 %v1818, %v1810
    %v2291 = vpack.c.b16 %v1819, %v1811
    %v2292 = vpack.c.b16 %v1820, %v1812
    %v2293 = vpack.c.b16 %v1821, %v1813
    %v2294 = vpack.c.b16 %v1822, %v1814
    %v2295 = vpack.c.b16 %v1823, %v1815
    %v2296 = vpack.c.b16 %v1824, %v1816
    %v2297 = vpack.c.b16 %v1825, %v1817
    %v2298 = vpack.c.b16 %v1834, %v1826
    %v2299 = vpack.c.b16 %v1835, %v1827
    %v2300 = vpack.c.b16 %v1836, %v1828
    %v2301 = vpack.c.b16 %v1837, %v1829
    %v2302 = vpack.c.b16 %v1838, %v1830
    %v2303 = vpack.c.b16 %v1839, %v1831
    %v2304 = vpack.c.b16 %v1840, %v1832
    %v2305 = vpack.c.b16 %v1841, %v1833
    %v2306 = vpack.c.b16 %v1850, %v1842
    %v2307 = vpack.c.b16 %v1851, %v1843
    %v2308 = vpack.c.b16 %v1852, %v1844
    %v2309 = vpack.c.b16 %v1853, %v1845
    %v2310 = vpack.c.b16 %v1854, %v1846
    %v2311 = vpack.c.b16 %v1855, %v1847
    %v2312 = vpack.c.b16 %v1856, %v1848
    %v2313 = vpack.c.b16 %v1857, %v1849
    %v2314 = vpack.c.b16 %v1866, %v1858
    %v2315 = vpack.c.b16 %v1867, %v1859
    %v2316 = vpack.c.b16 %v1868, %v1860
    %v2317 = vpack.c.b16 %v1869, %v1861
    %v2318 = vpack.c.b16 %v1870, %v1862
    %v2319 = vpack.c.b16 %v1871, %v1863
    %v2320 = vpack.c.b16 %v1872, %v1864
    %v2321 = vpack.c.b16 %v1873, %v1865
    %v2322 = vpack.c.b16 %v1882, %v1874
    %v2323 = vpack.c.b16 %v1883, %v1875
    %v2324 = vpack.c.b16 %v1884, %v1876
    %v2325 = vpack.c.b16 %v1885, %v1877
    %v2326 = vpack.c.b16 %v1886, %v1878
    %v2327 = vpack.c.b16 %v1887, %v1879
    %v2328 = vpack.c.b16 %v1888, %v1880
    %v2329 = vpack.c.b16 %v1889, %v1881
    %v2330 = vpack.c.b16 %v1898, %v1890
    %v2331 = vpack.c.b16 %v1899, %v1891
    %v2332 = vpack.c.b16 %v1900, %v1892
    %v2333 = vpack.c.b16 %v1901, %v1893
    %v2334 = vpack.c.b16 %v1902, %v1894
    %v2335 = vpack.c.b16 %v1903, %v1895
    %v2336 = vpack.c.b16 %v1904, %v1896
    %v2337 = vpack.c.b16 %v1905, %v1897
    %v2338 = vpack.c.b16 %v1914, %v1906
    %v2339 = vpack.c.b16 %v1915, %v1907
    %v2340 = vpack.c.b16 %v1916, %v1908
    %v2341 = vpack.c.b16 %v1917, %v1909
    %v2342 = vpack.c.b16 %v1918, %v1910
    %v2343 = vpack.c.b16 %v1919, %v1911
    %v2344 = vpack.c.b16 %v1920, %v1912
    %v2345 = vpack.c.b16 %v1921, %v1913
    %v2346 = vpack.c.b16 %v1930, %v1922
    %v2347 = vpack.c.b16 %v1931, %v1923
    %v2348 = vpack.c.b16 %v1932, %v1924
    %v2349 = vpack.c.b16 %v1933, %v1925
    %v2350 = vpack.c.b16 %v1934, %v1926
    %v2351 = vpack.c.b16 %v1935, %v1927
    %v2352 = vpack.c.b16 %v1936, %v1928
    %v2353 = vpack.c.b16 %v1937, %v1929
    %v2354 = vpack.c.b16 %v1946, %v1938
    %v2355 = vpack.c.b16 %v1947, %v1939
    %v2356 = vpack.c.b16 %v1948, %v1940
    %v2357 = vpack.c.b16 %v1949, %v1941
    %v2358 = vpack.c.b16 %v1950, %v1942
    %v2359 = vpack.c.b16 %v1951, %v1943
    %v2360 = vpack.c.b16 %v1952, %v1944
    %v2361 = vpack.c.b16 %v1953, %v1945
    %v2362 = vpack.c.b16 %v1962, %v1954
    %v2363 = vpack.c.b16 %v1963, %v1955
    %v2364 = vpack.c.b16 %v1964, %v1956
    %v2365 = vpack.c.b16 %v1965, %v1957
    %v2366 = vpack.c.b16 %v1966, %v1958
    %v2367 = vpack.c.b16 %v1967, %v1959
    %v2368 = vpack.c.b16 %v1968, %v1960
    %v2369 = vpack.c.b16 %v1969, %v1961
    %v2370 = vpack.c.b16 %v1978, %v1970
    %v2371 = vpack.c.b16 %v1979, %v1971
    %v2372 = vpack.c.b16 %v1980, %v1972
    %v2373 = vpack.c.b16 %v1981, %v1973
    %v2374 = vpack.c.b16 %v1982, %v1974
    %v2375 = vpack.c.b16 %v1983, %v1975
    %v2376 = vpack.c.b16 %v1984, %v1976
    %v2377 = vpack.c.b16 %v1985, %v1977
    %v2378 = vpack.c.b16 %v1994, %v1986
    %v2379 = vpack.c.b16 %v1995, %v1987
    %v2380 = vpack.c.b16 %v1996, %v1988
    %v2381 = vpack.c.b16 %v1997, %v1989
    %v2382 = vpack.c.b16 %v1998, %v1990
    %v2383 = vpack.c.b16 %v1999, %v1991
    %v2384 = vpack.c.b16 %v2000, %v1992
    %v2385 = vpack.c.b16 %v2001, %v1993
    %v2386 = vpack.c.b16 %v2010, %v2002
    %v2387 = vpack.c.b16 %v2011, %v2003
    %v2388 = vpack.c.b16 %v2012, %v2004
    %v2389 = vpack.c.b16 %v2013, %v2005
    %v2390 = vpack.c.b16 %v2014, %v2006
    %v2391 = vpack.c.b16 %v2015, %v2007
    %v2392 = vpack.c.b16 %v2016, %v2008
    %v2393 = vpack.c.b16 %v2017, %v2009
    %v2394 = vpack.c.b16 %v2026, %v2018
    %v2395 = vpack.c.b16 %v2027, %v2019
    %v2396 = vpack.c.b16 %v2028, %v2020
    %v2397 = vpack.c.b16 %v2029, %v2021
    %v2398 = vpack.c.b16 %v2030, %v2022
    %v2399 = vpack.c.b16 %v2031, %v2023
    %v2400 = vpack.c.b16 %v2032, %v2024
    %v2401 = vpack.c.b16 %v2033, %v2025
    %v2402 = vpack.c.b16 %v2042, %v2034
    %v2403 = vpack.c.b16 %v2043, %v2035
    %v2404 = vpack.c.b16 %v2044, %v2036
    %v2405 = vpack.c.b16 %v2045, %v2037
    %v2406 = vpack.c.b16 %v2046, %v2038
    %v2407 = vpack.c.b16 %v2047, %v2039
    %v2408 = vpack.c.b16 %v2048, %v2040
    %v2409 = vpack.c.b16 %v2049, %v2041
    %v2410 = vpack.c.b16 %v2058, %v2050
    %v2411 = vpack.c.b16 %v2059, %v2051
    %v2412 = vpack.c.b16 %v2060, %v2052
    %v2413 = vpack.c.b16 %v2061, %v2053
    %v2414 = vpack.c.b16 %v2062, %v2054
    %v2415 = vpack.c.b16 %v2063, %v2055
    %v2416 = vpack.c.b16 %v2064, %v2056
    %v2417 = vpack.c.b16 %v2065, %v2057
    %v2418 = vpack.c.b16 %v2074, %v2066
    %v2419 = vpack.c.b16 %v2075, %v2067
    %v2420 = vpack.c.b16 %v2076, %v2068
    %v2421 = vpack.c.b16 %v2077, %v2069
    %v2422 = vpack.c.b16 %v2078, %v2070
    %v2423 = vpack.c.b16 %v2079, %v2071
    %v2424 = vpack.c.b16 %v2080, %v2072
    %v2425 = vpack.c.b16 %v2081, %v2073
    %v2426 = vpack.c.b16 %v2090, %v2082
    %v2427 = vpack.c.b16 %v2091, %v2083
    %v2428 = vpack.c.b16 %v2092, %v2084
    %v2429 = vpack.c.b16 %v2093, %v2085
    %v2430 = vpack.c.b16 %v2094, %v2086
    %v2431 = vpack.c.b16 %v2095, %v2087
    %v2432 = vpack.c.b16 %v2096, %v2088
    %v2433 = vpack.c.b16 %v2097, %v2089
    %v2434 = vpack.c.b16 %v2106, %v2098
    %v2435 = vpack.c.b16 %v2107, %v2099
    %v2436 = vpack.c.b16 %v2108, %v2100
    %v2437 = vpack.c.b16 %v2109, %v2101
    %v2438 = vpack.c.b16 %v2110, %v2102
    %v2439 = vpack.c.b16 %v2111, %v2103
    %v2440 = vpack.c.b16 %v2112, %v2104
    %v2441 = vpack.c.b16 %v2113, %v2105
    %v2442 = vpack.c.b16 %v2122, %v2114
    %v2443 = vpack.c.b16 %v2123, %v2115
    %v2444 = vpack.c.b16 %v2124, %v2116
    %v2445 = vpack.c.b16 %v2125, %v2117
    %v2446 = vpack.c.b16 %v2126, %v2118
    %v2447 = vpack.c.b16 %v2127, %v2119
    %v2448 = vpack.c.b16 %v2128, %v2120
    %v2449 = vpack.c.b16 %v2129, %v2121
    %v2450 = vpack.c.b16 %v2138, %v2130
    %v2451 = vpack.c.b16 %v2139, %v2131
    %v2452 = vpack.c.b16 %v2140, %v2132
    %v2453 = vpack.c.b16 %v2141, %v2133
    %v2454 = vpack.c.b16 %v2142, %v2134
    %v2455 = vpack.c.b16 %v2143, %v2135
    %v2456 = vpack.c.b16 %v2144, %v2136
    %v2457 = vpack.c.b16 %v2145, %v2137
    %v2458 = vpack.c.b16 %v2154, %v2146
    %v2459 = vpack.c.b16 %v2155, %v2147
    %v2460 = vpack.c.b16 %v2156, %v2148
    %v2461 = vpack.c.b16 %v2157, %v2149
    %v2462 = vpack.c.b16 %v2158, %v2150
    %v2463 = vpack.c.b16 %v2159, %v2151
    %v2464 = vpack.c.b16 %v2160, %v2152
    %v2465 = vpack.c.b16 %v2161, %v2153
    %v2466 = vpack.c.b16 %v2170, %v2162
    %v2467 = vpack.c.b16 %v2171, %v2163
    %v2468 = vpack.c.b16 %v2172, %v2164
    %v2469 = vpack.c.b16 %v2173, %v2165
    %v2470 = vpack.c.b16 %v2174, %v2166
    %v2471 = vpack.c.b16 %v2175, %v2167
    %v2472 = vpack.c.b16 %v2176, %v2168
    %v2473 = vpack.c.b16 %v2177, %v2169
    %v2474 = vpack.c.b16 %v2186, %v2178
    %v2475 = vpack.c.b16 %v2187, %v2179
    %v2476 = vpack.c.b16 %v2188, %v2180
    %v2477 = vpack.c.b16 %v2189, %v2181
    %v2478 = vpack.c.b16 %v2190, %v2182
    %v2479 = vpack.c.b16 %v2191, %v2183
    %v2480 = vpack.c.b16 %v2192, %v2184
    %v2481 = vpack.c.b16 %v2193, %v2185
    %v2482 = vpack.c.b16 %v2202, %v2194
    %v2483 = vpack.c.b16 %v2203, %v2195
    %v2484 = vpack.c.b16 %v2204, %v2196
    %v2485 = vpack.c.b16 %v2205, %v2197
    %v2486 = vpack.c.b16 %v2206, %v2198
    %v2487 = vpack.c.b16 %v2207, %v2199
    %v2488 = vpack.c.b16 %v2208, %v2200
    %v2489 = vpack.c.b16 %v2209, %v2201
    %v2490 = vpack.c.b16 %v2218, %v2210
    %v2491 = vpack.c.b16 %v2219, %v2211
    %v2492 = vpack.c.b16 %v2220, %v2212
    %v2493 = vpack.c.b16 %v2221, %v2213
    %v2494 = vpack.c.b16 %v2222, %v2214
    %v2495 = vpack.c.b16 %v2223, %v2215
    %v2496 = vpack.c.b16 %v2224, %v2216
    %v2497 = vpack.c.b16 %v2225, %v2217
    %v2498 = vpack.c.b16 %v2234, %v2226
    %v2499 = vpack.c.b16 %v2235, %v2227
    %v2500 = vpack.c.b16 %v2236, %v2228
    %v2501 = vpack.c.b16 %v2237, %v2229
    %v2502 = vpack.c.b16 %v2238, %v2230
    %v2503 = vpack.c.b16 %v2239, %v2231
    %v2504 = vpack.c.b16 %v2240, %v2232
    %v2505 = vpack.c.b16 %v2241, %v2233
    %v2506 = vpack.c.b16 %v2250, %v2242
    %v2507 = vpack.c.b16 %v2251, %v2243
    %v2508 = vpack.c.b16 %v2252, %v2244
    %v2509 = vpack.c.b16 %v2253, %v2245
    %v2510 = vpack.c.b16 %v2254, %v2246
    %v2511 = vpack.c.b16 %v2255, %v2247
    %v2512 = vpack.c.b16 %v2256, %v2248
    %v2513 = vpack.c.b16 %v2257, %v2249
    %2770 = vmatpush.bf16.msra.mxu0 %v2314
    %2771 = vmatpush.bf16.msra.mxu0 %v2306
    %2772 = vmatpush.bf16.msra.mxu0 %v2298
    %2773 = vmatpush.bf16.msra.mxu0 %v2290
    %2774 = vmatpush.bf16.msra.mxu0 %v2282
    %2775 = vmatpush.bf16.msra.mxu0 %v2274
    %2776 = vmatpush.bf16.msra.mxu0 %v2266
    %2777 = vmatpush.bf16.msra.mxu0 %v2258
    %2778 = vmatmul.bf16.gmra.mxu0 %v1230
    %v2779 = vpop.f32.mrf.mxu0
    %v2780 = vadd.f32 0.0, %v2779
    %v2781 = vpop.f32.mrf.mxu0
    %2782 = vdwg.mxu0
    %2783 = vmatpush.bf16.msra.mxu0 %v2378
    %2784 = vmatpush.bf16.msra.mxu0 %v2370
    %2785 = vmatpush.bf16.msra.mxu0 %v2362
    %2786 = vmatpush.bf16.msra.mxu0 %v2354
    %2787 = vmatpush.bf16.msra.mxu0 %v2346
    %2788 = vmatpush.bf16.msra.mxu0 %v2338
    %2789 = vmatpush.bf16.msra.mxu0 %v2330
    %2790 = vmatpush.bf16.msra.mxu0 %v2322
    %2791 = vmatmul.bf16.gmra.mxu0 %v1231
    %v2792 = vpop.f32.mrf.mxu0
    %v2793 = vadd.f32 %v2780, %v2792
    %v2794 = vpop.f32.mrf.mxu0
    %2795 = vdwg.mxu0
    %2796 = vmatpush.bf16.msra.mxu0 %v2442
    %2797 = vmatpush.bf16.msra.mxu0 %v2434
    %2798 = vmatpush.bf16.msra.mxu0 %v2426
    %2799 = vmatpush.bf16.msra.mxu0 %v2418
    %2800 = vmatpush.bf16.msra.mxu0 %v2410
    %2801 = vmatpush.bf16.msra.mxu0 %v2402
    %2802 = vmatpush.bf16.msra.mxu0 %v2394
    %2803 = vmatpush.bf16.msra.mxu0 %v2386
    %2804 = vmatmul.bf16.gmra.mxu0 %v1232
    %v2805 = vpop.f32.mrf.mxu0
    %v2806 = vadd.f32 %v2793, %v2805
    %v2807 = vpop.f32.mrf.mxu0
    %2808 = vdwg.mxu0
    %2809 = vmatpush.bf16.msra.mxu0 %v2506
    %2810 = vmatpush.bf16.msra.mxu0 %v2498
    %2811 = vmatpush.bf16.msra.mxu0 %v2490
    %2812 = vmatpush.bf16.msra.mxu0 %v2482
    %2813 = vmatpush.bf16.msra.mxu0 %v2474
    %2814 = vmatpush.bf16.msra.mxu0 %v2466
    %2815 = vmatpush.bf16.msra.mxu0 %v2458
    %2816 = vmatpush.bf16.msra.mxu0 %v2450
    %2817 = vmatmul.bf16.gmra.mxu0 %v1233
    %v2818 = vpop.f32.mrf.mxu0
    %v2819 = vadd.f32 %v2806, %v2818
    %v2820 = vpop.f32.mrf.mxu0
    %2821 = vdwg.mxu0
    %2822 = vmatpush.bf16.msra.mxu0 %v2315
    %2823 = vmatpush.bf16.msra.mxu0 %v2307
    %2824 = vmatpush.bf16.msra.mxu0 %v2299
    %2825 = vmatpush.bf16.msra.mxu0 %v2291
    %2826 = vmatpush.bf16.msra.mxu0 %v2283
    %2827 = vmatpush.bf16.msra.mxu0 %v2275
    %2828 = vmatpush.bf16.msra.mxu0 %v2267
    %2829 = vmatpush.bf16.msra.mxu0 %v2259
    %2830 = vmatmul.bf16.gmra.mxu0 %v1230
    %v2831 = vpop.f32.mrf.mxu0
    %v2832 = vadd.f32 0.0, %v2831
    %v2833 = vpop.f32.mrf.mxu0
    %2834 = vdwg.mxu0
    %2835 = vmatpush.bf16.msra.mxu0 %v2379
    %2836 = vmatpush.bf16.msra.mxu0 %v2371
    %2837 = vmatpush.bf16.msra.mxu0 %v2363
    %2838 = vmatpush.bf16.msra.mxu0 %v2355
    %2839 = vmatpush.bf16.msra.mxu0 %v2347
    %2840 = vmatpush.bf16.msra.mxu0 %v2339
    %2841 = vmatpush.bf16.msra.mxu0 %v2331
    %2842 = vmatpush.bf16.msra.mxu0 %v2323
    %2843 = vmatmul.bf16.gmra.mxu0 %v1231
    %v2844 = vpop.f32.mrf.mxu0
    %v2845 = vadd.f32 %v2832, %v2844
    %v2846 = vpop.f32.mrf.mxu0
    %2847 = vdwg.mxu0
    %2848 = vmatpush.bf16.msra.mxu0 %v2443
    %2849 = vmatpush.bf16.msra.mxu0 %v2435
    %2850 = vmatpush.bf16.msra.mxu0 %v2427
    %2851 = vmatpush.bf16.msra.mxu0 %v2419
    %2852 = vmatpush.bf16.msra.mxu0 %v2411
    %2853 = vmatpush.bf16.msra.mxu0 %v2403
    %2854 = vmatpush.bf16.msra.mxu0 %v2395
    %2855 = vmatpush.bf16.msra.mxu0 %v2387
    %2856 = vmatmul.bf16.gmra.mxu0 %v1232
    %v2857 = vpop.f32.mrf.mxu0
    %v2858 = vadd.f32 %v2845, %v2857
    %v2859 = vpop.f32.mrf.mxu0
    %2860 = vdwg.mxu0
    %2861 = vmatpush.bf16.msra.mxu0 %v2507
    %2862 = vmatpush.bf16.msra.mxu0 %v2499
    %2863 = vmatpush.bf16.msra.mxu0 %v2491
    %2864 = vmatpush.bf16.msra.mxu0 %v2483
    %2865 = vmatpush.bf16.msra.mxu0 %v2475
    %2866 = vmatpush.bf16.msra.mxu0 %v2467
    %2867 = vmatpush.bf16.msra.mxu0 %v2459
    %2868 = vmatpush.bf16.msra.mxu0 %v2451
    %2869 = vmatmul.bf16.gmra.mxu0 %v1233
    %v2870 = vpop.f32.mrf.mxu0
    %v2871 = vadd.f32 %v2858, %v2870
    %v2872 = vpop.f32.mrf.mxu0
    %2873 = vdwg.mxu0
    %2874 = vmatpush.bf16.msra.mxu0 %v2316
    %2875 = vmatpush.bf16.msra.mxu0 %v2308
    %2876 = vmatpush.bf16.msra.mxu0 %v2300
    %2877 = vmatpush.bf16.msra.mxu0 %v2292
    %2878 = vmatpush.bf16.msra.mxu0 %v2284
    %2879 = vmatpush.bf16.msra.mxu0 %v2276
    %2880 = vmatpush.bf16.msra.mxu0 %v2268
    %2881 = vmatpush.bf16.msra.mxu0 %v2260
    %2882 = vmatmul.bf16.gmra.mxu0 %v1230
    %v2883 = vpop.f32.mrf.mxu0
    %v2884 = vadd.f32 0.0, %v2883
    %v2885 = vpop.f32.mrf.mxu0
    %2886 = vdwg.mxu0
    %2887 = vmatpush.bf16.msra.mxu0 %v2380
    %2888 = vmatpush.bf16.msra.mxu0 %v2372
    %2889 = vmatpush.bf16.msra.mxu0 %v2364
    %2890 = vmatpush.bf16.msra.mxu0 %v2356
    %2891 = vmatpush.bf16.msra.mxu0 %v2348
    %2892 = vmatpush.bf16.msra.mxu0 %v2340
    %2893 = vmatpush.bf16.msra.mxu0 %v2332
    %2894 = vmatpush.bf16.msra.mxu0 %v2324
    %2895 = vmatmul.bf16.gmra.mxu0 %v1231
    %v2896 = vpop.f32.mrf.mxu0
    %v2897 = vadd.f32 %v2884, %v2896
    %v2898 = vpop.f32.mrf.mxu0
    %2899 = vdwg.mxu0
    %2900 = vmatpush.bf16.msra.mxu0 %v2444
    %2901 = vmatpush.bf16.msra.mxu0 %v2436
    %2902 = vmatpush.bf16.msra.mxu0 %v2428
    %2903 = vmatpush.bf16.msra.mxu0 %v2420
    %2904 = vmatpush.bf16.msra.mxu0 %v2412
    %2905 = vmatpush.bf16.msra.mxu0 %v2404
    %2906 = vmatpush.bf16.msra.mxu0 %v2396
    %2907 = vmatpush.bf16.msra.mxu0 %v2388
    %2908 = vmatmul.bf16.gmra.mxu0 %v1232
    %v2909 = vpop.f32.mrf.mxu0
    %v2910 = vadd.f32 %v2897, %v2909
    %v2911 = vpop.f32.mrf.mxu0
    %2912 = vdwg.mxu0
    %2913 = vmatpush.bf16.msra.mxu0 %v2508
    %2914 = vmatpush.bf16.msra.mxu0 %v2500
    %2915 = vmatpush.bf16.msra.mxu0 %v2492
    %2916 = vmatpush.bf16.msra.mxu0 %v2484
    %2917 = vmatpush.bf16.msra.mxu0 %v2476
    %2918 = vmatpush.bf16.msra.mxu0 %v2468
    %2919 = vmatpush.bf16.msra.mxu0 %v2460
    %2920 = vmatpush.bf16.msra.mxu0 %v2452
    %2921 = vmatmul.bf16.gmra.mxu0 %v1233
    %v2922 = vpop.f32.mrf.mxu0
    %v2923 = vadd.f32 %v2910, %v2922
    %v2924 = vpop.f32.mrf.mxu0
    %2925 = vdwg.mxu0
    %2926 = vmatpush.bf16.msra.mxu0 %v2317
    %2927 = vmatpush.bf16.msra.mxu0 %v2309
    %2928 = vmatpush.bf16.msra.mxu0 %v2301
    %2929 = vmatpush.bf16.msra.mxu0 %v2293
    %2930 = vmatpush.bf16.msra.mxu0 %v2285
    %2931 = vmatpush.bf16.msra.mxu0 %v2277
    %2932 = vmatpush.bf16.msra.mxu0 %v2269
    %2933 = vmatpush.bf16.msra.mxu0 %v2261
    %2934 = vmatmul.bf16.gmra.mxu0 %v1230
    %v2935 = vpop.f32.mrf.mxu0
    %v2936 = vadd.f32 0.0, %v2935
    %v2937 = vpop.f32.mrf.mxu0
    %2938 = vdwg.mxu0
    %2939 = vmatpush.bf16.msra.mxu0 %v2381
    %2940 = vmatpush.bf16.msra.mxu0 %v2373
    %2941 = vmatpush.bf16.msra.mxu0 %v2365
    %2942 = vmatpush.bf16.msra.mxu0 %v2357
    %2943 = vmatpush.bf16.msra.mxu0 %v2349
    %2944 = vmatpush.bf16.msra.mxu0 %v2341
    %2945 = vmatpush.bf16.msra.mxu0 %v2333
    %2946 = vmatpush.bf16.msra.mxu0 %v2325
    %2947 = vmatmul.bf16.gmra.mxu0 %v1231
    %v2948 = vpop.f32.mrf.mxu0
    %v2949 = vadd.f32 %v2936, %v2948
    %v2950 = vpop.f32.mrf.mxu0
    %2951 = vdwg.mxu0
    %2952 = vmatpush.bf16.msra.mxu0 %v2445
    %2953 = vmatpush.bf16.msra.mxu0 %v2437
    %2954 = vmatpush.bf16.msra.mxu0 %v2429
    %2955 = vmatpush.bf16.msra.mxu0 %v2421
    %2956 = vmatpush.bf16.msra.mxu0 %v2413
    %2957 = vmatpush.bf16.msra.mxu0 %v2405
    %2958 = vmatpush.bf16.msra.mxu0 %v2397
    %2959 = vmatpush.bf16.msra.mxu0 %v2389
    %2960 = vmatmul.bf16.gmra.mxu0 %v1232
    %v2961 = vpop.f32.mrf.mxu0
    %v2962 = vadd.f32 %v2949, %v2961
    %v2963 = vpop.f32.mrf.mxu0
    %2964 = vdwg.mxu0
    %2965 = vmatpush.bf16.msra.mxu0 %v2509
    %2966 = vmatpush.bf16.msra.mxu0 %v2501
    %2967 = vmatpush.bf16.msra.mxu0 %v2493
    %2968 = vmatpush.bf16.msra.mxu0 %v2485
    %2969 = vmatpush.bf16.msra.mxu0 %v2477
    %2970 = vmatpush.bf16.msra.mxu0 %v2469
    %2971 = vmatpush.bf16.msra.mxu0 %v2461
    %2972 = vmatpush.bf16.msra.mxu0 %v2453
    %2973 = vmatmul.bf16.gmra.mxu0 %v1233
    %v2974 = vpop.f32.mrf.mxu0
    %v2975 = vadd.f32 %v2962, %v2974
    %v2976 = vpop.f32.mrf.mxu0
    %2977 = vdwg.mxu0
    %2978 = vmatpush.bf16.msra.mxu0 %v2318
    %2979 = vmatpush.bf16.msra.mxu0 %v2310
    %2980 = vmatpush.bf16.msra.mxu0 %v2302
    %2981 = vmatpush.bf16.msra.mxu0 %v2294
    %2982 = vmatpush.bf16.msra.mxu0 %v2286
    %2983 = vmatpush.bf16.msra.mxu0 %v2278
    %2984 = vmatpush.bf16.msra.mxu0 %v2270
    %2985 = vmatpush.bf16.msra.mxu0 %v2262
    %2986 = vmatmul.bf16.gmra.mxu0 %v1230
    %v2987 = vpop.f32.mrf.mxu0
    %v2988 = vadd.f32 0.0, %v2987
    %v2989 = vpop.f32.mrf.mxu0
    %2990 = vdwg.mxu0
    %2991 = vmatpush.bf16.msra.mxu0 %v2382
    %2992 = vmatpush.bf16.msra.mxu0 %v2374
    %2993 = vmatpush.bf16.msra.mxu0 %v2366
    %2994 = vmatpush.bf16.msra.mxu0 %v2358
    %2995 = vmatpush.bf16.msra.mxu0 %v2350
    %2996 = vmatpush.bf16.msra.mxu0 %v2342
    %2997 = vmatpush.bf16.msra.mxu0 %v2334
    %2998 = vmatpush.bf16.msra.mxu0 %v2326
    %2999 = vmatmul.bf16.gmra.mxu0 %v1231
    %v3000 = vpop.f32.mrf.mxu0
    %v3001 = vadd.f32 %v2988, %v3000
    %v3002 = vpop.f32.mrf.mxu0
    %3003 = vdwg.mxu0
    %3004 = vmatpush.bf16.msra.mxu0 %v2446
    %3005 = vmatpush.bf16.msra.mxu0 %v2438
    %3006 = vmatpush.bf16.msra.mxu0 %v2430
    %3007 = vmatpush.bf16.msra.mxu0 %v2422
    %3008 = vmatpush.bf16.msra.mxu0 %v2414
    %3009 = vmatpush.bf16.msra.mxu0 %v2406
    %3010 = vmatpush.bf16.msra.mxu0 %v2398
    %3011 = vmatpush.bf16.msra.mxu0 %v2390
    %3012 = vmatmul.bf16.gmra.mxu0 %v1232
    %v3013 = vpop.f32.mrf.mxu0
    %v3014 = vadd.f32 %v3001, %v3013
    %v3015 = vpop.f32.mrf.mxu0
    %3016 = vdwg.mxu0
    %3017 = vmatpush.bf16.msra.mxu0 %v2510
    %3018 = vmatpush.bf16.msra.mxu0 %v2502
    %3019 = vmatpush.bf16.msra.mxu0 %v2494
    %3020 = vmatpush.bf16.msra.mxu0 %v2486
    %3021 = vmatpush.bf16.msra.mxu0 %v2478
    %3022 = vmatpush.bf16.msra.mxu0 %v2470
    %3023 = vmatpush.bf16.msra.mxu0 %v2462
    %3024 = vmatpush.bf16.msra.mxu0 %v2454
    %3025 = vmatmul.bf16.gmra.mxu0 %v1233
    %v3026 = vpop.f32.mrf.mxu0
    %v3027 = vadd.f32 %v3014, %v3026
    %v3028 = vpop.f32.mrf.mxu0
    %3029 = vdwg.mxu0
    %3030 = vmatpush.bf16.msra.mxu0 %v2319
    %3031 = vmatpush.bf16.msra.mxu0 %v2311
    %3032 = vmatpush.bf16.msra.mxu0 %v2303
    %3033 = vmatpush.bf16.msra.mxu0 %v2295
    %3034 = vmatpush.bf16.msra.mxu0 %v2287
    %3035 = vmatpush.bf16.msra.mxu0 %v2279
    %3036 = vmatpush.bf16.msra.mxu0 %v2271
    %3037 = vmatpush.bf16.msra.mxu0 %v2263
    %3038 = vmatmul.bf16.gmra.mxu0 %v1230
    %v3039 = vpop.f32.mrf.mxu0
    %v3040 = vadd.f32 0.0, %v3039
    %v3041 = vpop.f32.mrf.mxu0
    %3042 = vdwg.mxu0
    %3043 = vmatpush.bf16.msra.mxu0 %v2383
    %3044 = vmatpush.bf16.msra.mxu0 %v2375
    %3045 = vmatpush.bf16.msra.mxu0 %v2367
    %3046 = vmatpush.bf16.msra.mxu0 %v2359
    %3047 = vmatpush.bf16.msra.mxu0 %v2351
    %3048 = vmatpush.bf16.msra.mxu0 %v2343
    %3049 = vmatpush.bf16.msra.mxu0 %v2335
    %3050 = vmatpush.bf16.msra.mxu0 %v2327
    %3051 = vmatmul.bf16.gmra.mxu0 %v1231
    %v3052 = vpop.f32.mrf.mxu0
    %v3053 = vadd.f32 %v3040, %v3052
    %v3054 = vpop.f32.mrf.mxu0
    %3055 = vdwg.mxu0
    %3056 = vmatpush.bf16.msra.mxu0 %v2447
    %3057 = vmatpush.bf16.msra.mxu0 %v2439
    %3058 = vmatpush.bf16.msra.mxu0 %v2431
    %3059 = vmatpush.bf16.msra.mxu0 %v2423
    %3060 = vmatpush.bf16.msra.mxu0 %v2415
    %3061 = vmatpush.bf16.msra.mxu0 %v2407
    %3062 = vmatpush.bf16.msra.mxu0 %v2399
    %3063 = vmatpush.bf16.msra.mxu0 %v2391
    %3064 = vmatmul.bf16.gmra.mxu0 %v1232
    %v3065 = vpop.f32.mrf.mxu0
    %v3066 = vadd.f32 %v3053, %v3065
    %v3067 = vpop.f32.mrf.mxu0
    %3068 = vdwg.mxu0
    %3069 = vmatpush.bf16.msra.mxu0 %v2511
    %3070 = vmatpush.bf16.msra.mxu0 %v2503
    %3071 = vmatpush.bf16.msra.mxu0 %v2495
    %3072 = vmatpush.bf16.msra.mxu0 %v2487
    %3073 = vmatpush.bf16.msra.mxu0 %v2479
    %3074 = vmatpush.bf16.msra.mxu0 %v2471
    %3075 = vmatpush.bf16.msra.mxu0 %v2463
    %3076 = vmatpush.bf16.msra.mxu0 %v2455
    %3077 = vmatmul.bf16.gmra.mxu0 %v1233
    %v3078 = vpop.f32.mrf.mxu0
    %v3079 = vadd.f32 %v3066, %v3078
    %v3080 = vpop.f32.mrf.mxu0
    %3081 = vdwg.mxu0
    %3082 = vmatpush.bf16.msra.mxu0 %v2320
    %3083 = vmatpush.bf16.msra.mxu0 %v2312
    %3084 = vmatpush.bf16.msra.mxu0 %v2304
    %3085 = vmatpush.bf16.msra.mxu0 %v2296
    %3086 = vmatpush.bf16.msra.mxu0 %v2288
    %3087 = vmatpush.bf16.msra.mxu0 %v2280
    %3088 = vmatpush.bf16.msra.mxu0 %v2272
    %3089 = vmatpush.bf16.msra.mxu0 %v2264
    %3090 = vmatmul.bf16.gmra.mxu0 %v1230
    %v3091 = vpop.f32.mrf.mxu0
    %v3092 = vadd.f32 0.0, %v3091
    %v3093 = vpop.f32.mrf.mxu0
    %3094 = vdwg.mxu0
    %3095 = vmatpush.bf16.msra.mxu0 %v2384
    %3096 = vmatpush.bf16.msra.mxu0 %v2376
    %3097 = vmatpush.bf16.msra.mxu0 %v2368
    %3098 = vmatpush.bf16.msra.mxu0 %v2360
    %3099 = vmatpush.bf16.msra.mxu0 %v2352
    %3100 = vmatpush.bf16.msra.mxu0 %v2344
    %3101 = vmatpush.bf16.msra.mxu0 %v2336
    %3102 = vmatpush.bf16.msra.mxu0 %v2328
    %3103 = vmatmul.bf16.gmra.mxu0 %v1231
    %v3104 = vpop.f32.mrf.mxu0
    %v3105 = vadd.f32 %v3092, %v3104
    %v3106 = vpop.f32.mrf.mxu0
    %3107 = vdwg.mxu0
    %3108 = vmatpush.bf16.msra.mxu0 %v2448
    %3109 = vmatpush.bf16.msra.mxu0 %v2440
    %3110 = vmatpush.bf16.msra.mxu0 %v2432
    %3111 = vmatpush.bf16.msra.mxu0 %v2424
    %3112 = vmatpush.bf16.msra.mxu0 %v2416
    %3113 = vmatpush.bf16.msra.mxu0 %v2408
    %3114 = vmatpush.bf16.msra.mxu0 %v2400
    %3115 = vmatpush.bf16.msra.mxu0 %v2392
    %3116 = vmatmul.bf16.gmra.mxu0 %v1232
    %v3117 = vpop.f32.mrf.mxu0
    %v3118 = vadd.f32 %v3105, %v3117
    %v3119 = vpop.f32.mrf.mxu0
    %3120 = vdwg.mxu0
    %3121 = vmatpush.bf16.msra.mxu0 %v2512
    %3122 = vmatpush.bf16.msra.mxu0 %v2504
    %3123 = vmatpush.bf16.msra.mxu0 %v2496
    %3124 = vmatpush.bf16.msra.mxu0 %v2488
    %3125 = vmatpush.bf16.msra.mxu0 %v2480
    %3126 = vmatpush.bf16.msra.mxu0 %v2472
    %3127 = vmatpush.bf16.msra.mxu0 %v2464
    %3128 = vmatpush.bf16.msra.mxu0 %v2456
    %3129 = vmatmul.bf16.gmra.mxu0 %v1233
    %v3130 = vpop.f32.mrf.mxu0
    %v3131 = vadd.f32 %v3118, %v3130
    %v3132 = vpop.f32.mrf.mxu0
    %3133 = vdwg.mxu0
    %3134 = vmatpush.bf16.msra.mxu0 %v2321
    %3135 = vmatpush.bf16.msra.mxu0 %v2313
    %3136 = vmatpush.bf16.msra.mxu0 %v2305
    %3137 = vmatpush.bf16.msra.mxu0 %v2297
    %3138 = vmatpush.bf16.msra.mxu0 %v2289
    %3139 = vmatpush.bf16.msra.mxu0 %v2281
    %3140 = vmatpush.bf16.msra.mxu0 %v2273
    %3141 = vmatpush.bf16.msra.mxu0 %v2265
    %3142 = vmatmul.bf16.gmra.mxu0 %v1230
    %v3143 = vpop.f32.mrf.mxu0
    %v3144 = vadd.f32 0.0, %v3143
    %v3145 = vpop.f32.mrf.mxu0
    %3146 = vdwg.mxu0
    %3147 = vmatpush.bf16.msra.mxu0 %v2385
    %3148 = vmatpush.bf16.msra.mxu0 %v2377
    %3149 = vmatpush.bf16.msra.mxu0 %v2369
    %3150 = vmatpush.bf16.msra.mxu0 %v2361
    %3151 = vmatpush.bf16.msra.mxu0 %v2353
    %3152 = vmatpush.bf16.msra.mxu0 %v2345
    %3153 = vmatpush.bf16.msra.mxu0 %v2337
    %3154 = vmatpush.bf16.msra.mxu0 %v2329
    %3155 = vmatmul.bf16.gmra.mxu0 %v1231
    %v3156 = vpop.f32.mrf.mxu0
    %v3157 = vadd.f32 %v3144, %v3156
    %v3158 = vpop.f32.mrf.mxu0
    %3159 = vdwg.mxu0
    %3160 = vmatpush.bf16.msra.mxu0 %v2449
    %3161 = vmatpush.bf16.msra.mxu0 %v2441
    %3162 = vmatpush.bf16.msra.mxu0 %v2433
    %3163 = vmatpush.bf16.msra.mxu0 %v2425
    %3164 = vmatpush.bf16.msra.mxu0 %v2417
    %3165 = vmatpush.bf16.msra.mxu0 %v2409
    %3166 = vmatpush.bf16.msra.mxu0 %v2401
    %3167 = vmatpush.bf16.msra.mxu0 %v2393
    %3168 = vmatmul.bf16.gmra.mxu0 %v1232
    %v3169 = vpop.f32.mrf.mxu0
    %v3170 = vadd.f32 %v3157, %v3169
    %v3171 = vpop.f32.mrf.mxu0
    %3172 = vdwg.mxu0
    %3173 = vmatpush.bf16.msra.mxu0 %v2513
    %3174 = vmatpush.bf16.msra.mxu0 %v2505
    %3175 = vmatpush.bf16.msra.mxu0 %v2497
    %3176 = vmatpush.bf16.msra.mxu0 %v2489
    %3177 = vmatpush.bf16.msra.mxu0 %v2481
    %3178 = vmatpush.bf16.msra.mxu0 %v2473
    %3179 = vmatpush.bf16.msra.mxu0 %v2465
    %3180 = vmatpush.bf16.msra.mxu0 %v2457
    %3181 = vmatmul.bf16.gmra.mxu0 %v1233
    %v3182 = vpop.f32.mrf.mxu0
    %v3183 = vadd.f32 %v3170, %v3182
    %v3184 = vpop.f32.mrf.mxu0
    %3185 = vdwg.mxu0
    %v3186 = vsel %vm681, %v2819, 0.0
    %v3187 = vrot.slane %v3186, 4
    %v3188 = vadd.f32 %v3186, %v3187
    %v3189 = vrot.slane %v3188, 2
    %v3190 = vadd.f32 %v3188, %v3189
    %v3191 = vrot.slane %v3190, 1
    %v3192 = vadd.f32 %v3190, %v3191
    %v3193 = vsel %vm681, %v2871, 0.0
    %v3194 = vrot.slane %v3193, 4
    %v3195 = vadd.f32 %v3193, %v3194
    %v3196 = vrot.slane %v3195, 2
    %v3197 = vadd.f32 %v3195, %v3196
    %v3198 = vrot.slane %v3197, 1
    %v3199 = vadd.f32 %v3197, %v3198
    %v3200 = vsel %vm681, %v2923, 0.0
    %v3201 = vrot.slane %v3200, 4
    %v3202 = vadd.f32 %v3200, %v3201
    %v3203 = vrot.slane %v3202, 2
    %v3204 = vadd.f32 %v3202, %v3203
    %v3205 = vrot.slane %v3204, 1
    %v3206 = vadd.f32 %v3204, %v3205
    %v3207 = vsel %vm681, %v2975, 0.0
    %v3208 = vrot.slane %v3207, 4
    %v3209 = vadd.f32 %v3207, %v3208
    %v3210 = vrot.slane %v3209, 2
    %v3211 = vadd.f32 %v3209, %v3210
    %v3212 = vrot.slane %v3211, 1
    %v3213 = vadd.f32 %v3211, %v3212
    %v3214 = vsel %vm681, %v3027, 0.0
    %v3215 = vrot.slane %v3214, 4
    %v3216 = vadd.f32 %v3214, %v3215
    %v3217 = vrot.slane %v3216, 2
    %v3218 = vadd.f32 %v3216, %v3217
    %v3219 = vrot.slane %v3218, 1
    %v3220 = vadd.f32 %v3218, %v3219
    %v3221 = vsel %vm681, %v3079, 0.0
    %v3222 = vrot.slane %v3221, 4
    %v3223 = vadd.f32 %v3221, %v3222
    %v3224 = vrot.slane %v3223, 2
    %v3225 = vadd.f32 %v3223, %v3224
    %v3226 = vrot.slane %v3225, 1
    %v3227 = vadd.f32 %v3225, %v3226
    %v3228 = vsel %vm681, %v3131, 0.0
    %v3229 = vrot.slane %v3228, 4
    %v3230 = vadd.f32 %v3228, %v3229
    %v3231 = vrot.slane %v3230, 2
    %v3232 = vadd.f32 %v3230, %v3231
    %v3233 = vrot.slane %v3232, 1
    %v3234 = vadd.f32 %v3232, %v3233
    %v3235 = vsel %vm681, %v3183, 0.0
    %v3236 = vrot.slane %v3235, 4
    %v3237 = vadd.f32 %v3235, %v3236
    %v3238 = vrot.slane %v3237, 2
    %v3239 = vadd.f32 %v3237, %v3238
    %v3240 = vrot.slane %v3239, 1
    %v3241 = vadd.f32 %v3239, %v3240
    %v3242 = vmul.f32 %v2819, %v2819
    %v3243 = vmul.f32 %v2871, %v2871
    %v3244 = vmul.f32 %v2923, %v2923
    %v3245 = vmul.f32 %v2975, %v2975
    %v3246 = vmul.f32 %v3027, %v3027
    %v3247 = vmul.f32 %v3079, %v3079
    %v3248 = vmul.f32 %v3131, %v3131
    %v3249 = vmul.f32 %v3183, %v3183
    %v3250 = vsel %vm681, %v3242, 0.0
    %v3251 = vrot.slane %v3250, 4
    %v3252 = vadd.f32 %v3250, %v3251
    %v3253 = vrot.slane %v3252, 2
    %v3254 = vadd.f32 %v3252, %v3253
    %v3255 = vrot.slane %v3254, 1
    %v3256 = vadd.f32 %v3254, %v3255
    %v3257 = vsel %vm681, %v3243, 0.0
    %v3258 = vrot.slane %v3257, 4
    %v3259 = vadd.f32 %v3257, %v3258
    %v3260 = vrot.slane %v3259, 2
    %v3261 = vadd.f32 %v3259, %v3260
    %v3262 = vrot.slane %v3261, 1
    %v3263 = vadd.f32 %v3261, %v3262
    %v3264 = vsel %vm681, %v3244, 0.0
    %v3265 = vrot.slane %v3264, 4
    %v3266 = vadd.f32 %v3264, %v3265
    %v3267 = vrot.slane %v3266, 2
    %v3268 = vadd.f32 %v3266, %v3267
    %v3269 = vrot.slane %v3268, 1
    %v3270 = vadd.f32 %v3268, %v3269
    %v3271 = vsel %vm681, %v3245, 0.0
    %v3272 = vrot.slane %v3271, 4
    %v3273 = vadd.f32 %v3271, %v3272
    %v3274 = vrot.slane %v3273, 2
    %v3275 = vadd.f32 %v3273, %v3274
    %v3276 = vrot.slane %v3275, 1
    %v3277 = vadd.f32 %v3275, %v3276
    %v3278 = vsel %vm681, %v3246, 0.0
    %v3279 = vrot.slane %v3278, 4
    %v3280 = vadd.f32 %v3278, %v3279
    %v3281 = vrot.slane %v3280, 2
    %v3282 = vadd.f32 %v3280, %v3281
    %v3283 = vrot.slane %v3282, 1
    %v3284 = vadd.f32 %v3282, %v3283
    %v3285 = vsel %vm681, %v3247, 0.0
    %v3286 = vrot.slane %v3285, 4
    %v3287 = vadd.f32 %v3285, %v3286
    %v3288 = vrot.slane %v3287, 2
    %v3289 = vadd.f32 %v3287, %v3288
    %v3290 = vrot.slane %v3289, 1
    %v3291 = vadd.f32 %v3289, %v3290
    %v3292 = vsel %vm681, %v3248, 0.0
    %v3293 = vrot.slane %v3292, 4
    %v3294 = vadd.f32 %v3292, %v3293
    %v3295 = vrot.slane %v3294, 2
    %v3296 = vadd.f32 %v3294, %v3295
    %v3297 = vrot.slane %v3296, 1
    %v3298 = vadd.f32 %v3296, %v3297
    %v3299 = vsel %vm681, %v3249, 0.0
    %v3300 = vrot.slane %v3299, 4
    %v3301 = vadd.f32 %v3299, %v3300
    %v3302 = vrot.slane %v3301, 2
    %v3303 = vadd.f32 %v3301, %v3302
    %v3304 = vrot.slane %v3303, 1
    %v3305 = vadd.f32 %v3303, %v3304
    %v3306 = vld [vmem:[%s11] sm:$0xff]
    %v3307 = vld [vmem:[%s11 + $0x8] sm:$0xff]
    %v3308 = vld [vmem:[%s11 + $0x10] sm:$0xff]
    %v3309 = vld [vmem:[%s11 + $0x18] sm:$0xff]
    %v3310 = vld [vmem:[%s11 + $0x20] sm:$0xff]
    %v3311 = vld [vmem:[%s11 + $0x28] sm:$0xff]
    %v3312 = vld [vmem:[%s11 + $0x30] sm:$0xff]
    %v3313 = vld [vmem:[%s11 + $0x38] sm:$0xff]
    %v3314 = vld [vmem:[%s11 + $0x40] sm:$0xff]
    %v3315 = vld [vmem:[%s11 + $0x48] sm:$0xff]
    %v3316 = vld [vmem:[%s11 + $0x50] sm:$0xff]
    %v3317 = vld [vmem:[%s11 + $0x58] sm:$0xff]
    %v3318 = vld [vmem:[%s11 + $0x60] sm:$0xff]
    %v3319 = vld [vmem:[%s11 + $0x68] sm:$0xff]
    %v3320 = vld [vmem:[%s11 + $0x70] sm:$0xff]
    %v3321 = vld [vmem:[%s11 + $0x78] sm:$0xff]
    %v3322 = vld [vmem:[%s11 + $0x80] sm:$0xff]
    %v3323 = vld [vmem:[%s11 + $0x88] sm:$0xff]
    %v3324 = vld [vmem:[%s11 + $0x90] sm:$0xff]
    %v3325 = vld [vmem:[%s11 + $0x98] sm:$0xff]
    %v3326 = vld [vmem:[%s11 + $0xa0] sm:$0xff]
    %v3327 = vld [vmem:[%s11 + $0xa8] sm:$0xff]
    %v3328 = vld [vmem:[%s11 + $0xb0] sm:$0xff]
    %v3329 = vld [vmem:[%s11 + $0xb8] sm:$0xff]
    %v3330 = vld [vmem:[%s11 + $0xc0] sm:$0xff]
    %v3331 = vld [vmem:[%s11 + $0xc8] sm:$0xff]
    %v3332 = vld [vmem:[%s11 + $0xd0] sm:$0xff]
    %v3333 = vld [vmem:[%s11 + $0xd8] sm:$0xff]
    %v3334 = vld [vmem:[%s11 + $0xe0] sm:$0xff]
    %v3335 = vld [vmem:[%s11 + $0xe8] sm:$0xff]
    %v3336 = vld [vmem:[%s11 + $0xf0] sm:$0xff]
    %v3337 = vld [vmem:[%s11 + $0xf8] sm:$0xff]
    %v3338 = vld [vmem:[%s11 + $0x100] sm:$0xff]
    %v3339 = vld [vmem:[%s11 + $0x108] sm:$0xff]
    %v3340 = vld [vmem:[%s11 + $0x110] sm:$0xff]
    %v3341 = vld [vmem:[%s11 + $0x118] sm:$0xff]
    %v3342 = vld [vmem:[%s11 + $0x120] sm:$0xff]
    %v3343 = vld [vmem:[%s11 + $0x128] sm:$0xff]
    %v3344 = vld [vmem:[%s11 + $0x130] sm:$0xff]
    %v3345 = vld [vmem:[%s11 + $0x138] sm:$0xff]
    %v3346 = vld [vmem:[%s11 + $0x140] sm:$0xff]
    %v3347 = vld [vmem:[%s11 + $0x148] sm:$0xff]
    %v3348 = vld [vmem:[%s11 + $0x150] sm:$0xff]
    %v3349 = vld [vmem:[%s11 + $0x158] sm:$0xff]
    %v3350 = vld [vmem:[%s11 + $0x160] sm:$0xff]
    %v3351 = vld [vmem:[%s11 + $0x168] sm:$0xff]
    %v3352 = vld [vmem:[%s11 + $0x170] sm:$0xff]
    %v3353 = vld [vmem:[%s11 + $0x178] sm:$0xff]
    %v3354 = vld [vmem:[%s11 + $0x180] sm:$0xff]
    %v3355 = vld [vmem:[%s11 + $0x188] sm:$0xff]
    %v3356 = vld [vmem:[%s11 + $0x190] sm:$0xff]
    %v3357 = vld [vmem:[%s11 + $0x198] sm:$0xff]
    %v3358 = vld [vmem:[%s11 + $0x1a0] sm:$0xff]
    %v3359 = vld [vmem:[%s11 + $0x1a8] sm:$0xff]
    %v3360 = vld [vmem:[%s11 + $0x1b0] sm:$0xff]
    %v3361 = vld [vmem:[%s11 + $0x1b8] sm:$0xff]
    %v3362 = vld [vmem:[%s11 + $0x1c0] sm:$0xff]
    %v3363 = vld [vmem:[%s11 + $0x1c8] sm:$0xff]
    %v3364 = vld [vmem:[%s11 + $0x1d0] sm:$0xff]
    %v3365 = vld [vmem:[%s11 + $0x1d8] sm:$0xff]
    %v3366 = vld [vmem:[%s11 + $0x1e0] sm:$0xff]
    %v3367 = vld [vmem:[%s11 + $0x1e8] sm:$0xff]
    %v3368 = vld [vmem:[%s11 + $0x1f0] sm:$0xff]
    %v3369 = vld [vmem:[%s11 + $0x1f8] sm:$0xff]
    %v3370 = vld [vmem:[%s11 + $0x200] sm:$0xff]
    %v3371 = vld [vmem:[%s11 + $0x208] sm:$0xff]
    %v3372 = vld [vmem:[%s11 + $0x210] sm:$0xff]
    %v3373 = vld [vmem:[%s11 + $0x218] sm:$0xff]
    %v3374 = vld [vmem:[%s11 + $0x220] sm:$0xff]
    %v3375 = vld [vmem:[%s11 + $0x228] sm:$0xff]
    %v3376 = vld [vmem:[%s11 + $0x230] sm:$0xff]
    %v3377 = vld [vmem:[%s11 + $0x238] sm:$0xff]
    %v3378 = vld [vmem:[%s11 + $0x240] sm:$0xff]
    %v3379 = vld [vmem:[%s11 + $0x248] sm:$0xff]
    %v3380 = vld [vmem:[%s11 + $0x250] sm:$0xff]
    %v3381 = vld [vmem:[%s11 + $0x258] sm:$0xff]
    %v3382 = vld [vmem:[%s11 + $0x260] sm:$0xff]
    %v3383 = vld [vmem:[%s11 + $0x268] sm:$0xff]
    %v3384 = vld [vmem:[%s11 + $0x270] sm:$0xff]
    %v3385 = vld [vmem:[%s11 + $0x278] sm:$0xff]
    %v3386 = vld [vmem:[%s11 + $0x280] sm:$0xff]
    %v3387 = vld [vmem:[%s11 + $0x288] sm:$0xff]
    %v3388 = vld [vmem:[%s11 + $0x290] sm:$0xff]
    %v3389 = vld [vmem:[%s11 + $0x298] sm:$0xff]
    %v3390 = vld [vmem:[%s11 + $0x2a0] sm:$0xff]
    %v3391 = vld [vmem:[%s11 + $0x2a8] sm:$0xff]
    %v3392 = vld [vmem:[%s11 + $0x2b0] sm:$0xff]
    %v3393 = vld [vmem:[%s11 + $0x2b8] sm:$0xff]
    %v3394 = vld [vmem:[%s11 + $0x2c0] sm:$0xff]
    %v3395 = vld [vmem:[%s11 + $0x2c8] sm:$0xff]
    %v3396 = vld [vmem:[%s11 + $0x2d0] sm:$0xff]
    %v3397 = vld [vmem:[%s11 + $0x2d8] sm:$0xff]
    %v3398 = vld [vmem:[%s11 + $0x2e0] sm:$0xff]
    %v3399 = vld [vmem:[%s11 + $0x2e8] sm:$0xff]
    %v3400 = vld [vmem:[%s11 + $0x2f0] sm:$0xff]
    %v3401 = vld [vmem:[%s11 + $0x2f8] sm:$0xff]
    %v3402 = vld [vmem:[%s11 + $0x300] sm:$0xff]
    %v3403 = vld [vmem:[%s11 + $0x308] sm:$0xff]
    %v3404 = vld [vmem:[%s11 + $0x310] sm:$0xff]
    %v3405 = vld [vmem:[%s11 + $0x318] sm:$0xff]
    %v3406 = vld [vmem:[%s11 + $0x320] sm:$0xff]
    %v3407 = vld [vmem:[%s11 + $0x328] sm:$0xff]
    %v3408 = vld [vmem:[%s11 + $0x330] sm:$0xff]
    %v3409 = vld [vmem:[%s11 + $0x338] sm:$0xff]
    %v3410 = vld [vmem:[%s11 + $0x340] sm:$0xff]
    %v3411 = vld [vmem:[%s11 + $0x348] sm:$0xff]
    %v3412 = vld [vmem:[%s11 + $0x350] sm:$0xff]
    %v3413 = vld [vmem:[%s11 + $0x358] sm:$0xff]
    %v3414 = vld [vmem:[%s11 + $0x360] sm:$0xff]
    %v3415 = vld [vmem:[%s11 + $0x368] sm:$0xff]
    %v3416 = vld [vmem:[%s11 + $0x370] sm:$0xff]
    %v3417 = vld [vmem:[%s11 + $0x378] sm:$0xff]
    %v3418 = vld [vmem:[%s11 + $0x380] sm:$0xff]
    %v3419 = vld [vmem:[%s11 + $0x388] sm:$0xff]
    %v3420 = vld [vmem:[%s11 + $0x390] sm:$0xff]
    %v3421 = vld [vmem:[%s11 + $0x398] sm:$0xff]
    %v3422 = vld [vmem:[%s11 + $0x3a0] sm:$0xff]
    %v3423 = vld [vmem:[%s11 + $0x3a8] sm:$0xff]
    %v3424 = vld [vmem:[%s11 + $0x3b0] sm:$0xff]
    %v3425 = vld [vmem:[%s11 + $0x3b8] sm:$0xff]
    %v3426 = vld [vmem:[%s11 + $0x3c0] sm:$0xff]
    %v3427 = vld [vmem:[%s11 + $0x3c8] sm:$0xff]
    %v3428 = vld [vmem:[%s11 + $0x3d0] sm:$0xff]
    %v3429 = vld [vmem:[%s11 + $0x3d8] sm:$0xff]
    %v3430 = vld [vmem:[%s11 + $0x3e0] sm:$0xff]
    %v3431 = vld [vmem:[%s11 + $0x3e8] sm:$0xff]
    %v3432 = vld [vmem:[%s11 + $0x3f0] sm:$0xff]
    %v3433 = vld [vmem:[%s11 + $0x3f8] sm:$0xff]
    %3434 = vmatpush.msra.mxu0 %v3321
    %3435 = vmatpush.msra.mxu0 %v3320
    %3436 = vmatpush.msra.mxu0 %v3319
    %3437 = vmatpush.msra.mxu0 %v3318
    %3438 = vmatpush.msra.mxu0 %v3317
    %3439 = vmatpush.msra.mxu0 %v3316
    %3440 = vmatpush.msra.mxu0 %v3315
    %3441 = vmatpush.msra.mxu0 %v3314
    %3442 = vmatpush.msra.mxu0 %v3313
    %3443 = vmatpush.msra.mxu0 %v3312
    %3444 = vmatpush.msra.mxu0 %v3311
    %3445 = vmatpush.msra.mxu0 %v3310
    %3446 = vmatpush.msra.mxu0 %v3309
    %3447 = vmatpush.msra.mxu0 %v3308
    %3448 = vmatpush.msra.mxu0 %v3307
    %3449 = vmatpush.msra.mxu0 %v3306
    %3450 = vmatmul.f32.gmra.mxu0 %v3192
    %v3451 = vpop.f32.mrf.mxu0
    %v3452 = vadd.f32 0.0, %v3451
    %3453 = vdwg.mxu0
    %3454 = vmatpush.msra.mxu0 %v3337
    %3455 = vmatpush.msra.mxu0 %v3336
    %3456 = vmatpush.msra.mxu0 %v3335
    %3457 = vmatpush.msra.mxu0 %v3334
    %3458 = vmatpush.msra.mxu0 %v3333
    %3459 = vmatpush.msra.mxu0 %v3332
    %3460 = vmatpush.msra.mxu0 %v3331
    %3461 = vmatpush.msra.mxu0 %v3330
    %3462 = vmatpush.msra.mxu0 %v3329
    %3463 = vmatpush.msra.mxu0 %v3328
    %3464 = vmatpush.msra.mxu0 %v3327
    %3465 = vmatpush.msra.mxu0 %v3326
    %3466 = vmatpush.msra.mxu0 %v3325
    %3467 = vmatpush.msra.mxu0 %v3324
    %3468 = vmatpush.msra.mxu0 %v3323
    %3469 = vmatpush.msra.mxu0 %v3322
    %3470 = vmatmul.f32.gmra.mxu0 %v3199
    %v3471 = vpop.f32.mrf.mxu0
    %v3472 = vadd.f32 %v3452, %v3471
    %3473 = vdwg.mxu0
    %3474 = vmatpush.msra.mxu0 %v3353
    %3475 = vmatpush.msra.mxu0 %v3352
    %3476 = vmatpush.msra.mxu0 %v3351
    %3477 = vmatpush.msra.mxu0 %v3350
    %3478 = vmatpush.msra.mxu0 %v3349
    %3479 = vmatpush.msra.mxu0 %v3348
    %3480 = vmatpush.msra.mxu0 %v3347
    %3481 = vmatpush.msra.mxu0 %v3346
    %3482 = vmatpush.msra.mxu0 %v3345
    %3483 = vmatpush.msra.mxu0 %v3344
    %3484 = vmatpush.msra.mxu0 %v3343
    %3485 = vmatpush.msra.mxu0 %v3342
    %3486 = vmatpush.msra.mxu0 %v3341
    %3487 = vmatpush.msra.mxu0 %v3340
    %3488 = vmatpush.msra.mxu0 %v3339
    %3489 = vmatpush.msra.mxu0 %v3338
    %3490 = vmatmul.f32.gmra.mxu0 %v3206
    %v3491 = vpop.f32.mrf.mxu0
    %v3492 = vadd.f32 %v3472, %v3491
    %3493 = vdwg.mxu0
    %3494 = vmatpush.msra.mxu0 %v3369
    %3495 = vmatpush.msra.mxu0 %v3368
    %3496 = vmatpush.msra.mxu0 %v3367
    %3497 = vmatpush.msra.mxu0 %v3366
    %3498 = vmatpush.msra.mxu0 %v3365
    %3499 = vmatpush.msra.mxu0 %v3364
    %3500 = vmatpush.msra.mxu0 %v3363
    %3501 = vmatpush.msra.mxu0 %v3362
    %3502 = vmatpush.msra.mxu0 %v3361
    %3503 = vmatpush.msra.mxu0 %v3360
    %3504 = vmatpush.msra.mxu0 %v3359
    %3505 = vmatpush.msra.mxu0 %v3358
    %3506 = vmatpush.msra.mxu0 %v3357
    %3507 = vmatpush.msra.mxu0 %v3356
    %3508 = vmatpush.msra.mxu0 %v3355
    %3509 = vmatpush.msra.mxu0 %v3354
    %3510 = vmatmul.f32.gmra.mxu0 %v3213
    %v3511 = vpop.f32.mrf.mxu0
    %v3512 = vadd.f32 %v3492, %v3511
    %3513 = vdwg.mxu0
    %3514 = vmatpush.msra.mxu0 %v3385
    %3515 = vmatpush.msra.mxu0 %v3384
    %3516 = vmatpush.msra.mxu0 %v3383
    %3517 = vmatpush.msra.mxu0 %v3382
    %3518 = vmatpush.msra.mxu0 %v3381
    %3519 = vmatpush.msra.mxu0 %v3380
    %3520 = vmatpush.msra.mxu0 %v3379
    %3521 = vmatpush.msra.mxu0 %v3378
    %3522 = vmatpush.msra.mxu0 %v3377
    %3523 = vmatpush.msra.mxu0 %v3376
    %3524 = vmatpush.msra.mxu0 %v3375
    %3525 = vmatpush.msra.mxu0 %v3374
    %3526 = vmatpush.msra.mxu0 %v3373
    %3527 = vmatpush.msra.mxu0 %v3372
    %3528 = vmatpush.msra.mxu0 %v3371
    %3529 = vmatpush.msra.mxu0 %v3370
    %3530 = vmatmul.f32.gmra.mxu0 %v3220
    %v3531 = vpop.f32.mrf.mxu0
    %v3532 = vadd.f32 %v3512, %v3531
    %3533 = vdwg.mxu0
    %3534 = vmatpush.msra.mxu0 %v3401
    %3535 = vmatpush.msra.mxu0 %v3400
    %3536 = vmatpush.msra.mxu0 %v3399
    %3537 = vmatpush.msra.mxu0 %v3398
    %3538 = vmatpush.msra.mxu0 %v3397
    %3539 = vmatpush.msra.mxu0 %v3396
    %3540 = vmatpush.msra.mxu0 %v3395
    %3541 = vmatpush.msra.mxu0 %v3394
    %3542 = vmatpush.msra.mxu0 %v3393
    %3543 = vmatpush.msra.mxu0 %v3392
    %3544 = vmatpush.msra.mxu0 %v3391
    %3545 = vmatpush.msra.mxu0 %v3390
    %3546 = vmatpush.msra.mxu0 %v3389
    %3547 = vmatpush.msra.mxu0 %v3388
    %3548 = vmatpush.msra.mxu0 %v3387
    %3549 = vmatpush.msra.mxu0 %v3386
    %3550 = vmatmul.f32.gmra.mxu0 %v3227
    %v3551 = vpop.f32.mrf.mxu0
    %v3552 = vadd.f32 %v3532, %v3551
    %3553 = vdwg.mxu0
    %3554 = vmatpush.msra.mxu0 %v3417
    %3555 = vmatpush.msra.mxu0 %v3416
    %3556 = vmatpush.msra.mxu0 %v3415
    %3557 = vmatpush.msra.mxu0 %v3414
    %3558 = vmatpush.msra.mxu0 %v3413
    %3559 = vmatpush.msra.mxu0 %v3412
    %3560 = vmatpush.msra.mxu0 %v3411
    %3561 = vmatpush.msra.mxu0 %v3410
    %3562 = vmatpush.msra.mxu0 %v3409
    %3563 = vmatpush.msra.mxu0 %v3408
    %3564 = vmatpush.msra.mxu0 %v3407
    %3565 = vmatpush.msra.mxu0 %v3406
    %3566 = vmatpush.msra.mxu0 %v3405
    %3567 = vmatpush.msra.mxu0 %v3404
    %3568 = vmatpush.msra.mxu0 %v3403
    %3569 = vmatpush.msra.mxu0 %v3402
    %3570 = vmatmul.f32.gmra.mxu0 %v3234
    %v3571 = vpop.f32.mrf.mxu0
    %v3572 = vadd.f32 %v3552, %v3571
    %3573 = vdwg.mxu0
    %3574 = vmatpush.msra.mxu0 %v3433
    %3575 = vmatpush.msra.mxu0 %v3432
    %3576 = vmatpush.msra.mxu0 %v3431
    %3577 = vmatpush.msra.mxu0 %v3430
    %3578 = vmatpush.msra.mxu0 %v3429
    %3579 = vmatpush.msra.mxu0 %v3428
    %3580 = vmatpush.msra.mxu0 %v3427
    %3581 = vmatpush.msra.mxu0 %v3426
    %3582 = vmatpush.msra.mxu0 %v3425
    %3583 = vmatpush.msra.mxu0 %v3424
    %3584 = vmatpush.msra.mxu0 %v3423
    %3585 = vmatpush.msra.mxu0 %v3422
    %3586 = vmatpush.msra.mxu0 %v3421
    %3587 = vmatpush.msra.mxu0 %v3420
    %3588 = vmatpush.msra.mxu0 %v3419
    %3589 = vmatpush.msra.mxu0 %v3418
    %3590 = vmatmul.f32.gmra.mxu0 %v3241
    %v3591 = vpop.f32.mrf.mxu0
    %v3592 = vadd.f32 %v3572, %v3591
    %3593 = vdwg.mxu0
    %v3594 = vmul.f32 %v3592, 0.03125
    %3595 = vmatpush.msra.mxu0 %v3321
    %3596 = vmatpush.msra.mxu0 %v3320
    %3597 = vmatpush.msra.mxu0 %v3319
    %3598 = vmatpush.msra.mxu0 %v3318
    %3599 = vmatpush.msra.mxu0 %v3317
    %3600 = vmatpush.msra.mxu0 %v3316
    %3601 = vmatpush.msra.mxu0 %v3315
    %3602 = vmatpush.msra.mxu0 %v3314
    %3603 = vmatpush.msra.mxu0 %v3313
    %3604 = vmatpush.msra.mxu0 %v3312
    %3605 = vmatpush.msra.mxu0 %v3311
    %3606 = vmatpush.msra.mxu0 %v3310
    %3607 = vmatpush.msra.mxu0 %v3309
    %3608 = vmatpush.msra.mxu0 %v3308
    %3609 = vmatpush.msra.mxu0 %v3307
    %3610 = vmatpush.msra.mxu0 %v3306
    %3611 = vmatmul.f32.gmra.mxu0 %v3256
    %v3612 = vpop.f32.mrf.mxu0
    %v3613 = vadd.f32 0.0, %v3612
    %3614 = vdwg.mxu0
    %3615 = vmatpush.msra.mxu0 %v3337
    %3616 = vmatpush.msra.mxu0 %v3336
    %3617 = vmatpush.msra.mxu0 %v3335
    %3618 = vmatpush.msra.mxu0 %v3334
    %3619 = vmatpush.msra.mxu0 %v3333
    %3620 = vmatpush.msra.mxu0 %v3332
    %3621 = vmatpush.msra.mxu0 %v3331
    %3622 = vmatpush.msra.mxu0 %v3330
    %3623 = vmatpush.msra.mxu0 %v3329
    %3624 = vmatpush.msra.mxu0 %v3328
    %3625 = vmatpush.msra.mxu0 %v3327
    %3626 = vmatpush.msra.mxu0 %v3326
    %3627 = vmatpush.msra.mxu0 %v3325
    %3628 = vmatpush.msra.mxu0 %v3324
    %3629 = vmatpush.msra.mxu0 %v3323
    %3630 = vmatpush.msra.mxu0 %v3322
    %3631 = vmatmul.f32.gmra.mxu0 %v3263
    %v3632 = vpop.f32.mrf.mxu0
    %v3633 = vadd.f32 %v3613, %v3632
    %3634 = vdwg.mxu0
    %3635 = vmatpush.msra.mxu0 %v3353
    %3636 = vmatpush.msra.mxu0 %v3352
    %3637 = vmatpush.msra.mxu0 %v3351
    %3638 = vmatpush.msra.mxu0 %v3350
    %3639 = vmatpush.msra.mxu0 %v3349
    %3640 = vmatpush.msra.mxu0 %v3348
    %3641 = vmatpush.msra.mxu0 %v3347
    %3642 = vmatpush.msra.mxu0 %v3346
    %3643 = vmatpush.msra.mxu0 %v3345
    %3644 = vmatpush.msra.mxu0 %v3344
    %3645 = vmatpush.msra.mxu0 %v3343
    %3646 = vmatpush.msra.mxu0 %v3342
    %3647 = vmatpush.msra.mxu0 %v3341
    %3648 = vmatpush.msra.mxu0 %v3340
    %3649 = vmatpush.msra.mxu0 %v3339
    %3650 = vmatpush.msra.mxu0 %v3338
    %3651 = vmatmul.f32.gmra.mxu0 %v3270
    %v3652 = vpop.f32.mrf.mxu0
    %v3653 = vadd.f32 %v3633, %v3652
    %3654 = vdwg.mxu0
    %3655 = vmatpush.msra.mxu0 %v3369
    %3656 = vmatpush.msra.mxu0 %v3368
    %3657 = vmatpush.msra.mxu0 %v3367
    %3658 = vmatpush.msra.mxu0 %v3366
    %3659 = vmatpush.msra.mxu0 %v3365
    %3660 = vmatpush.msra.mxu0 %v3364
    %3661 = vmatpush.msra.mxu0 %v3363
    %3662 = vmatpush.msra.mxu0 %v3362
    %3663 = vmatpush.msra.mxu0 %v3361
    %3664 = vmatpush.msra.mxu0 %v3360
    %3665 = vmatpush.msra.mxu0 %v3359
    %3666 = vmatpush.msra.mxu0 %v3358
    %3667 = vmatpush.msra.mxu0 %v3357
    %3668 = vmatpush.msra.mxu0 %v3356
    %3669 = vmatpush.msra.mxu0 %v3355
    %3670 = vmatpush.msra.mxu0 %v3354
    %3671 = vmatmul.f32.gmra.mxu0 %v3277
    %v3672 = vpop.f32.mrf.mxu0
    %v3673 = vadd.f32 %v3653, %v3672
    %3674 = vdwg.mxu0
    %3675 = vmatpush.msra.mxu0 %v3385
    %3676 = vmatpush.msra.mxu0 %v3384
    %3677 = vmatpush.msra.mxu0 %v3383
    %3678 = vmatpush.msra.mxu0 %v3382
    %3679 = vmatpush.msra.mxu0 %v3381
    %3680 = vmatpush.msra.mxu0 %v3380
    %3681 = vmatpush.msra.mxu0 %v3379
    %3682 = vmatpush.msra.mxu0 %v3378
    %3683 = vmatpush.msra.mxu0 %v3377
    %3684 = vmatpush.msra.mxu0 %v3376
    %3685 = vmatpush.msra.mxu0 %v3375
    %3686 = vmatpush.msra.mxu0 %v3374
    %3687 = vmatpush.msra.mxu0 %v3373
    %3688 = vmatpush.msra.mxu0 %v3372
    %3689 = vmatpush.msra.mxu0 %v3371
    %3690 = vmatpush.msra.mxu0 %v3370
    %3691 = vmatmul.f32.gmra.mxu0 %v3284
    %v3692 = vpop.f32.mrf.mxu0
    %v3693 = vadd.f32 %v3673, %v3692
    %3694 = vdwg.mxu0
    %3695 = vmatpush.msra.mxu0 %v3401
    %3696 = vmatpush.msra.mxu0 %v3400
    %3697 = vmatpush.msra.mxu0 %v3399
    %3698 = vmatpush.msra.mxu0 %v3398
    %3699 = vmatpush.msra.mxu0 %v3397
    %3700 = vmatpush.msra.mxu0 %v3396
    %3701 = vmatpush.msra.mxu0 %v3395
    %3702 = vmatpush.msra.mxu0 %v3394
    %3703 = vmatpush.msra.mxu0 %v3393
    %3704 = vmatpush.msra.mxu0 %v3392
    %3705 = vmatpush.msra.mxu0 %v3391
    %3706 = vmatpush.msra.mxu0 %v3390
    %3707 = vmatpush.msra.mxu0 %v3389
    %3708 = vmatpush.msra.mxu0 %v3388
    %3709 = vmatpush.msra.mxu0 %v3387
    %3710 = vmatpush.msra.mxu0 %v3386
    %3711 = vmatmul.f32.gmra.mxu0 %v3291
    %v3712 = vpop.f32.mrf.mxu0
    %v3713 = vadd.f32 %v3693, %v3712
    %3714 = vdwg.mxu0
    %3715 = vmatpush.msra.mxu0 %v3417
    %3716 = vmatpush.msra.mxu0 %v3416
    %3717 = vmatpush.msra.mxu0 %v3415
    %3718 = vmatpush.msra.mxu0 %v3414
    %3719 = vmatpush.msra.mxu0 %v3413
    %3720 = vmatpush.msra.mxu0 %v3412
    %3721 = vmatpush.msra.mxu0 %v3411
    %3722 = vmatpush.msra.mxu0 %v3410
    %3723 = vmatpush.msra.mxu0 %v3409
    %3724 = vmatpush.msra.mxu0 %v3408
    %3725 = vmatpush.msra.mxu0 %v3407
    %3726 = vmatpush.msra.mxu0 %v3406
    %3727 = vmatpush.msra.mxu0 %v3405
    %3728 = vmatpush.msra.mxu0 %v3404
    %3729 = vmatpush.msra.mxu0 %v3403
    %3730 = vmatpush.msra.mxu0 %v3402
    %3731 = vmatmul.f32.gmra.mxu0 %v3298
    %v3732 = vpop.f32.mrf.mxu0
    %v3733 = vadd.f32 %v3713, %v3732
    %3734 = vdwg.mxu0
    %3735 = vmatpush.msra.mxu0 %v3433
    %3736 = vmatpush.msra.mxu0 %v3432
    %3737 = vmatpush.msra.mxu0 %v3431
    %3738 = vmatpush.msra.mxu0 %v3430
    %3739 = vmatpush.msra.mxu0 %v3429
    %3740 = vmatpush.msra.mxu0 %v3428
    %3741 = vmatpush.msra.mxu0 %v3427
    %3742 = vmatpush.msra.mxu0 %v3426
    %3743 = vmatpush.msra.mxu0 %v3425
    %3744 = vmatpush.msra.mxu0 %v3424
    %3745 = vmatpush.msra.mxu0 %v3423
    %3746 = vmatpush.msra.mxu0 %v3422
    %3747 = vmatpush.msra.mxu0 %v3421
    %3748 = vmatpush.msra.mxu0 %v3420
    %3749 = vmatpush.msra.mxu0 %v3419
    %3750 = vmatpush.msra.mxu0 %v3418
    %3751 = vmatmul.f32.gmra.mxu0 %v3305
    %v3752 = vpop.f32.mrf.mxu0
    %v3753 = vadd.f32 %v3733, %v3752
    %3754 = vdwg.mxu0
    %v3755 = vmul.f32 %v3753, 0.03125
    %v3756 = vmul.f32 %v3594, %v3594
    %v3757 = vsub.f32 %v3755, %v3756
    %v3758 = vld [vmem:[%s9] sm:$0x1]
    %v3759 = vadd.f32 %v3757, 1e-05
    %v3760 = vrsqrt.pop %v3759
    %v3761 = vmul.f32 %v3760, %v3759
    %v3762 = vmul.f32 %v3761, %v3760
    %v3763 = vmul.f32 0.5, %v3762
    %v3764 = vsub.f32 1.5, %v3763
    %v3765 = vmul.f32 %v3760, %v3764
    %vm3766 = vweird.f32 %v3759
    %vm3767 = vweird.f32 %v3760
    %vm3768 = vmor %vm3766, %vm3767
    %v3769 = vsel %vm3768, %v3760, %v3765
    %v3770 = vmul.f32 %v3758, %v3769
    %v3771 = vld [vmem:[%s10] sm:$0x1]
    %v3772 = vmul.f32 %v3594, %v3770
    %v3773 = vsub.f32 %v3771, %v3772
    %v3774 = vld [vmem:[#allocation9] sm:$0xff]
    %v3775 = vld [vmem:[#allocation9 + $0x8] sm:$0xff]
    %v3776 = vld [vmem:[#allocation9 + $0x10] sm:$0xff]
    %v3777 = vld [vmem:[#allocation9 + $0x18] sm:$0xff]
    %v3778 = vld [vmem:[#allocation9 + $0x20] sm:$0xff]
    %v3779 = vld [vmem:[#allocation9 + $0x28] sm:$0xff]
    %v3780 = vld [vmem:[#allocation9 + $0x30] sm:$0xff]
    %v3781 = vld [vmem:[#allocation9 + $0x38] sm:$0xff]
    %v3782 = vld [vmem:[#allocation9 + $0x40] sm:$0xff]
    %v3783 = vld [vmem:[#allocation9 + $0x48] sm:$0xff]
    %v3784 = vld [vmem:[#allocation9 + $0x50] sm:$0xff]
    %v3785 = vld [vmem:[#allocation9 + $0x58] sm:$0xff]
    %v3786 = vld [vmem:[#allocation9 + $0x60] sm:$0xff]
    %v3787 = vld [vmem:[#allocation9 + $0x68] sm:$0xff]
    %v3788 = vld [vmem:[#allocation9 + $0x70] sm:$0xff]
    %v3789 = vld [vmem:[#allocation9 + $0x78] sm:$0xff]
    %v3790 = vld [vmem:[#allocation9 + $0x80] sm:$0xff]
    %v3791 = vld [vmem:[#allocation9 + $0x88] sm:$0xff]
    %v3792 = vld [vmem:[#allocation9 + $0x90] sm:$0xff]
    %v3793 = vld [vmem:[#allocation9 + $0x98] sm:$0xff]
    %v3794 = vld [vmem:[#allocation9 + $0xa0] sm:$0xff]
    %v3795 = vld [vmem:[#allocation9 + $0xa8] sm:$0xff]
    %v3796 = vld [vmem:[#allocation9 + $0xb0] sm:$0xff]
    %v3797 = vld [vmem:[#allocation9 + $0xb8] sm:$0xff]
    %v3798 = vld [vmem:[#allocation9 + $0xc0] sm:$0xff]
    %v3799 = vld [vmem:[#allocation9 + $0xc8] sm:$0xff]
    %v3800 = vld [vmem:[#allocation9 + $0xd0] sm:$0xff]
    %v3801 = vld [vmem:[#allocation9 + $0xd8] sm:$0xff]
    %v3802 = vld [vmem:[#allocation9 + $0xe0] sm:$0xff]
    %v3803 = vld [vmem:[#allocation9 + $0xe8] sm:$0xff]
    %v3804 = vld [vmem:[#allocation9 + $0xf0] sm:$0xff]
    %v3805 = vld [vmem:[#allocation9 + $0xf8] sm:$0xff]
    %v3806 = vld [vmem:[#allocation9 + $0x100] sm:$0xff]
    %v3807 = vld [vmem:[#allocation9 + $0x108] sm:$0xff]
    %v3808 = vld [vmem:[#allocation9 + $0x110] sm:$0xff]
    %v3809 = vld [vmem:[#allocation9 + $0x118] sm:$0xff]
    %v3810 = vld [vmem:[#allocation9 + $0x120] sm:$0xff]
    %v3811 = vld [vmem:[#allocation9 + $0x128] sm:$0xff]
    %v3812 = vld [vmem:[#allocation9 + $0x130] sm:$0xff]
    %v3813 = vld [vmem:[#allocation9 + $0x138] sm:$0xff]
    %v3814 = vld [vmem:[#allocation9 + $0x140] sm:$0xff]
    %v3815 = vld [vmem:[#allocation9 + $0x148] sm:$0xff]
    %v3816 = vld [vmem:[#allocation9 + $0x150] sm:$0xff]
    %v3817 = vld [vmem:[#allocation9 + $0x158] sm:$0xff]
    %v3818 = vld [vmem:[#allocation9 + $0x160] sm:$0xff]
    %v3819 = vld [vmem:[#allocation9 + $0x168] sm:$0xff]
    %v3820 = vld [vmem:[#allocation9 + $0x170] sm:$0xff]
    %v3821 = vld [vmem:[#allocation9 + $0x178] sm:$0xff]
    %v3822 = vld [vmem:[#allocation9 + $0x180] sm:$0xff]
    %v3823 = vld [vmem:[#allocation9 + $0x188] sm:$0xff]
    %v3824 = vld [vmem:[#allocation9 + $0x190] sm:$0xff]
    %v3825 = vld [vmem:[#allocation9 + $0x198] sm:$0xff]
    %v3826 = vld [vmem:[#allocation9 + $0x1a0] sm:$0xff]
    %v3827 = vld [vmem:[#allocation9 + $0x1a8] sm:$0xff]
    %v3828 = vld [vmem:[#allocation9 + $0x1b0] sm:$0xff]
    %v3829 = vld [vmem:[#allocation9 + $0x1b8] sm:$0xff]
    %v3830 = vld [vmem:[#allocation9 + $0x1c0] sm:$0xff]
    %v3831 = vld [vmem:[#allocation9 + $0x1c8] sm:$0xff]
    %v3832 = vld [vmem:[#allocation9 + $0x1d0] sm:$0xff]
    %v3833 = vld [vmem:[#allocation9 + $0x1d8] sm:$0xff]
    %v3834 = vld [vmem:[#allocation9 + $0x1e0] sm:$0xff]
    %v3835 = vld [vmem:[#allocation9 + $0x1e8] sm:$0xff]
    %v3836 = vld [vmem:[#allocation9 + $0x1f0] sm:$0xff]
    %v3837 = vld [vmem:[#allocation9 + $0x1f8] sm:$0xff]
    %vm3838 = vcmask 523264
    %v3840 = vsel %vm3838, %v3770, 0
    %3842 = vmatpush.msra.mxu0 0.0
    %3843 = vmatpush.msra.mxu0 0.0
    %3844 = vmatpush.msra.mxu0 0.0
    %3845 = vmatpush.msra.mxu0 0.0
    %3846 = vmatpush.msra.mxu0 0.0
    %3847 = vmatpush.msra.mxu0 0.0
    %3848 = vmatpush.msra.mxu0 0.0
    %3849 = vmatpush.msra.mxu0 0.0
    %3850 = vmatpush.msra.mxu0 %v3830
    %3851 = vmatpush.msra.mxu0 %v3822
    %3852 = vmatpush.msra.mxu0 %v3814
    %3853 = vmatpush.msra.mxu0 %v3806
    %3854 = vmatpush.msra.mxu0 %v3798
    %3855 = vmatpush.msra.mxu0 %v3790
    %3856 = vmatpush.msra.mxu0 %v3782
    %3857 = vmatpush.msra.mxu0 %v3774
    %3858 = vmatmul.f32.gmra.mxu0 %v3840
    %v3859 = vpop.f32.mrf.mxu0
    %v3860 = vadd.f32 0.0, %v3859
    %3861 = vdwg.mxu0
    %3862 = vmatpush.msra.mxu0 0.0
    %3863 = vmatpush.msra.mxu0 0.0
    %3864 = vmatpush.msra.mxu0 0.0
    %3865 = vmatpush.msra.mxu0 0.0
    %3866 = vmatpush.msra.mxu0 0.0
    %3867 = vmatpush.msra.mxu0 0.0
    %3868 = vmatpush.msra.mxu0 0.0
    %3869 = vmatpush.msra.mxu0 0.0
    %3870 = vmatpush.msra.mxu0 %v3831
    %3871 = vmatpush.msra.mxu0 %v3823
    %3872 = vmatpush.msra.mxu0 %v3815
    %3873 = vmatpush.msra.mxu0 %v3807
    %3874 = vmatpush.msra.mxu0 %v3799
    %3875 = vmatpush.msra.mxu0 %v3791
    %3876 = vmatpush.msra.mxu0 %v3783
    %3877 = vmatpush.msra.mxu0 %v3775
    %3878 = vmatmul.f32.gmra.mxu0 %v3840
    %v3879 = vpop.f32.mrf.mxu0
    %v3880 = vadd.f32 0.0, %v3879
    %3881 = vdwg.mxu0
    %3882 = vmatpush.msra.mxu0 0.0
    %3883 = vmatpush.msra.mxu0 0.0
    %3884 = vmatpush.msra.mxu0 0.0
    %3885 = vmatpush.msra.mxu0 0.0
    %3886 = vmatpush.msra.mxu0 0.0
    %3887 = vmatpush.msra.mxu0 0.0
    %3888 = vmatpush.msra.mxu0 0.0
    %3889 = vmatpush.msra.mxu0 0.0
    %3890 = vmatpush.msra.mxu0 %v3832
    %3891 = vmatpush.msra.mxu0 %v3824
    %3892 = vmatpush.msra.mxu0 %v3816
    %3893 = vmatpush.msra.mxu0 %v3808
    %3894 = vmatpush.msra.mxu0 %v3800
    %3895 = vmatpush.msra.mxu0 %v3792
    %3896 = vmatpush.msra.mxu0 %v3784
    %3897 = vmatpush.msra.mxu0 %v3776
    %3898 = vmatmul.f32.gmra.mxu0 %v3840
    %v3899 = vpop.f32.mrf.mxu0
    %v3900 = vadd.f32 0.0, %v3899
    %3901 = vdwg.mxu0
    %3902 = vmatpush.msra.mxu0 0.0
    %3903 = vmatpush.msra.mxu0 0.0
    %3904 = vmatpush.msra.mxu0 0.0
    %3905 = vmatpush.msra.mxu0 0.0
    %3906 = vmatpush.msra.mxu0 0.0
    %3907 = vmatpush.msra.mxu0 0.0
    %3908 = vmatpush.msra.mxu0 0.0
    %3909 = vmatpush.msra.mxu0 0.0
    %3910 = vmatpush.msra.mxu0 %v3833
    %3911 = vmatpush.msra.mxu0 %v3825
    %3912 = vmatpush.msra.mxu0 %v3817
    %3913 = vmatpush.msra.mxu0 %v3809
    %3914 = vmatpush.msra.mxu0 %v3801
    %3915 = vmatpush.msra.mxu0 %v3793
    %3916 = vmatpush.msra.mxu0 %v3785
    %3917 = vmatpush.msra.mxu0 %v3777
    %3918 = vmatmul.f32.gmra.mxu0 %v3840
    %v3919 = vpop.f32.mrf.mxu0
    %v3920 = vadd.f32 0.0, %v3919
    %3921 = vdwg.mxu0
    %3922 = vmatpush.msra.mxu0 0.0
    %3923 = vmatpush.msra.mxu0 0.0
    %3924 = vmatpush.msra.mxu0 0.0
    %3925 = vmatpush.msra.mxu0 0.0
    %3926 = vmatpush.msra.mxu0 0.0
    %3927 = vmatpush.msra.mxu0 0.0
    %3928 = vmatpush.msra.mxu0 0.0
    %3929 = vmatpush.msra.mxu0 0.0
    %3930 = vmatpush.msra.mxu0 %v3834
    %3931 = vmatpush.msra.mxu0 %v3826
    %3932 = vmatpush.msra.mxu0 %v3818
    %3933 = vmatpush.msra.mxu0 %v3810
    %3934 = vmatpush.msra.mxu0 %v3802
    %3935 = vmatpush.msra.mxu0 %v3794
    %3936 = vmatpush.msra.mxu0 %v3786
    %3937 = vmatpush.msra.mxu0 %v3778
    %3938 = vmatmul.f32.gmra.mxu0 %v3840
    %v3939 = vpop.f32.mrf.mxu0
    %v3940 = vadd.f32 0.0, %v3939
    %3941 = vdwg.mxu0
    %3942 = vmatpush.msra.mxu0 0.0
    %3943 = vmatpush.msra.mxu0 0.0
    %3944 = vmatpush.msra.mxu0 0.0
    %3945 = vmatpush.msra.mxu0 0.0
    %3946 = vmatpush.msra.mxu0 0.0
    %3947 = vmatpush.msra.mxu0 0.0
    %3948 = vmatpush.msra.mxu0 0.0
    %3949 = vmatpush.msra.mxu0 0.0
    %3950 = vmatpush.msra.mxu0 %v3835
    %3951 = vmatpush.msra.mxu0 %v3827
    %3952 = vmatpush.msra.mxu0 %v3819
    %3953 = vmatpush.msra.mxu0 %v3811
    %3954 = vmatpush.msra.mxu0 %v3803
    %3955 = vmatpush.msra.mxu0 %v3795
    %3956 = vmatpush.msra.mxu0 %v3787
    %3957 = vmatpush.msra.mxu0 %v3779
    %3958 = vmatmul.f32.gmra.mxu0 %v3840
    %v3959 = vpop.f32.mrf.mxu0
    %v3960 = vadd.f32 0.0, %v3959
    %3961 = vdwg.mxu0
    %3962 = vmatpush.msra.mxu0 0.0
    %3963 = vmatpush.msra.mxu0 0.0
    %3964 = vmatpush.msra.mxu0 0.0
    %3965 = vmatpush.msra.mxu0 0.0
    %3966 = vmatpush.msra.mxu0 0.0
    %3967 = vmatpush.msra.mxu0 0.0
    %3968 = vmatpush.msra.mxu0 0.0
    %3969 = vmatpush.msra.mxu0 0.0
    %3970 = vmatpush.msra.mxu0 %v3836
    %3971 = vmatpush.msra.mxu0 %v3828
    %3972 = vmatpush.msra.mxu0 %v3820
    %3973 = vmatpush.msra.mxu0 %v3812
    %3974 = vmatpush.msra.mxu0 %v3804
    %3975 = vmatpush.msra.mxu0 %v3796
    %3976 = vmatpush.msra.mxu0 %v3788
    %3977 = vmatpush.msra.mxu0 %v3780
    %3978 = vmatmul.f32.gmra.mxu0 %v3840
    %v3979 = vpop.f32.mrf.mxu0
    %v3980 = vadd.f32 0.0, %v3979
    %3981 = vdwg.mxu0
    %3982 = vmatpush.msra.mxu0 0.0
    %3983 = vmatpush.msra.mxu0 0.0
    %3984 = vmatpush.msra.mxu0 0.0
    %3985 = vmatpush.msra.mxu0 0.0
    %3986 = vmatpush.msra.mxu0 0.0
    %3987 = vmatpush.msra.mxu0 0.0
    %3988 = vmatpush.msra.mxu0 0.0
    %3989 = vmatpush.msra.mxu0 0.0
    %3990 = vmatpush.msra.mxu0 %v3837
    %3991 = vmatpush.msra.mxu0 %v3829
    %3992 = vmatpush.msra.mxu0 %v3821
    %3993 = vmatpush.msra.mxu0 %v3813
    %3994 = vmatpush.msra.mxu0 %v3805
    %3995 = vmatpush.msra.mxu0 %v3797
    %3996 = vmatpush.msra.mxu0 %v3789
    %3997 = vmatpush.msra.mxu0 %v3781
    %3998 = vmatmul.f32.gmra.mxu0 %v3840
    %v3999 = vpop.f32.mrf.mxu0
    %v4000 = vadd.f32 0.0, %v3999
    %4001 = vdwg.mxu0
    %v4003 = vsel %vm3838, %v3773, 0
    %4005 = vmatpush.msra.mxu0 0.0
    %4006 = vmatpush.msra.mxu0 0.0
    %4007 = vmatpush.msra.mxu0 0.0
    %4008 = vmatpush.msra.mxu0 0.0
    %4009 = vmatpush.msra.mxu0 0.0
    %4010 = vmatpush.msra.mxu0 0.0
    %4011 = vmatpush.msra.mxu0 0.0
    %4012 = vmatpush.msra.mxu0 0.0
    %4013 = vmatpush.msra.mxu0 %v3830
    %4014 = vmatpush.msra.mxu0 %v3822
    %4015 = vmatpush.msra.mxu0 %v3814
    %4016 = vmatpush.msra.mxu0 %v3806
    %4017 = vmatpush.msra.mxu0 %v3798
    %4018 = vmatpush.msra.mxu0 %v3790
    %4019 = vmatpush.msra.mxu0 %v3782
    %4020 = vmatpush.msra.mxu0 %v3774
    %4021 = vmatmul.f32.gmra.mxu0 %v4003
    %v4022 = vpop.f32.mrf.mxu0
    %v4023 = vadd.f32 0.0, %v4022
    %4024 = vdwg.mxu0
    %4025 = vmatpush.msra.mxu0 0.0
    %4026 = vmatpush.msra.mxu0 0.0
    %4027 = vmatpush.msra.mxu0 0.0
    %4028 = vmatpush.msra.mxu0 0.0
    %4029 = vmatpush.msra.mxu0 0.0
    %4030 = vmatpush.msra.mxu0 0.0
    %4031 = vmatpush.msra.mxu0 0.0
    %4032 = vmatpush.msra.mxu0 0.0
    %4033 = vmatpush.msra.mxu0 %v3831
    %4034 = vmatpush.msra.mxu0 %v3823
    %4035 = vmatpush.msra.mxu0 %v3815
    %4036 = vmatpush.msra.mxu0 %v3807
    %4037 = vmatpush.msra.mxu0 %v3799
    %4038 = vmatpush.msra.mxu0 %v3791
    %4039 = vmatpush.msra.mxu0 %v3783
    %4040 = vmatpush.msra.mxu0 %v3775
    %4041 = vmatmul.f32.gmra.mxu0 %v4003
    %v4042 = vpop.f32.mrf.mxu0
    %v4043 = vadd.f32 0.0, %v4042
    %4044 = vdwg.mxu0
    %4045 = vmatpush.msra.mxu0 0.0
    %4046 = vmatpush.msra.mxu0 0.0
    %4047 = vmatpush.msra.mxu0 0.0
    %4048 = vmatpush.msra.mxu0 0.0
    %4049 = vmatpush.msra.mxu0 0.0
    %4050 = vmatpush.msra.mxu0 0.0
    %4051 = vmatpush.msra.mxu0 0.0
    %4052 = vmatpush.msra.mxu0 0.0
    %4053 = vmatpush.msra.mxu0 %v3832
    %4054 = vmatpush.msra.mxu0 %v3824
    %4055 = vmatpush.msra.mxu0 %v3816
    %4056 = vmatpush.msra.mxu0 %v3808
    %4057 = vmatpush.msra.mxu0 %v3800
    %4058 = vmatpush.msra.mxu0 %v3792
    %4059 = vmatpush.msra.mxu0 %v3784
    %4060 = vmatpush.msra.mxu0 %v3776
    %4061 = vmatmul.f32.gmra.mxu0 %v4003
    %v4062 = vpop.f32.mrf.mxu0
    %v4063 = vadd.f32 0.0, %v4062
    %4064 = vdwg.mxu0
    %4065 = vmatpush.msra.mxu0 0.0
    %4066 = vmatpush.msra.mxu0 0.0
    %4067 = vmatpush.msra.mxu0 0.0
    %4068 = vmatpush.msra.mxu0 0.0
    %4069 = vmatpush.msra.mxu0 0.0
    %4070 = vmatpush.msra.mxu0 0.0
    %4071 = vmatpush.msra.mxu0 0.0
    %4072 = vmatpush.msra.mxu0 0.0
    %4073 = vmatpush.msra.mxu0 %v3833
    %4074 = vmatpush.msra.mxu0 %v3825
    %4075 = vmatpush.msra.mxu0 %v3817
    %4076 = vmatpush.msra.mxu0 %v3809
    %4077 = vmatpush.msra.mxu0 %v3801
    %4078 = vmatpush.msra.mxu0 %v3793
    %4079 = vmatpush.msra.mxu0 %v3785
    %4080 = vmatpush.msra.mxu0 %v3777
    %4081 = vmatmul.f32.gmra.mxu0 %v4003
    %v4082 = vpop.f32.mrf.mxu0
    %v4083 = vadd.f32 0.0, %v4082
    %4084 = vdwg.mxu0
    %4085 = vmatpush.msra.mxu0 0.0
    %4086 = vmatpush.msra.mxu0 0.0
    %4087 = vmatpush.msra.mxu0 0.0
    %4088 = vmatpush.msra.mxu0 0.0
    %4089 = vmatpush.msra.mxu0 0.0
    %4090 = vmatpush.msra.mxu0 0.0
    %4091 = vmatpush.msra.mxu0 0.0
    %4092 = vmatpush.msra.mxu0 0.0
    %4093 = vmatpush.msra.mxu0 %v3834
    %4094 = vmatpush.msra.mxu0 %v3826
    %4095 = vmatpush.msra.mxu0 %v3818
    %4096 = vmatpush.msra.mxu0 %v3810
    %4097 = vmatpush.msra.mxu0 %v3802
    %4098 = vmatpush.msra.mxu0 %v3794
    %4099 = vmatpush.msra.mxu0 %v3786
    %4100 = vmatpush.msra.mxu0 %v3778
    %4101 = vmatmul.f32.gmra.mxu0 %v4003
    %v4102 = vpop.f32.mrf.mxu0
    %v4103 = vadd.f32 0.0, %v4102
    %4104 = vdwg.mxu0
    %4105 = vmatpush.msra.mxu0 0.0
    %4106 = vmatpush.msra.mxu0 0.0
    %4107 = vmatpush.msra.mxu0 0.0
    %4108 = vmatpush.msra.mxu0 0.0
    %4109 = vmatpush.msra.mxu0 0.0
    %4110 = vmatpush.msra.mxu0 0.0
    %4111 = vmatpush.msra.mxu0 0.0
    %4112 = vmatpush.msra.mxu0 0.0
    %4113 = vmatpush.msra.mxu0 %v3835
    %4114 = vmatpush.msra.mxu0 %v3827
    %4115 = vmatpush.msra.mxu0 %v3819
    %4116 = vmatpush.msra.mxu0 %v3811
    %4117 = vmatpush.msra.mxu0 %v3803
    %4118 = vmatpush.msra.mxu0 %v3795
    %4119 = vmatpush.msra.mxu0 %v3787
    %4120 = vmatpush.msra.mxu0 %v3779
    %4121 = vmatmul.f32.gmra.mxu0 %v4003
    %v4122 = vpop.f32.mrf.mxu0
    %v4123 = vadd.f32 0.0, %v4122
    %4124 = vdwg.mxu0
    %4125 = vmatpush.msra.mxu0 0.0
    %4126 = vmatpush.msra.mxu0 0.0
    %4127 = vmatpush.msra.mxu0 0.0
    %4128 = vmatpush.msra.mxu0 0.0
    %4129 = vmatpush.msra.mxu0 0.0
    %4130 = vmatpush.msra.mxu0 0.0
    %4131 = vmatpush.msra.mxu0 0.0
    %4132 = vmatpush.msra.mxu0 0.0
    %4133 = vmatpush.msra.mxu0 %v3836
    %4134 = vmatpush.msra.mxu0 %v3828
    %4135 = vmatpush.msra.mxu0 %v3820
    %4136 = vmatpush.msra.mxu0 %v3812
    %4137 = vmatpush.msra.mxu0 %v3804
    %4138 = vmatpush.msra.mxu0 %v3796
    %4139 = vmatpush.msra.mxu0 %v3788
    %4140 = vmatpush.msra.mxu0 %v3780
    %4141 = vmatmul.f32.gmra.mxu0 %v4003
    %v4142 = vpop.f32.mrf.mxu0
    %v4143 = vadd.f32 0.0, %v4142
    %4144 = vdwg.mxu0
    %4145 = vmatpush.msra.mxu0 0.0
    %4146 = vmatpush.msra.mxu0 0.0
    %4147 = vmatpush.msra.mxu0 0.0
    %4148 = vmatpush.msra.mxu0 0.0
    %4149 = vmatpush.msra.mxu0 0.0
    %4150 = vmatpush.msra.mxu0 0.0
    %4151 = vmatpush.msra.mxu0 0.0
    %4152 = vmatpush.msra.mxu0 0.0
    %4153 = vmatpush.msra.mxu0 %v3837
    %4154 = vmatpush.msra.mxu0 %v3829
    %4155 = vmatpush.msra.mxu0 %v3821
    %4156 = vmatpush.msra.mxu0 %v3813
    %4157 = vmatpush.msra.mxu0 %v3805
    %4158 = vmatpush.msra.mxu0 %v3797
    %4159 = vmatpush.msra.mxu0 %v3789
    %4160 = vmatpush.msra.mxu0 %v3781
    %4161 = vmatmul.f32.gmra.mxu0 %v4003
    %v4162 = vpop.f32.mrf.mxu0
    %v4163 = vadd.f32 0.0, %v4162
    %4164 = vdwg.mxu0
    %v4165 = vperm.slane %v3860, 0
    %v4166 = vperm.slane %v3880, 0
    %v4167 = vperm.slane %v3900, 0
    %v4168 = vperm.slane %v3920, 0
    %v4169 = vperm.slane %v3940, 0
    %v4170 = vperm.slane %v3960, 0
    %v4171 = vperm.slane %v3980, 0
    %v4172 = vperm.slane %v4000, 0
    %v4173 = vmul.f32 %v2819, %v4165
    %v4174 = vmul.f32 %v2871, %v4166
    %v4175 = vmul.f32 %v2923, %v4167
    %v4176 = vmul.f32 %v2975, %v4168
    %v4177 = vmul.f32 %v3027, %v4169
    %v4178 = vmul.f32 %v3079, %v4170
    %v4179 = vmul.f32 %v3131, %v4171
    %v4180 = vmul.f32 %v3183, %v4172
    %v4181 = vperm.slane %v4023, 0
    %v4182 = vperm.slane %v4043, 0
    %v4183 = vperm.slane %v4063, 0
    %v4184 = vperm.slane %v4083, 0
    %v4185 = vperm.slane %v4103, 0
    %v4186 = vperm.slane %v4123, 0
    %v4187 = vperm.slane %v4143, 0
    %v4188 = vperm.slane %v4163, 0
    %v4189 = vadd.f32 %v4173, %v4181
    %v4190 = vadd.f32 %v4174, %v4182
    %v4191 = vadd.f32 %v4175, %v4183
    %v4192 = vadd.f32 %v4176, %v4184
    %v4193 = vadd.f32 %v4177, %v4185
    %v4194 = vadd.f32 %v4178, %v4186
    %v4195 = vadd.f32 %v4179, %v4187
    %v4196 = vadd.f32 %v4180, %v4188
    %v4197 = vmax.f32 %v4189, 0.0
    %v4198 = vmax.f32 %v4190, 0.0
    %v4199 = vmax.f32 %v4191, 0.0
    %v4200 = vmax.f32 %v4192, 0.0
    %v4201 = vmax.f32 %v4193, 0.0
    %v4202 = vmax.f32 %v4194, 0.0
    %v4203 = vmax.f32 %v4195, 0.0
    %v4204 = vmax.f32 %v4196, 0.0
    %v4205 = vpack.c.bf16 %v4197, %v4197
    %v4206 = vpack.c.bf16 %v4198, %v4198
    %v4207 = vpack.c.bf16 %v4199, %v4199
    %v4208 = vpack.c.bf16 %v4200, %v4200
    %v4209 = vpack.c.bf16 %v4201, %v4201
    %v4210 = vpack.c.bf16 %v4202, %v4202
    %v4211 = vpack.c.bf16 %v4203, %v4203
    %v4212 = vpack.c.bf16 %v4204, %v4204
    %v4213 = vld [vmem:[%s13] sm:$0xff]
    %v4214 = vld [vmem:[%s13 + $0x8] sm:$0xff]
    %v4215 = vld [vmem:[%s13 + $0x10] sm:$0xff]
    %v4216 = vld [vmem:[%s13 + $0x18] sm:$0xff]
    %v4217 = vld [vmem:[%s13 + $0x20] sm:$0xff]
    %v4218 = vld [vmem:[%s13 + $0x28] sm:$0xff]
    %v4219 = vld [vmem:[%s13 + $0x30] sm:$0xff]
    %v4220 = vld [vmem:[%s13 + $0x38] sm:$0xff]
    %v4221 = vld [vmem:[%s13 + $0x40] sm:$0xff]
    %v4222 = vld [vmem:[%s13 + $0x48] sm:$0xff]
    %v4223 = vld [vmem:[%s13 + $0x50] sm:$0xff]
    %v4224 = vld [vmem:[%s13 + $0x58] sm:$0xff]
    %v4225 = vld [vmem:[%s13 + $0x60] sm:$0xff]
    %v4226 = vld [vmem:[%s13 + $0x68] sm:$0xff]
    %v4227 = vld [vmem:[%s13 + $0x70] sm:$0xff]
    %v4228 = vld [vmem:[%s13 + $0x78] sm:$0xff]
    %v4229 = vld [vmem:[%s13 + $0x80] sm:$0xff]
    %v4230 = vld [vmem:[%s13 + $0x88] sm:$0xff]
    %v4231 = vld [vmem:[%s13 + $0x90] sm:$0xff]
    %v4232 = vld [vmem:[%s13 + $0x98] sm:$0xff]
    %v4233 = vld [vmem:[%s13 + $0xa0] sm:$0xff]
    %v4234 = vld [vmem:[%s13 + $0xa8] sm:$0xff]
    %v4235 = vld [vmem:[%s13 + $0xb0] sm:$0xff]
    %v4236 = vld [vmem:[%s13 + $0xb8] sm:$0xff]
    %v4237 = vld [vmem:[%s13 + $0xc0] sm:$0xff]
    %v4238 = vld [vmem:[%s13 + $0xc8] sm:$0xff]
    %v4239 = vld [vmem:[%s13 + $0xd0] sm:$0xff]
    %v4240 = vld [vmem:[%s13 + $0xd8] sm:$0xff]
    %v4241 = vld [vmem:[%s13 + $0xe0] sm:$0xff]
    %v4242 = vld [vmem:[%s13 + $0xe8] sm:$0xff]
    %v4243 = vld [vmem:[%s13 + $0xf0] sm:$0xff]
    %v4244 = vld [vmem:[%s13 + $0xf8] sm:$0xff]
    %v4245 = vld [vmem:[%s13 + $0x100] sm:$0xff]
    %v4246 = vld [vmem:[%s13 + $0x108] sm:$0xff]
    %v4247 = vld [vmem:[%s13 + $0x110] sm:$0xff]
    %v4248 = vld [vmem:[%s13 + $0x118] sm:$0xff]
    %v4249 = vld [vmem:[%s13 + $0x120] sm:$0xff]
    %v4250 = vld [vmem:[%s13 + $0x128] sm:$0xff]
    %v4251 = vld [vmem:[%s13 + $0x130] sm:$0xff]
    %v4252 = vld [vmem:[%s13 + $0x138] sm:$0xff]
    %v4253 = vld [vmem:[%s13 + $0x140] sm:$0xff]
    %v4254 = vld [vmem:[%s13 + $0x148] sm:$0xff]
    %v4255 = vld [vmem:[%s13 + $0x150] sm:$0xff]
    %v4256 = vld [vmem:[%s13 + $0x158] sm:$0xff]
    %v4257 = vld [vmem:[%s13 + $0x160] sm:$0xff]
    %v4258 = vld [vmem:[%s13 + $0x168] sm:$0xff]
    %v4259 = vld [vmem:[%s13 + $0x170] sm:$0xff]
    %v4260 = vld [vmem:[%s13 + $0x178] sm:$0xff]
    %v4261 = vld [vmem:[%s13 + $0x180] sm:$0xff]
    %v4262 = vld [vmem:[%s13 + $0x188] sm:$0xff]
    %v4263 = vld [vmem:[%s13 + $0x190] sm:$0xff]
    %v4264 = vld [vmem:[%s13 + $0x198] sm:$0xff]
    %v4265 = vld [vmem:[%s13 + $0x1a0] sm:$0xff]
    %v4266 = vld [vmem:[%s13 + $0x1a8] sm:$0xff]
    %v4267 = vld [vmem:[%s13 + $0x1b0] sm:$0xff]
    %v4268 = vld [vmem:[%s13 + $0x1b8] sm:$0xff]
    %v4269 = vld [vmem:[%s13 + $0x1c0] sm:$0xff]
    %v4270 = vld [vmem:[%s13 + $0x1c8] sm:$0xff]
    %v4271 = vld [vmem:[%s13 + $0x1d0] sm:$0xff]
    %v4272 = vld [vmem:[%s13 + $0x1d8] sm:$0xff]
    %v4273 = vld [vmem:[%s13 + $0x1e0] sm:$0xff]
    %v4274 = vld [vmem:[%s13 + $0x1e8] sm:$0xff]
    %v4275 = vld [vmem:[%s13 + $0x1f0] sm:$0xff]
    %v4276 = vld [vmem:[%s13 + $0x1f8] sm:$0xff]
    %v4277 = vld [vmem:[%s13 + $0x200] sm:$0xff]
    %v4278 = vld [vmem:[%s13 + $0x208] sm:$0xff]
    %v4279 = vld [vmem:[%s13 + $0x210] sm:$0xff]
    %v4280 = vld [vmem:[%s13 + $0x218] sm:$0xff]
    %v4281 = vld [vmem:[%s13 + $0x220] sm:$0xff]
    %v4282 = vld [vmem:[%s13 + $0x228] sm:$0xff]
    %v4283 = vld [vmem:[%s13 + $0x230] sm:$0xff]
    %v4284 = vld [vmem:[%s13 + $0x238] sm:$0xff]
    %v4285 = vld [vmem:[%s13 + $0x240] sm:$0xff]
    %v4286 = vld [vmem:[%s13 + $0x248] sm:$0xff]
    %v4287 = vld [vmem:[%s13 + $0x250] sm:$0xff]
    %v4288 = vld [vmem:[%s13 + $0x258] sm:$0xff]
    %v4289 = vld [vmem:[%s13 + $0x260] sm:$0xff]
    %v4290 = vld [vmem:[%s13 + $0x268] sm:$0xff]
    %v4291 = vld [vmem:[%s13 + $0x270] sm:$0xff]
    %v4292 = vld [vmem:[%s13 + $0x278] sm:$0xff]
    %v4293 = vld [vmem:[%s13 + $0x280] sm:$0xff]
    %v4294 = vld [vmem:[%s13 + $0x288] sm:$0xff]
    %v4295 = vld [vmem:[%s13 + $0x290] sm:$0xff]
    %v4296 = vld [vmem:[%s13 + $0x298] sm:$0xff]
    %v4297 = vld [vmem:[%s13 + $0x2a0] sm:$0xff]
    %v4298 = vld [vmem:[%s13 + $0x2a8] sm:$0xff]
    %v4299 = vld [vmem:[%s13 + $0x2b0] sm:$0xff]
    %v4300 = vld [vmem:[%s13 + $0x2b8] sm:$0xff]
    %v4301 = vld [vmem:[%s13 + $0x2c0] sm:$0xff]
    %v4302 = vld [vmem:[%s13 + $0x2c8] sm:$0xff]
    %v4303 = vld [vmem:[%s13 + $0x2d0] sm:$0xff]
    %v4304 = vld [vmem:[%s13 + $0x2d8] sm:$0xff]
    %v4305 = vld [vmem:[%s13 + $0x2e0] sm:$0xff]
    %v4306 = vld [vmem:[%s13 + $0x2e8] sm:$0xff]
    %v4307 = vld [vmem:[%s13 + $0x2f0] sm:$0xff]
    %v4308 = vld [vmem:[%s13 + $0x2f8] sm:$0xff]
    %v4309 = vld [vmem:[%s13 + $0x300] sm:$0xff]
    %v4310 = vld [vmem:[%s13 + $0x308] sm:$0xff]
    %v4311 = vld [vmem:[%s13 + $0x310] sm:$0xff]
    %v4312 = vld [vmem:[%s13 + $0x318] sm:$0xff]
    %v4313 = vld [vmem:[%s13 + $0x320] sm:$0xff]
    %v4314 = vld [vmem:[%s13 + $0x328] sm:$0xff]
    %v4315 = vld [vmem:[%s13 + $0x330] sm:$0xff]
    %v4316 = vld [vmem:[%s13 + $0x338] sm:$0xff]
    %v4317 = vld [vmem:[%s13 + $0x340] sm:$0xff]
    %v4318 = vld [vmem:[%s13 + $0x348] sm:$0xff]
    %v4319 = vld [vmem:[%s13 + $0x350] sm:$0xff]
    %v4320 = vld [vmem:[%s13 + $0x358] sm:$0xff]
    %v4321 = vld [vmem:[%s13 + $0x360] sm:$0xff]
    %v4322 = vld [vmem:[%s13 + $0x368] sm:$0xff]
    %v4323 = vld [vmem:[%s13 + $0x370] sm:$0xff]
    %v4324 = vld [vmem:[%s13 + $0x378] sm:$0xff]
    %v4325 = vld [vmem:[%s13 + $0x380] sm:$0xff]
    %v4326 = vld [vmem:[%s13 + $0x388] sm:$0xff]
    %v4327 = vld [vmem:[%s13 + $0x390] sm:$0xff]
    %v4328 = vld [vmem:[%s13 + $0x398] sm:$0xff]
    %v4329 = vld [vmem:[%s13 + $0x3a0] sm:$0xff]
    %v4330 = vld [vmem:[%s13 + $0x3a8] sm:$0xff]
    %v4331 = vld [vmem:[%s13 + $0x3b0] sm:$0xff]
    %v4332 = vld [vmem:[%s13 + $0x3b8] sm:$0xff]
    %v4333 = vld [vmem:[%s13 + $0x3c0] sm:$0xff]
    %v4334 = vld [vmem:[%s13 + $0x3c8] sm:$0xff]
    %v4335 = vld [vmem:[%s13 + $0x3d0] sm:$0xff]
    %v4336 = vld [vmem:[%s13 + $0x3d8] sm:$0xff]
    %v4337 = vld [vmem:[%s13 + $0x3e0] sm:$0xff]
    %v4338 = vld [vmem:[%s13 + $0x3e8] sm:$0xff]
    %v4339 = vld [vmem:[%s13 + $0x3f0] sm:$0xff]
    %v4340 = vld [vmem:[%s13 + $0x3f8] sm:$0xff]
    %v4341 = vld [vmem:[%s14] sm:$0x3]
    %v4343 = vperm.slane %v4341, 0
    %v4344 = vperm.slane %v4341, 1
    %v4475 = vunpack.c.l.b16 %v4213
    %v4476 = vunpack.c.h.b16 %v4213
    %v4477 = vunpack.c.l.b16 %v4214
    %v4478 = vunpack.c.h.b16 %v4214
    %v4479 = vunpack.c.l.b16 %v4215
    %v4480 = vunpack.c.h.b16 %v4215
    %v4481 = vunpack.c.l.b16 %v4216
    %v4482 = vunpack.c.h.b16 %v4216
    %v4483 = vunpack.c.l.b16 %v4217
    %v4484 = vunpack.c.h.b16 %v4217
    %v4485 = vunpack.c.l.b16 %v4218
    %v4486 = vunpack.c.h.b16 %v4218
    %v4487 = vunpack.c.l.b16 %v4219
    %v4488 = vunpack.c.h.b16 %v4219
    %v4489 = vunpack.c.l.b16 %v4220
    %v4490 = vunpack.c.h.b16 %v4220
    %v4491 = vunpack.c.l.b16 %v4221
    %v4492 = vunpack.c.h.b16 %v4221
    %v4493 = vunpack.c.l.b16 %v4222
    %v4494 = vunpack.c.h.b16 %v4222
    %v4495 = vunpack.c.l.b16 %v4223
    %v4496 = vunpack.c.h.b16 %v4223
    %v4497 = vunpack.c.l.b16 %v4224
    %v4498 = vunpack.c.h.b16 %v4224
    %v4499 = vunpack.c.l.b16 %v4225
    %v4500 = vunpack.c.h.b16 %v4225
    %v4501 = vunpack.c.l.b16 %v4226
    %v4502 = vunpack.c.h.b16 %v4226
    %v4503 = vunpack.c.l.b16 %v4227
    %v4504 = vunpack.c.h.b16 %v4227
    %v4505 = vunpack.c.l.b16 %v4228
    %v4506 = vunpack.c.h.b16 %v4228
    %v4507 = vunpack.c.l.b16 %v4229
    %v4508 = vunpack.c.h.b16 %v4229
    %v4509 = vunpack.c.l.b16 %v4230
    %v4510 = vunpack.c.h.b16 %v4230
    %v4511 = vunpack.c.l.b16 %v4231
    %v4512 = vunpack.c.h.b16 %v4231
    %v4513 = vunpack.c.l.b16 %v4232
    %v4514 = vunpack.c.h.b16 %v4232
    %v4515 = vunpack.c.l.b16 %v4233
    %v4516 = vunpack.c.h.b16 %v4233
    %v4517 = vunpack.c.l.b16 %v4234
    %v4518 = vunpack.c.h.b16 %v4234
    %v4519 = vunpack.c.l.b16 %v4235
    %v4520 = vunpack.c.h.b16 %v4235
    %v4521 = vunpack.c.l.b16 %v4236
    %v4522 = vunpack.c.h.b16 %v4236
    %v4523 = vunpack.c.l.b16 %v4237
    %v4524 = vunpack.c.h.b16 %v4237
    %v4525 = vunpack.c.l.b16 %v4238
    %v4526 = vunpack.c.h.b16 %v4238
    %v4527 = vunpack.c.l.b16 %v4239
    %v4528 = vunpack.c.h.b16 %v4239
    %v4529 = vunpack.c.l.b16 %v4240
    %v4530 = vunpack.c.h.b16 %v4240
    %v4531 = vunpack.c.l.b16 %v4241
    %v4532 = vunpack.c.h.b16 %v4241
    %v4533 = vunpack.c.l.b16 %v4242
    %v4534 = vunpack.c.h.b16 %v4242
    %v4535 = vunpack.c.l.b16 %v4243
    %v4536 = vunpack.c.h.b16 %v4243
    %v4537 = vunpack.c.l.b16 %v4244
    %v4538 = vunpack.c.h.b16 %v4244
    %v4539 = vunpack.c.l.b16 %v4245
    %v4540 = vunpack.c.h.b16 %v4245
    %v4541 = vunpack.c.l.b16 %v4246
    %v4542 = vunpack.c.h.b16 %v4246
    %v4543 = vunpack.c.l.b16 %v4247
    %v4544 = vunpack.c.h.b16 %v4247
    %v4545 = vunpack.c.l.b16 %v4248
    %v4546 = vunpack.c.h.b16 %v4248
    %v4547 = vunpack.c.l.b16 %v4249
    %v4548 = vunpack.c.h.b16 %v4249
    %v4549 = vunpack.c.l.b16 %v4250
    %v4550 = vunpack.c.h.b16 %v4250
    %v4551 = vunpack.c.l.b16 %v4251
    %v4552 = vunpack.c.h.b16 %v4251
    %v4553 = vunpack.c.l.b16 %v4252
    %v4554 = vunpack.c.h.b16 %v4252
    %v4555 = vunpack.c.l.b16 %v4253
    %v4556 = vunpack.c.h.b16 %v4253
    %v4557 = vunpack.c.l.b16 %v4254
    %v4558 = vunpack.c.h.b16 %v4254
    %v4559 = vunpack.c.l.b16 %v4255
    %v4560 = vunpack.c.h.b16 %v4255
    %v4561 = vunpack.c.l.b16 %v4256
    %v4562 = vunpack.c.h.b16 %v4256
    %v4563 = vunpack.c.l.b16 %v4257
    %v4564 = vunpack.c.h.b16 %v4257
    %v4565 = vunpack.c.l.b16 %v4258
    %v4566 = vunpack.c.h.b16 %v4258
    %v4567 = vunpack.c.l.b16 %v4259
    %v4568 = vunpack.c.h.b16 %v4259
    %v4569 = vunpack.c.l.b16 %v4260
    %v4570 = vunpack.c.h.b16 %v4260
    %v4571 = vunpack.c.l.b16 %v4261
    %v4572 = vunpack.c.h.b16 %v4261
    %v4573 = vunpack.c.l.b16 %v4262
    %v4574 = vunpack.c.h.b16 %v4262
    %v4575 = vunpack.c.l.b16 %v4263
    %v4576 = vunpack.c.h.b16 %v4263
    %v4577 = vunpack.c.l.b16 %v4264
    %v4578 = vunpack.c.h.b16 %v4264
    %v4579 = vunpack.c.l.b16 %v4265
    %v4580 = vunpack.c.h.b16 %v4265
    %v4581 = vunpack.c.l.b16 %v4266
    %v4582 = vunpack.c.h.b16 %v4266
    %v4583 = vunpack.c.l.b16 %v4267
    %v4584 = vunpack.c.h.b16 %v4267
    %v4585 = vunpack.c.l.b16 %v4268
    %v4586 = vunpack.c.h.b16 %v4268
    %v4587 = vunpack.c.l.b16 %v4269
    %v4588 = vunpack.c.h.b16 %v4269
    %v4589 = vunpack.c.l.b16 %v4270
    %v4590 = vunpack.c.h.b16 %v4270
    %v4591 = vunpack.c.l.b16 %v4271
    %v4592 = vunpack.c.h.b16 %v4271
    %v4593 = vunpack.c.l.b16 %v4272
    %v4594 = vunpack.c.h.b16 %v4272
    %v4595 = vunpack.c.l.b16 %v4273
    %v4596 = vunpack.c.h.b16 %v4273
    %v4597 = vunpack.c.l.b16 %v4274
    %v4598 = vunpack.c.h.b16 %v4274
    %v4599 = vunpack.c.l.b16 %v4275
    %v4600 = vunpack.c.h.b16 %v4275
    %v4601 = vunpack.c.l.b16 %v4276
    %v4602 = vunpack.c.h.b16 %v4276
    %v4603 = vunpack.c.l.b16 %v4277
    %v4604 = vunpack.c.h.b16 %v4277
    %v4605 = vunpack.c.l.b16 %v4278
    %v4606 = vunpack.c.h.b16 %v4278
    %v4607 = vunpack.c.l.b16 %v4279
    %v4608 = vunpack.c.h.b16 %v4279
    %v4609 = vunpack.c.l.b16 %v4280
    %v4610 = vunpack.c.h.b16 %v4280
    %v4611 = vunpack.c.l.b16 %v4281
    %v4612 = vunpack.c.h.b16 %v4281
    %v4613 = vunpack.c.l.b16 %v4282
    %v4614 = vunpack.c.h.b16 %v4282
    %v4615 = vunpack.c.l.b16 %v4283
    %v4616 = vunpack.c.h.b16 %v4283
    %v4617 = vunpack.c.l.b16 %v4284
    %v4618 = vunpack.c.h.b16 %v4284
    %v4619 = vunpack.c.l.b16 %v4285
    %v4620 = vunpack.c.h.b16 %v4285
    %v4621 = vunpack.c.l.b16 %v4286
    %v4622 = vunpack.c.h.b16 %v4286
    %v4623 = vunpack.c.l.b16 %v4287
    %v4624 = vunpack.c.h.b16 %v4287
    %v4625 = vunpack.c.l.b16 %v4288
    %v4626 = vunpack.c.h.b16 %v4288
    %v4627 = vunpack.c.l.b16 %v4289
    %v4628 = vunpack.c.h.b16 %v4289
    %v4629 = vunpack.c.l.b16 %v4290
    %v4630 = vunpack.c.h.b16 %v4290
    %v4631 = vunpack.c.l.b16 %v4291
    %v4632 = vunpack.c.h.b16 %v4291
    %v4633 = vunpack.c.l.b16 %v4292
    %v4634 = vunpack.c.h.b16 %v4292
    %v4635 = vunpack.c.l.b16 %v4293
    %v4636 = vunpack.c.h.b16 %v4293
    %v4637 = vunpack.c.l.b16 %v4294
    %v4638 = vunpack.c.h.b16 %v4294
    %v4639 = vunpack.c.l.b16 %v4295
    %v4640 = vunpack.c.h.b16 %v4295
    %v4641 = vunpack.c.l.b16 %v4296
    %v4642 = vunpack.c.h.b16 %v4296
    %v4643 = vunpack.c.l.b16 %v4297
    %v4644 = vunpack.c.h.b16 %v4297
    %v4645 = vunpack.c.l.b16 %v4298
    %v4646 = vunpack.c.h.b16 %v4298
    %v4647 = vunpack.c.l.b16 %v4299
    %v4648 = vunpack.c.h.b16 %v4299
    %v4649 = vunpack.c.l.b16 %v4300
    %v4650 = vunpack.c.h.b16 %v4300
    %v4651 = vunpack.c.l.b16 %v4301
    %v4652 = vunpack.c.h.b16 %v4301
    %v4653 = vunpack.c.l.b16 %v4302
    %v4654 = vunpack.c.h.b16 %v4302
    %v4655 = vunpack.c.l.b16 %v4303
    %v4656 = vunpack.c.h.b16 %v4303
    %v4657 = vunpack.c.l.b16 %v4304
    %v4658 = vunpack.c.h.b16 %v4304
    %v4659 = vunpack.c.l.b16 %v4305
    %v4660 = vunpack.c.h.b16 %v4305
    %v4661 = vunpack.c.l.b16 %v4306
    %v4662 = vunpack.c.h.b16 %v4306
    %v4663 = vunpack.c.l.b16 %v4307
    %v4664 = vunpack.c.h.b16 %v4307
    %v4665 = vunpack.c.l.b16 %v4308
    %v4666 = vunpack.c.h.b16 %v4308
    %v4667 = vunpack.c.l.b16 %v4309
    %v4668 = vunpack.c.h.b16 %v4309
    %v4669 = vunpack.c.l.b16 %v4310
    %v4670 = vunpack.c.h.b16 %v4310
    %v4671 = vunpack.c.l.b16 %v4311
    %v4672 = vunpack.c.h.b16 %v4311
    %v4673 = vunpack.c.l.b16 %v4312
    %v4674 = vunpack.c.h.b16 %v4312
    %v4675 = vunpack.c.l.b16 %v4313
    %v4676 = vunpack.c.h.b16 %v4313
    %v4677 = vunpack.c.l.b16 %v4314
    %v4678 = vunpack.c.h.b16 %v4314
    %v4679 = vunpack.c.l.b16 %v4315
    %v4680 = vunpack.c.h.b16 %v4315
    %v4681 = vunpack.c.l.b16 %v4316
    %v4682 = vunpack.c.h.b16 %v4316
    %v4683 = vunpack.c.l.b16 %v4317
    %v4684 = vunpack.c.h.b16 %v4317
    %v4685 = vunpack.c.l.b16 %v4318
    %v4686 = vunpack.c.h.b16 %v4318
    %v4687 = vunpack.c.l.b16 %v4319
    %v4688 = vunpack.c.h.b16 %v4319
    %v4689 = vunpack.c.l.b16 %v4320
    %v4690 = vunpack.c.h.b16 %v4320
    %v4691 = vunpack.c.l.b16 %v4321
    %v4692 = vunpack.c.h.b16 %v4321
    %v4693 = vunpack.c.l.b16 %v4322
    %v4694 = vunpack.c.h.b16 %v4322
    %v4695 = vunpack.c.l.b16 %v4323
    %v4696 = vunpack.c.h.b16 %v4323
    %v4697 = vunpack.c.l.b16 %v4324
    %v4698 = vunpack.c.h.b16 %v4324
    %v4699 = vunpack.c.l.b16 %v4325
    %v4700 = vunpack.c.h.b16 %v4325
    %v4701 = vunpack.c.l.b16 %v4326
    %v4702 = vunpack.c.h.b16 %v4326
    %v4703 = vunpack.c.l.b16 %v4327
    %v4704 = vunpack.c.h.b16 %v4327
    %v4705 = vunpack.c.l.b16 %v4328
    %v4706 = vunpack.c.h.b16 %v4328
    %v4707 = vunpack.c.l.b16 %v4329
    %v4708 = vunpack.c.h.b16 %v4329
    %v4709 = vunpack.c.l.b16 %v4330
    %v4710 = vunpack.c.h.b16 %v4330
    %v4711 = vunpack.c.l.b16 %v4331
    %v4712 = vunpack.c.h.b16 %v4331
    %v4713 = vunpack.c.l.b16 %v4332
    %v4714 = vunpack.c.h.b16 %v4332
    %v4715 = vunpack.c.l.b16 %v4333
    %v4716 = vunpack.c.h.b16 %v4333
    %v4717 = vunpack.c.l.b16 %v4334
    %v4718 = vunpack.c.h.b16 %v4334
    %v4719 = vunpack.c.l.b16 %v4335
    %v4720 = vunpack.c.h.b16 %v4335
    %v4721 = vunpack.c.l.b16 %v4336
    %v4722 = vunpack.c.h.b16 %v4336
    %v4723 = vunpack.c.l.b16 %v4337
    %v4724 = vunpack.c.h.b16 %v4337
    %v4725 = vunpack.c.l.b16 %v4338
    %v4726 = vunpack.c.h.b16 %v4338
    %v4727 = vunpack.c.l.b16 %v4339
    %v4728 = vunpack.c.h.b16 %v4339
    %v4729 = vunpack.c.l.b16 %v4340
    %v4730 = vunpack.c.h.b16 %v4340
    %v4731 = vpack.c.b16 %v4477, %v4475
    %v4732 = vpack.c.b16 %v4478, %v4476
    %v4733 = vpack.c.b16 %v4481, %v4479
    %v4734 = vpack.c.b16 %v4482, %v4480
    %v4735 = vpack.c.b16 %v4485, %v4483
    %v4736 = vpack.c.b16 %v4486, %v4484
    %v4737 = vpack.c.b16 %v4489, %v4487
    %v4738 = vpack.c.b16 %v4490, %v4488
    %v4739 = vpack.c.b16 %v4493, %v4491
    %v4740 = vpack.c.b16 %v4494, %v4492
    %v4741 = vpack.c.b16 %v4497, %v4495
    %v4742 = vpack.c.b16 %v4498, %v4496
    %v4743 = vpack.c.b16 %v4501, %v4499
    %v4744 = vpack.c.b16 %v4502, %v4500
    %v4745 = vpack.c.b16 %v4505, %v4503
    %v4746 = vpack.c.b16 %v4506, %v4504
    %v4747 = vpack.c.b16 %v4509, %v4507
    %v4748 = vpack.c.b16 %v4510, %v4508
    %v4749 = vpack.c.b16 %v4513, %v4511
    %v4750 = vpack.c.b16 %v4514, %v4512
    %v4751 = vpack.c.b16 %v4517, %v4515
    %v4752 = vpack.c.b16 %v4518, %v4516
    %v4753 = vpack.c.b16 %v4521, %v4519
    %v4754 = vpack.c.b16 %v4522, %v4520
    %v4755 = vpack.c.b16 %v4525, %v4523
    %v4756 = vpack.c.b16 %v4526, %v4524
    %v4757 = vpack.c.b16 %v4529, %v4527
    %v4758 = vpack.c.b16 %v4530, %v4528
    %v4759 = vpack.c.b16 %v4533, %v4531
    %v4760 = vpack.c.b16 %v4534, %v4532
    %v4761 = vpack.c.b16 %v4537, %v4535
    %v4762 = vpack.c.b16 %v4538, %v4536
    %v4763 = vpack.c.b16 %v4541, %v4539
    %v4764 = vpack.c.b16 %v4542, %v4540
    %v4765 = vpack.c.b16 %v4545, %v4543
    %v4766 = vpack.c.b16 %v4546, %v4544
    %v4767 = vpack.c.b16 %v4549, %v4547
    %v4768 = vpack.c.b16 %v4550, %v4548
    %v4769 = vpack.c.b16 %v4553, %v4551
    %v4770 = vpack.c.b16 %v4554, %v4552
    %v4771 = vpack.c.b16 %v4557, %v4555
    %v4772 = vpack.c.b16 %v4558, %v4556
    %v4773 = vpack.c.b16 %v4561, %v4559
    %v4774 = vpack.c.b16 %v4562, %v4560
    %v4775 = vpack.c.b16 %v4565, %v4563
    %v4776 = vpack.c.b16 %v4566, %v4564
    %v4777 = vpack.c.b16 %v4569, %v4567
    %v4778 = vpack.c.b16 %v4570, %v4568
    %v4779 = vpack.c.b16 %v4573, %v4571
    %v4780 = vpack.c.b16 %v4574, %v4572
    %v4781 = vpack.c.b16 %v4577, %v4575
    %v4782 = vpack.c.b16 %v4578, %v4576
    %v4783 = vpack.c.b16 %v4581, %v4579
    %v4784 = vpack.c.b16 %v4582, %v4580
    %v4785 = vpack.c.b16 %v4585, %v4583
    %v4786 = vpack.c.b16 %v4586, %v4584
    %v4787 = vpack.c.b16 %v4589, %v4587
    %v4788 = vpack.c.b16 %v4590, %v4588
    %v4789 = vpack.c.b16 %v4593, %v4591
    %v4790 = vpack.c.b16 %v4594, %v4592
    %v4791 = vpack.c.b16 %v4597, %v4595
    %v4792 = vpack.c.b16 %v4598, %v4596
    %v4793 = vpack.c.b16 %v4601, %v4599
    %v4794 = vpack.c.b16 %v4602, %v4600
    %v4795 = vpack.c.b16 %v4605, %v4603
    %v4796 = vpack.c.b16 %v4606, %v4604
    %v4797 = vpack.c.b16 %v4609, %v4607
    %v4798 = vpack.c.b16 %v4610, %v4608
    %v4799 = vpack.c.b16 %v4613, %v4611
    %v4800 = vpack.c.b16 %v4614, %v4612
    %v4801 = vpack.c.b16 %v4617, %v4615
    %v4802 = vpack.c.b16 %v4618, %v4616
    %v4803 = vpack.c.b16 %v4621, %v4619
    %v4804 = vpack.c.b16 %v4622, %v4620
    %v4805 = vpack.c.b16 %v4625, %v4623
    %v4806 = vpack.c.b16 %v4626, %v4624
    %v4807 = vpack.c.b16 %v4629, %v4627
    %v4808 = vpack.c.b16 %v4630, %v4628
    %v4809 = vpack.c.b16 %v4633, %v4631
    %v4810 = vpack.c.b16 %v4634, %v4632
    %v4811 = vpack.c.b16 %v4637, %v4635
    %v4812 = vpack.c.b16 %v4638, %v4636
    %v4813 = vpack.c.b16 %v4641, %v4639
    %v4814 = vpack.c.b16 %v4642, %v4640
    %v4815 = vpack.c.b16 %v4645, %v4643
    %v4816 = vpack.c.b16 %v4646, %v4644
    %v4817 = vpack.c.b16 %v4649, %v4647
    %v4818 = vpack.c.b16 %v4650, %v4648
    %v4819 = vpack.c.b16 %v4653, %v4651
    %v4820 = vpack.c.b16 %v4654, %v4652
    %v4821 = vpack.c.b16 %v4657, %v4655
    %v4822 = vpack.c.b16 %v4658, %v4656
    %v4823 = vpack.c.b16 %v4661, %v4659
    %v4824 = vpack.c.b16 %v4662, %v4660
    %v4825 = vpack.c.b16 %v4665, %v4663
    %v4826 = vpack.c.b16 %v4666, %v4664
    %v4827 = vpack.c.b16 %v4669, %v4667
    %v4828 = vpack.c.b16 %v4670, %v4668
    %v4829 = vpack.c.b16 %v4673, %v4671
    %v4830 = vpack.c.b16 %v4674, %v4672
    %v4831 = vpack.c.b16 %v4677, %v4675
    %v4832 = vpack.c.b16 %v4678, %v4676
    %v4833 = vpack.c.b16 %v4681, %v4679
    %v4834 = vpack.c.b16 %v4682, %v4680
    %v4835 = vpack.c.b16 %v4685, %v4683
    %v4836 = vpack.c.b16 %v4686, %v4684
    %v4837 = vpack.c.b16 %v4689, %v4687
    %v4838 = vpack.c.b16 %v4690, %v4688
    %v4839 = vpack.c.b16 %v4693, %v4691
    %v4840 = vpack.c.b16 %v4694, %v4692
    %v4841 = vpack.c.b16 %v4697, %v4695
    %v4842 = vpack.c.b16 %v4698, %v4696
    %v4843 = vpack.c.b16 %v4701, %v4699
    %v4844 = vpack.c.b16 %v4702, %v4700
    %v4845 = vpack.c.b16 %v4705, %v4703
    %v4846 = vpack.c.b16 %v4706, %v4704
    %v4847 = vpack.c.b16 %v4709, %v4707
    %v4848 = vpack.c.b16 %v4710, %v4708
    %v4849 = vpack.c.b16 %v4713, %v4711
    %v4850 = vpack.c.b16 %v4714, %v4712
    %v4851 = vpack.c.b16 %v4717, %v4715
    %v4852 = vpack.c.b16 %v4718, %v4716
    %v4853 = vpack.c.b16 %v4721, %v4719
    %v4854 = vpack.c.b16 %v4722, %v4720
    %v4855 = vpack.c.b16 %v4725, %v4723
    %v4856 = vpack.c.b16 %v4726, %v4724
    %v4857 = vpack.c.b16 %v4729, %v4727
    %v4858 = vpack.c.b16 %v4730, %v4728
    %4987 = vmatpush.bf16.msra.mxu0 %v4745
    %4988 = vmatpush.bf16.msra.mxu0 %v4743
    %4989 = vmatpush.bf16.msra.mxu0 %v4741
    %4990 = vmatpush.bf16.msra.mxu0 %v4739
    %4991 = vmatpush.bf16.msra.mxu0 %v4737
    %4992 = vmatpush.bf16.msra.mxu0 %v4735
    %4993 = vmatpush.bf16.msra.mxu0 %v4733
    %4994 = vmatpush.bf16.msra.mxu0 %v4731
    %4995 = vmatmul.bf16.gmra.mxu0 %v4205
    %v4996 = vpop.f32.mrf.mxu0
    %v4997 = vadd.f32 %v4343, %v4996
    %v4998 = vpop.f32.mrf.mxu0
    %4999 = vdwg.mxu0
    %5000 = vmatpush.bf16.msra.mxu0 %v4761
    %5001 = vmatpush.bf16.msra.mxu0 %v4759
    %5002 = vmatpush.bf16.msra.mxu0 %v4757
    %5003 = vmatpush.bf16.msra.mxu0 %v4755
    %5004 = vmatpush.bf16.msra.mxu0 %v4753
    %5005 = vmatpush.bf16.msra.mxu0 %v4751
    %5006 = vmatpush.bf16.msra.mxu0 %v4749
    %5007 = vmatpush.bf16.msra.mxu0 %v4747
    %5008 = vmatmul.bf16.gmra.mxu0 %v4206
    %v5009 = vpop.f32.mrf.mxu0
    %v5010 = vadd.f32 %v4997, %v5009
    %v5011 = vpop.f32.mrf.mxu0
    %5012 = vdwg.mxu0
    %5013 = vmatpush.bf16.msra.mxu0 %v4777
    %5014 = vmatpush.bf16.msra.mxu0 %v4775
    %5015 = vmatpush.bf16.msra.mxu0 %v4773
    %5016 = vmatpush.bf16.msra.mxu0 %v4771
    %5017 = vmatpush.bf16.msra.mxu0 %v4769
    %5018 = vmatpush.bf16.msra.mxu0 %v4767
    %5019 = vmatpush.bf16.msra.mxu0 %v4765
    %5020 = vmatpush.bf16.msra.mxu0 %v4763
    %5021 = vmatmul.bf16.gmra.mxu0 %v4207
    %v5022 = vpop.f32.mrf.mxu0
    %v5023 = vadd.f32 %v5010, %v5022
    %v5024 = vpop.f32.mrf.mxu0
    %5025 = vdwg.mxu0
    %5026 = vmatpush.bf16.msra.mxu0 %v4793
    %5027 = vmatpush.bf16.msra.mxu0 %v4791
    %5028 = vmatpush.bf16.msra.mxu0 %v4789
    %5029 = vmatpush.bf16.msra.mxu0 %v4787
    %5030 = vmatpush.bf16.msra.mxu0 %v4785
    %5031 = vmatpush.bf16.msra.mxu0 %v4783
    %5032 = vmatpush.bf16.msra.mxu0 %v4781
    %5033 = vmatpush.bf16.msra.mxu0 %v4779
    %5034 = vmatmul.bf16.gmra.mxu0 %v4208
    %v5035 = vpop.f32.mrf.mxu0
    %v5036 = vadd.f32 %v5023, %v5035
    %v5037 = vpop.f32.mrf.mxu0
    %5038 = vdwg.mxu0
    %5039 = vmatpush.bf16.msra.mxu0 %v4809
    %5040 = vmatpush.bf16.msra.mxu0 %v4807
    %5041 = vmatpush.bf16.msra.mxu0 %v4805
    %5042 = vmatpush.bf16.msra.mxu0 %v4803
    %5043 = vmatpush.bf16.msra.mxu0 %v4801
    %5044 = vmatpush.bf16.msra.mxu0 %v4799
    %5045 = vmatpush.bf16.msra.mxu0 %v4797
    %5046 = vmatpush.bf16.msra.mxu0 %v4795
    %5047 = vmatmul.bf16.gmra.mxu0 %v4209
    %v5048 = vpop.f32.mrf.mxu0
    %v5049 = vadd.f32 %v5036, %v5048
    %v5050 = vpop.f32.mrf.mxu0
    %5051 = vdwg.mxu0
    %5052 = vmatpush.bf16.msra.mxu0 %v4825
    %5053 = vmatpush.bf16.msra.mxu0 %v4823
    %5054 = vmatpush.bf16.msra.mxu0 %v4821
    %5055 = vmatpush.bf16.msra.mxu0 %v4819
    %5056 = vmatpush.bf16.msra.mxu0 %v4817
    %5057 = vmatpush.bf16.msra.mxu0 %v4815
    %5058 = vmatpush.bf16.msra.mxu0 %v4813
    %5059 = vmatpush.bf16.msra.mxu0 %v4811
    %5060 = vmatmul.bf16.gmra.mxu0 %v4210
    %v5061 = vpop.f32.mrf.mxu0
    %v5062 = vadd.f32 %v5049, %v5061
    %v5063 = vpop.f32.mrf.mxu0
    %5064 = vdwg.mxu0
    %5065 = vmatpush.bf16.msra.mxu0 %v4841
    %5066 = vmatpush.bf16.msra.mxu0 %v4839
    %5067 = vmatpush.bf16.msra.mxu0 %v4837
    %5068 = vmatpush.bf16.msra.mxu0 %v4835
    %5069 = vmatpush.bf16.msra.mxu0 %v4833
    %5070 = vmatpush.bf16.msra.mxu0 %v4831
    %5071 = vmatpush.bf16.msra.mxu0 %v4829
    %5072 = vmatpush.bf16.msra.mxu0 %v4827
    %5073 = vmatmul.bf16.gmra.mxu0 %v4211
    %v5074 = vpop.f32.mrf.mxu0
    %v5075 = vadd.f32 %v5062, %v5074
    %v5076 = vpop.f32.mrf.mxu0
    %5077 = vdwg.mxu0
    %5078 = vmatpush.bf16.msra.mxu0 %v4857
    %5079 = vmatpush.bf16.msra.mxu0 %v4855
    %5080 = vmatpush.bf16.msra.mxu0 %v4853
    %5081 = vmatpush.bf16.msra.mxu0 %v4851
    %5082 = vmatpush.bf16.msra.mxu0 %v4849
    %5083 = vmatpush.bf16.msra.mxu0 %v4847
    %5084 = vmatpush.bf16.msra.mxu0 %v4845
    %5085 = vmatpush.bf16.msra.mxu0 %v4843
    %5086 = vmatmul.bf16.gmra.mxu0 %v4212
    %v5087 = vpop.f32.mrf.mxu0
    %v5088 = vadd.f32 %v5075, %v5087
    %v5089 = vpop.f32.mrf.mxu0
    %5090 = vdwg.mxu0
    %5091 = vmatpush.bf16.msra.mxu0 %v4746
    %5092 = vmatpush.bf16.msra.mxu0 %v4744
    %5093 = vmatpush.bf16.msra.mxu0 %v4742
    %5094 = vmatpush.bf16.msra.mxu0 %v4740
    %5095 = vmatpush.bf16.msra.mxu0 %v4738
    %5096 = vmatpush.bf16.msra.mxu0 %v4736
    %5097 = vmatpush.bf16.msra.mxu0 %v4734
    %5098 = vmatpush.bf16.msra.mxu0 %v4732
    %5099 = vmatmul.bf16.gmra.mxu0 %v4205
    %v5100 = vpop.f32.mrf.mxu0
    %v5101 = vadd.f32 %v4344, %v5100
    %v5102 = vpop.f32.mrf.mxu0
    %5103 = vdwg.mxu0
    %5104 = vmatpush.bf16.msra.mxu0 %v4762
    %5105 = vmatpush.bf16.msra.mxu0 %v4760
    %5106 = vmatpush.bf16.msra.mxu0 %v4758
    %5107 = vmatpush.bf16.msra.mxu0 %v4756
    %5108 = vmatpush.bf16.msra.mxu0 %v4754
    %5109 = vmatpush.bf16.msra.mxu0 %v4752
    %5110 = vmatpush.bf16.msra.mxu0 %v4750
    %5111 = vmatpush.bf16.msra.mxu0 %v4748
    %5112 = vmatmul.bf16.gmra.mxu0 %v4206
    %v5113 = vpop.f32.mrf.mxu0
    %v5114 = vadd.f32 %v5101, %v5113
    %v5115 = vpop.f32.mrf.mxu0
    %5116 = vdwg.mxu0
    %5117 = vmatpush.bf16.msra.mxu0 %v4778
    %5118 = vmatpush.bf16.msra.mxu0 %v4776
    %5119 = vmatpush.bf16.msra.mxu0 %v4774
    %5120 = vmatpush.bf16.msra.mxu0 %v4772
    %5121 = vmatpush.bf16.msra.mxu0 %v4770
    %5122 = vmatpush.bf16.msra.mxu0 %v4768
    %5123 = vmatpush.bf16.msra.mxu0 %v4766
    %5124 = vmatpush.bf16.msra.mxu0 %v4764
    %5125 = vmatmul.bf16.gmra.mxu0 %v4207
    %v5126 = vpop.f32.mrf.mxu0
    %v5127 = vadd.f32 %v5114, %v5126
    %v5128 = vpop.f32.mrf.mxu0
    %5129 = vdwg.mxu0
    %5130 = vmatpush.bf16.msra.mxu0 %v4794
    %5131 = vmatpush.bf16.msra.mxu0 %v4792
    %5132 = vmatpush.bf16.msra.mxu0 %v4790
    %5133 = vmatpush.bf16.msra.mxu0 %v4788
    %5134 = vmatpush.bf16.msra.mxu0 %v4786
    %5135 = vmatpush.bf16.msra.mxu0 %v4784
    %5136 = vmatpush.bf16.msra.mxu0 %v4782
    %5137 = vmatpush.bf16.msra.mxu0 %v4780
    %5138 = vmatmul.bf16.gmra.mxu0 %v4208
    %v5139 = vpop.f32.mrf.mxu0
    %v5140 = vadd.f32 %v5127, %v5139
    %v5141 = vpop.f32.mrf.mxu0
    %5142 = vdwg.mxu0
    %5143 = vmatpush.bf16.msra.mxu0 %v4810
    %5144 = vmatpush.bf16.msra.mxu0 %v4808
    %5145 = vmatpush.bf16.msra.mxu0 %v4806
    %5146 = vmatpush.bf16.msra.mxu0 %v4804
    %5147 = vmatpush.bf16.msra.mxu0 %v4802
    %5148 = vmatpush.bf16.msra.mxu0 %v4800
    %5149 = vmatpush.bf16.msra.mxu0 %v4798
    %5150 = vmatpush.bf16.msra.mxu0 %v4796
    %5151 = vmatmul.bf16.gmra.mxu0 %v4209
    %v5152 = vpop.f32.mrf.mxu0
    %v5153 = vadd.f32 %v5140, %v5152
    %v5154 = vpop.f32.mrf.mxu0
    %5155 = vdwg.mxu0
    %5156 = vmatpush.bf16.msra.mxu0 %v4826
    %5157 = vmatpush.bf16.msra.mxu0 %v4824
    %5158 = vmatpush.bf16.msra.mxu0 %v4822
    %5159 = vmatpush.bf16.msra.mxu0 %v4820
    %5160 = vmatpush.bf16.msra.mxu0 %v4818
    %5161 = vmatpush.bf16.msra.mxu0 %v4816
    %5162 = vmatpush.bf16.msra.mxu0 %v4814
    %5163 = vmatpush.bf16.msra.mxu0 %v4812
    %5164 = vmatmul.bf16.gmra.mxu0 %v4210
    %v5165 = vpop.f32.mrf.mxu0
    %v5166 = vadd.f32 %v5153, %v5165
    %v5167 = vpop.f32.mrf.mxu0
    %5168 = vdwg.mxu0
    %5169 = vmatpush.bf16.msra.mxu0 %v4842
    %5170 = vmatpush.bf16.msra.mxu0 %v4840
    %5171 = vmatpush.bf16.msra.mxu0 %v4838
    %5172 = vmatpush.bf16.msra.mxu0 %v4836
    %5173 = vmatpush.bf16.msra.mxu0 %v4834
    %5174 = vmatpush.bf16.msra.mxu0 %v4832
    %5175 = vmatpush.bf16.msra.mxu0 %v4830
    %5176 = vmatpush.bf16.msra.mxu0 %v4828
    %5177 = vmatmul.bf16.gmra.mxu0 %v4211
    %v5178 = vpop.f32.mrf.mxu0
    %v5179 = vadd.f32 %v5166, %v5178
    %v5180 = vpop.f32.mrf.mxu0
    %5181 = vdwg.mxu0
    %5182 = vmatpush.bf16.msra.mxu0 %v4858
    %5183 = vmatpush.bf16.msra.mxu0 %v4856
    %5184 = vmatpush.bf16.msra.mxu0 %v4854
    %5185 = vmatpush.bf16.msra.mxu0 %v4852
    %5186 = vmatpush.bf16.msra.mxu0 %v4850
    %5187 = vmatpush.bf16.msra.mxu0 %v4848
    %5188 = vmatpush.bf16.msra.mxu0 %v4846
    %5189 = vmatpush.bf16.msra.mxu0 %v4844
    %5190 = vmatmul.bf16.gmra.mxu0 %v4212
    %v5191 = vpop.f32.mrf.mxu0
    %v5192 = vadd.f32 %v5179, %v5191
    %v5193 = vpop.f32.mrf.mxu0
    %5194 = vdwg.mxu0
    %v5195 = vtanh.pop %v5088
    %v5196 = vtanh.pop %v5192
    %v5199 = vrot.slane %v5196, 6
    %v5200 = vsel %vm681, %v5195, %v5199
    %5202 = vst [vmem:[%s15] sm:$0xf] %v5200
    // Predicated region
    $region82: #{generator_forward.1} parent=1 // pred_check
      _
    $region83: #{generator_forward.1} parent=1 // pred_check_branch
      %5204 = sbr.rel (0) target = $region85
    $region84: #{generator_forward.1} parent=1 // pred_region
      _
    $region85: #{generator_forward.1} parent=1 // pred_fallthru
      _
    // Predicated region
    $region86: #{generator_forward.1} parent=1 // pred_check
      _
    $region87: #{generator_forward.1} parent=1 // pred_check_branch
      %5206 = sbr.rel (0) target = $region89
    $region88: #{generator_forward.1} parent=1 // pred_region
      _
    $region89: #{generator_forward.1} parent=1 // pred_fallthru
      _
    %5207 = vsyncpa [#allocation3], 1
    %5208 = vsyncpa [#allocation5], 1
    %5209 = vsyncpa [#allocation8], 1

</llo_original>
